<compile_context>
chip_gen: v6e
topology: v6e:2x2x1
jax: 0.10.0
libtpu: 0.0.40
codegen_flags: <defaults>
</compile_context>

<pallas_src>
import functools

import jax
import jax.numpy as jnp
from jax.experimental import pallas as pl
from jax.experimental.pallas import tpu as pltpu

F_NODE = 48
F_EDGE = 128
HIDDEN = 128
EPS = 1e-5

MAX_TILE_ROWS = 512            # keeps per-tile VMEM modest even on v7x (64 MiB)
PARALLEL_SPLIT = 2             # leading "parallel" grid axis (megacore / 2 TCs)
VMEM_LIMIT = 48 * 1024 * 1024  # above v5e/v6e 16/32 MiB scoped default, < 64 MiB


def _round_up(a, b):
    return (a + b - 1) // b * b


def _choose_tile(total, parallel, granule):
    per_core = -(-total // parallel)
    return min(MAX_TILE_ROWS, _round_up(per_core, granule))


# ---------------------------------------------------------------------------
# Kernel 1/3: pre = a @ Wa + b @ Wb  (split matmul of cat([a, b]) @ W, no bias:
# the pre-BN bias is absorbed by the mean subtraction) + per-core BN statistics
# (sum, sum-of-squares) accumulated across the inner ("arbitrary") grid axis.
# ---------------------------------------------------------------------------
def split_linear_stats_kernel(a_ref, b_ref, wa_ref, wb_ref, pre_ref, stats_ref):
    pre = (jnp.dot(a_ref[...].astype(jnp.bfloat16), wa_ref[...],
                   preferred_element_type=jnp.float32)
           + jnp.dot(b_ref[...].astype(jnp.bfloat16), wb_ref[...],
                     preferred_element_type=jnp.float32))
    pre_ref[...] = pre

    @pl.when(pl.program_id(1) == 0)
    def _():
        stats_ref[...] = jnp.zeros_like(stats_ref)

    s = jnp.sum(pre, axis=0, keepdims=True)            # [1, H]
    ss = jnp.sum(pre * pre, axis=0, keepdims=True)     # [1, H]
    stats_ref[...] += jnp.concatenate([s, ss], axis=0)[None, :, :]


def _split_linear_stats(a, b, wa, wb, parallel, tile, n_inner):
    rows, fa = a.shape
    fb = b.shape[1]
    pre, stats = pl.pallas_call(
        split_linear_stats_kernel,
        grid=(parallel, n_inner),
        in_specs=[
            pl.BlockSpec((tile, fa), lambda p, t: (p * n_inner + t, 0)),
            pl.BlockSpec((tile, fb), lambda p, t: (p * n_inner + t, 0)),
            pl.BlockSpec((fa, HIDDEN), lambda p, t: (0, 0)),
            pl.BlockSpec((fb, HIDDEN), lambda p, t: (0, 0)),
        ],
        out_specs=[
            pl.BlockSpec((tile, HIDDEN), lambda p, t: (p * n_inner + t, 0)),
            pl.BlockSpec((1, 2, HIDDEN), lambda p, t: (p, 0, 0)),
        ],
        out_shape=[
            jax.ShapeDtypeStruct((rows, HIDDEN), jnp.float32),
            jax.ShapeDtypeStruct((parallel, 2, HIDDEN), jnp.float32),
        ],
        compiler_params=pltpu.CompilerParams(
            dimension_semantics=("parallel", "arbitrary"),
            vmem_limit_bytes=VMEM_LIMIT),
    )(a, b, wa, wb)
    return pre, stats


def _bn_scale_shift(stats, count, gamma, beta):
    """Fold BatchNorm (batch stats, biased var, eps=1e-5) into scale/shift."""
    st = jnp.sum(stats, axis=0)                 # combine per-core partials -> [2, H]
    mu = st[0:1, :] * (1.0 / count)
    ex2 = st[1:2, :] * (1.0 / count)
    var = jnp.maximum(ex2 - mu * mu, 0.0)       # biased variance (training mode)
    scale = gamma * jax.lax.rsqrt(var + EPS)
    shift = beta - mu * scale
    return scale, shift


# ---------------------------------------------------------------------------
# Kernel 2: per edge-tile BN (folded) + ReLU + Linear(128,128), then a tiled
# one-hot scatter-mean accumulated into a resident [N,128] output + [N,1]
# count scratch; normalized with an EUP reciprocal on the last tile.
# ---------------------------------------------------------------------------
def bn_lin_scatter_kernel(pre_ref, col_ref, stats_ref, g_ref, be_ref, w_ref,
                          b_ref, agg_ref, counts_ref, *, count, n_pad):
    t = pl.program_id(0)

    @pl.when(t == 0)
    def _():
        agg_ref[...] = jnp.zeros_like(agg_ref)
        counts_ref[...] = jnp.zeros_like(counts_ref)

    scale, shift = _bn_scale_shift(stats_ref[...], count, g_ref[...], be_ref[...])
    h = jnp.maximum(pre_ref[...] * scale + shift, 0.0)
    h2 = (jnp.dot(h.astype(jnp.bfloat16), w_ref[...],
                  preferred_element_type=jnp.float32) + b_ref[...])   # [TE, H]

    col = col_ref[...]                                                # [1, TE]
    onehot = (jax.lax.broadcasted_iota(jnp.int32, (n_pad, col.shape[1]), 0)
              == col).astype(jnp.float32)                             # [N, TE]
    agg_ref[...] += jnp.dot(onehot.astype(jnp.bfloat16), h2.astype(jnp.bfloat16),
                            preferred_element_type=jnp.float32)
    counts_ref[...] += jnp.sum(onehot, axis=1, keepdims=True)         # [N, 1]

    @pl.when(t == pl.num_programs(0) - 1)
    def _():
        inv = pl.reciprocal(jnp.maximum(counts_ref[...], 1.0), approx=True)
        agg_ref[...] = agg_ref[...] * inv                             # empty -> 0


def _bn_lin_scatter(pre, col2d, stats, g, be, w, b, count, n_pad, tile):
    n_tiles = pre.shape[0] // tile
    kernel = functools.partial(bn_lin_scatter_kernel,
                               count=float(count), n_pad=int(n_pad))
    return pl.pallas_call(
        kernel,
        grid=(n_tiles,),
        in_specs=[
            pl.BlockSpec((tile, HIDDEN), lambda t: (t, 0)),
            pl.BlockSpec((1, tile), lambda t: (0, t)),
            pl.BlockSpec(stats.shape, lambda t: (0, 0, 0)),
            pl.BlockSpec((1, HIDDEN), lambda t: (0, 0)),
            pl.BlockSpec((1, HIDDEN), lambda t: (0, 0)),
            pl.BlockSpec((HIDDEN, HIDDEN), lambda t: (0, 0)),
            pl.BlockSpec((1, HIDDEN), lambda t: (0, 0)),
        ],
        out_specs=pl.BlockSpec((n_pad, HIDDEN), lambda t: (0, 0)),
        out_shape=jax.ShapeDtypeStruct((n_pad, HIDDEN), jnp.float32),
        scratch_shapes=[pltpu.VMEM((n_pad, 1), jnp.float32)],
        compiler_params=pltpu.CompilerParams(
            dimension_semantics=("arbitrary",),
            vmem_limit_bytes=VMEM_LIMIT),
    )(pre, col2d, stats, g, be, w, b)


# ---------------------------------------------------------------------------
# Kernel 4: per node-tile BN (folded) + ReLU + Linear(128,128)  (fully parallel)
# ---------------------------------------------------------------------------
def bn_lin_out_kernel(pre_ref, stats_ref, g_ref, be_ref, w_ref, b_ref, o_ref,
                      *, count):
    scale, shift = _bn_scale_shift(stats_ref[...], count, g_ref[...], be_ref[...])
    h = jnp.maximum(pre_ref[...] * scale + shift, 0.0)
    o_ref[...] = (jnp.dot(h.astype(jnp.bfloat16), w_ref[...],
                          preferred_element_type=jnp.float32) + b_ref[...])


def _bn_lin_out(pre, stats, g, be, w, b, count, tile):
    n_pad = pre.shape[0]
    kernel = functools.partial(bn_lin_out_kernel, count=float(count))
    return pl.pallas_call(
        kernel,
        grid=(n_pad // tile,),
        in_specs=[
            pl.BlockSpec((tile, HIDDEN), lambda t: (t, 0)),
            pl.BlockSpec(stats.shape, lambda t: (0, 0, 0)),
            pl.BlockSpec((1, HIDDEN), lambda t: (0, 0)),
            pl.BlockSpec((1, HIDDEN), lambda t: (0, 0)),
            pl.BlockSpec((HIDDEN, HIDDEN), lambda t: (0, 0)),
            pl.BlockSpec((1, HIDDEN), lambda t: (0, 0)),
        ],
        out_specs=pl.BlockSpec((tile, HIDDEN), lambda t: (t, 0)),
        out_shape=jax.ShapeDtypeStruct((n_pad, HIDDEN), jnp.float32),
        compiler_params=pltpu.CompilerParams(
            dimension_semantics=("parallel",),
            vmem_limit_bytes=VMEM_LIMIT),
    )(pre, stats, g, be, w, b)


# ---------------------------------------------------------------------------
# Parameters (PyTorch-style init; weights stored [in, out], Lin(176,128) split
# into the node-feature block and the edge/agg block).
# ---------------------------------------------------------------------------
def init_params(key):
    def linear(key, fan_in, fan_out):
        kw, kb = jax.random.split(key)
        bound = 1.0 / jnp.sqrt(fan_in)
        w = jax.random.uniform(kw, (fan_in, fan_out), jnp.float32, -bound, bound)
        b = jax.random.uniform(kb, (1, fan_out), jnp.float32, -bound, bound)
        return w, b

    keys = jax.random.split(key, 4)
    w1a, b1a = linear(keys[0], F_NODE + F_EDGE, HIDDEN)
    w1b, b1b = linear(keys[1], HIDDEN, HIDDEN)
    w2a, b2a = linear(keys[2], F_NODE + HIDDEN, HIDDEN)
    w2b, b2b = linear(keys[3], HIDDEN, HIDDEN)
    ones = jnp.ones((1, HIDDEN), jnp.float32)
    zeros = jnp.zeros((1, HIDDEN), jnp.float32)
    return dict(
        w1ax=w1a[:F_NODE], w1ae=w1a[F_NODE:], b1a=b1a, g1=ones, be1=zeros,
        w1b=w1b, b1b=b1b,
        w2ax=w2a[:F_NODE], w2aa=w2a[F_NODE:], b2a=b2a, g2=ones, be2=zeros,
        w2b=w2b, b2b=b2b,
    )


def node_block_forward(x, edge_index, edge_attr, u, batch, params):
    # u and batch are accepted for API parity with the PyTorch module but are
    # not used in its forward computation.
    del u, batch
    n_nodes, n_edges = x.shape[0], edge_attr.shape[0]
    row = edge_index[0]
    col = edge_index[1].astype(jnp.int32)

    P = PARALLEL_SPLIT
    # Edge tiles: multiple of 128 so the int32 col blocks are lane-aligned.
    te = _choose_tile(n_edges, P, 128)
    e_pad = _round_up(n_edges, P * te)
    ne = e_pad // (P * te)
    # Node tiles: multiple of 8 (sublane) is enough (feature dims are full).
    tn = _choose_tile(n_nodes, P, 8)
    n_pad = _round_up(n_nodes, P * tn)
    nn = n_pad // (P * tn)

    # Zero padding keeps the BatchNorm statistics exact: the pre-BN biases are
    # dropped (absorbed by the mean subtraction), so padded rows contribute 0
    # to both sum and sum-of-squares, and we divide by the *true* row count.
    x_row = jnp.pad(x[row], ((0, e_pad - n_edges), (0, 0)))
    ea_p = jnp.pad(edge_attr, ((0, e_pad - n_edges), (0, 0)))
    col_p = jnp.pad(col, (0, e_pad - n_edges),
                    constant_values=n_pad).reshape(1, e_pad)   # pad -> no node
    x_p = jnp.pad(x, ((0, n_pad - n_nodes), (0, 0)))

    bf = lambda w: w.astype(jnp.bfloat16)   # cast weights once in the wrapper

    # --- node_mlp_1, pass A: split matmul + BN1 statistics (per-core partials)
    pre1, stats1 = _split_linear_stats(
        x_row, ea_p, bf(params["w1ax"]), bf(params["w1ae"]), P, te, ne)
    # note: params["b1a"] intentionally unused (exactly absorbed by BN1 mean).

    # --- node_mlp_1, pass B: BN1 + ReLU + Lin(128,128) + scatter_mean by col
    agg = _bn_lin_scatter(pre1, col_p, stats1, params["g1"], params["be1"],
                          bf(params["w1b"]), params["b1b"],
                          count=n_edges, n_pad=n_pad, tile=te)

    # --- node_mlp_2, pass A: split matmul + BN2 statistics
    pre2, stats2 = _split_linear_stats(
        x_p, agg, bf(params["w2ax"]), bf(params["w2aa"]), P, tn, nn)
    # note: params["b2a"] intentionally unused (exactly absorbed by BN2 mean).

    # --- node_mlp_2, pass B: BN2 + ReLU + Lin(128,128)
    out = _bn_lin_out(pre2, stats2, params["g2"], params["be2"],
                      bf(params["w2b"]), params["b2b"],
                      count=n_nodes, tile=tn)
    return out[:n_nodes]


def reference_forward(x, edge_index, edge_attr, params):
    """Plain-JAX float32 reference mirroring the PyTorch module exactly."""
    row, col = edge_index[0], edge_index[1]
    n = x.shape[0]
    w1a = jnp.concatenate([params["w1ax"], params["w1ae"]], axis=0)
    h = jnp.concatenate([x[row], edge_attr], axis=1) @ w1a + params["b1a"]
    mu = jnp.mean(h, axis=0, keepdims=True)
    var = jnp.mean(jnp.square(h - mu), axis=0, keepdims=True)
    h = (h - mu) / jnp.sqrt(var + EPS) * params["g1"] + params["be1"]
    h = jnp.maximum(h, 0.0) @ params["w1b"] + params["b1b"]
    sums = jnp.zeros((n, HIDDEN), jnp.float32).at[col].add(h)
    counts = jnp.zeros((n, 1), jnp.float32).at[col].add(1.0)
    agg = sums / jnp.maximum(counts, 1.0)
    w2a = jnp.concatenate([params["w2ax"], params["w2aa"]], axis=0)
    g = jnp.concatenate([x, agg], axis=1) @ w2a + params["b2a"]
    mu2 = jnp.mean(g, axis=0, keepdims=True)
    var2 = jnp.mean(jnp.square(g - mu2), axis=0, keepdims=True)
    g = (g - mu2) / jnp.sqrt(var2 + EPS) * params["g2"] + params["be2"]
    return jnp.maximum(g, 0.0) @ params["w2b"] + params["b2b"]


if __name__ == "__main__":
    key = jax.random.PRNGKey(0)
    k_param, k_x, k_ea, k_ei, k_u = jax.random.split(key, 5)

    N, E = 60, 250                      # deliberately not tile-aligned
    params = init_params(k_param)
    x = jax.random.normal(k_x, (N, F_NODE), jnp.float32)
    edge_attr = jax.random.normal(k_ea, (E, F_EDGE), jnp.float32)
    edge_index = jax.random.randint(k_ei, (2, E), 0, N, jnp.int32)
    u = jax.random.normal(k_u, (1, 16), jnp.float32)    # unused by forward
    batch = jnp.zeros((N,), jnp.int32)                   # unused by forward

    fwd = jax.jit(node_block_forward)
    out = jax.block_until_ready(fwd(x, edge_index, edge_attr, u, batch, params))
    assert out.shape == (N, HIDDEN) and out.dtype == jnp.float32

    ref = reference_forward(x, edge_index, edge_attr, params)
    err = float(jnp.max(jnp.abs(out - ref)))
    assert err < 0.15, f"kernel mismatch vs f32 reference: max abs err {err}"
    print("KERNEL_OK")
</pallas_src>

<mosaic_0001>
module attributes {stable_mosaic.version = 11 : i64} {
  func.func @split_linear_stats_kernel(%arg0: i32, %arg1: i32, %arg2: memref<128x48xf32, #tpu.memory_space<vmem>>, %arg3: memref<128x128xf32, #tpu.memory_space<vmem>>, %arg4: memref<48x128xbf16, #tpu.memory_space<vmem>>, %arg5: memref<128x128xbf16, #tpu.memory_space<vmem>>, %arg6: memref<128x128xf32, #tpu.memory_space<vmem>>, %arg7: memref<1x2x128xf32, #tpu.memory_space<vmem>>) attributes {dimension_semantics = [#tpu.dimension_semantics<parallel>, #tpu.dimension_semantics<arbitrary>], iteration_bounds = array<i64: 2, 1>, scalar_prefetch = 0 : i64, scratch_operands = 0 : i64, tpu.core_type = #tpu.core_type<tc>, window_params = [{transform_indices = @transform_0, window_bounds = array<i64: 128, 48>}, {transform_indices = @transform_1, window_bounds = array<i64: 128, 128>}, {pipeline_mode = #tpu.pipeline_mode<synchronous>, transform_indices = @transform_2, window_bounds = array<i64: 48, 128>}, {pipeline_mode = #tpu.pipeline_mode<synchronous>, transform_indices = @transform_3, window_bounds = array<i64: 128, 128>}, {transform_indices = @transform_4, window_bounds = array<i64: 128, 128>}, {transform_indices = @transform_5, window_bounds = array<i64: 1, 2, 128>}]} {
    %c0 = arith.constant 0 : index
    %c0_0 = arith.constant 0 : index
    %0 = vector.load %arg2[%c0, %c0_0] : memref<128x48xf32, #tpu.memory_space<vmem>>, vector<128x48xf32>
    %1 = arith.truncf %0 : vector<128x48xf32> to vector<128x48xbf16>
    %c0_1 = arith.constant 0 : index
    %c0_2 = arith.constant 0 : index
    %2 = vector.load %arg4[%c0_1, %c0_2] : memref<48x128xbf16, #tpu.memory_space<vmem>>, vector<48x128xbf16>
    %cst = arith.constant dense<0.000000e+00> : vector<128x128xf32>
    %3 = tpu.matmul %1, %2, %cst {dimension_numbers = #tpu.dot_dimension_numbers<[1], [0], [0], [1], [0, 0, 1, 1], [], []>} : vector<128x48xbf16>, vector<48x128xbf16>, vector<128x128xf32> -> vector<128x128xf32>
    %c0_3 = arith.constant 0 : index
    %c0_4 = arith.constant 0 : index
    %4 = vector.load %arg3[%c0_3, %c0_4] : memref<128x128xf32, #tpu.memory_space<vmem>>, vector<128x128xf32>
    %5 = arith.truncf %4 : vector<128x128xf32> to vector<128x128xbf16>
    %c0_5 = arith.constant 0 : index
    %c0_6 = arith.constant 0 : index
    %6 = vector.load %arg5[%c0_5, %c0_6] : memref<128x128xbf16, #tpu.memory_space<vmem>>, vector<128x128xbf16>
    %cst_7 = arith.constant dense<0.000000e+00> : vector<128x128xf32>
    %7 = tpu.matmul %5, %6, %cst_7 {dimension_numbers = #tpu.dot_dimension_numbers<[1], [0], [0], [1], [0, 0, 1, 1], [], []>} : vector<128x128xbf16>, vector<128x128xbf16>, vector<128x128xf32> -> vector<128x128xf32>
    %8 = arith.addf %3, %7 : vector<128x128xf32>
    %c0_8 = arith.constant 0 : index
    %c0_9 = arith.constant 0 : index
    %9 = vector.load %arg6[%c0_8, %c0_9] : memref<128x128xf32, #tpu.memory_space<vmem>>, vector<128x128xf32>
    tpu.vector_store %arg6[%c0_8, %c0_9], %8 {strides = array<i32>} : memref<128x128xf32, #tpu.memory_space<vmem>>, vector<128x128xf32>,
    %c0_i32 = arith.constant 0 : i32
    %10 = arith.cmpi eq, %arg1, %c0_i32 : i32
    %11 = arith.extui %10 : i1 to i32
    %c0_i32_10 = arith.constant 0 : i32
    %12 = arith.cmpi ne, %11, %c0_i32_10 : i32
    scf.if %12 {
      %cst_19 = arith.constant 0.000000e+00 : f32
      %23 = vector.broadcast %cst_19 : f32 to vector<1x2x128xf32>
      %c0_20 = arith.constant 0 : index
      %c0_21 = arith.constant 0 : index
      %c0_22 = arith.constant 0 : index
      %24 = vector.load %arg7[%c0_20, %c0_21, %c0_22] : memref<1x2x128xf32, #tpu.memory_space<vmem>>, vector<1x2x128xf32>
      tpu.vector_store %arg7[%c0_20, %c0_21, %c0_22], %23 {strides = array<i32>} : memref<1x2x128xf32, #tpu.memory_space<vmem>>, vector<1x2x128xf32>,
    } else {
    }
    %cst_11 = arith.constant dense<0.000000e+00> : vector<128xf32>
    %13 = vector.multi_reduction <add>, %8, %cst_11 [0] : vector<128x128xf32> to vector<128xf32>
    %14 = vector.shape_cast %13 : vector<128xf32> to vector<1x128xf32>
    %15 = arith.mulf %8, %8 : vector<128x128xf32>
    %cst_12 = arith.constant dense<0.000000e+00> : vector<128xf32>
    %16 = vector.multi_reduction <add>, %15, %cst_12 [0] : vector<128x128xf32> to vector<128xf32>
    %17 = vector.shape_cast %16 : vector<128xf32> to vector<1x128xf32>
    %c0_13 = arith.constant 0 : index
    %c0_14 = arith.constant 0 : index
    %c0_15 = arith.constant 0 : index
    %18 = vector.load %arg7[%c0_13, %c0_14, %c0_15] : memref<1x2x128xf32, #tpu.memory_space<vmem>>, vector<1x2x128xf32>
    %19 = tpu.concatenate %14, %17 in 0 : vector<1x128xf32>, vector<1x128xf32> -> vector<2x128xf32>
    %20 = vector.shape_cast %19 : vector<2x128xf32> to vector<1x2x128xf32>
    %21 = arith.addf %18, %20 : vector<1x2x128xf32>
    %c0_16 = arith.constant 0 : index
    %c0_17 = arith.constant 0 : index
    %c0_18 = arith.constant 0 : index
    %22 = vector.load %arg7[%c0_16, %c0_17, %c0_18] : memref<1x2x128xf32, #tpu.memory_space<vmem>>, vector<1x2x128xf32>
    tpu.vector_store %arg7[%c0_16, %c0_17, %c0_18], %21 {strides = array<i32>} : memref<1x2x128xf32, #tpu.memory_space<vmem>>, vector<1x2x128xf32>,
    return
  }
  func.func @transform_0(%arg0: i32, %arg1: i32) -> (i32, i32) {
    %c1_i32 = arith.constant 1 : i32
    %0 = arith.muli %arg0, %c1_i32 : i32
    %1 = arith.addi %0, %arg1 : i32
    %c0_i32 = arith.constant 0 : i32
    %c0_i32_0 = arith.constant 0 : i32
    return %1, %c0_i32 : i32, i32
  }
  func.func @transform_1(%arg0: i32, %arg1: i32) -> (i32, i32) {
    %c1_i32 = arith.constant 1 : i32
    %0 = arith.muli %arg0, %c1_i32 : i32
    %1 = arith.addi %0, %arg1 : i32
    %c0_i32 = arith.constant 0 : i32
    %c0_i32_0 = arith.constant 0 : i32
    return %1, %c0_i32 : i32, i32
  }
  func.func @transform_2(%arg0: i32, %arg1: i32) -> (i32, i32) {
    %c0_i32 = arith.constant 0 : i32
    %c0_i32_0 = arith.constant 0 : i32
    %c0_i32_1 = arith.constant 0 : i32
    return %c0_i32, %c0_i32_0 : i32, i32
  }
  func.func @transform_3(%arg0: i32, %arg1: i32) -> (i32, i32) {
    %c0_i32 = arith.constant 0 : i32
    %c0_i32_0 = arith.constant 0 : i32
    %c0_i32_1 = arith.constant 0 : i32
    return %c0_i32, %c0_i32_0 : i32, i32
  }
  func.func @transform_4(%arg0: i32, %arg1: i32) -> (i32, i32) {
    %c1_i32 = arith.constant 1 : i32
    %0 = arith.muli %arg0, %c1_i32 : i32
    %1 = arith.addi %0, %arg1 : i32
    %c0_i32 = arith.constant 0 : i32
    %c0_i32_0 = arith.constant 0 : i32
    return %1, %c0_i32 : i32, i32
  }
  func.func @transform_5(%arg0: i32, %arg1: i32) -> (i32, i32, i32) {
    %c0_i32 = arith.constant 0 : i32
    %c0_i32_0 = arith.constant 0 : i32
    %c0_i32_1 = arith.constant 0 : i32
    return %arg0, %c0_i32, %c0_i32_0 : i32, i32, i32
  }
}

module attributes {stable_mosaic.version = 11 : i64} {
  func.func @bn_lin_scatter_kernel(%arg0: i32, %arg1: memref<128x128xf32, #tpu.memory_space<vmem>>, %arg2: memref<1x128xi32, #tpu.memory_space<vmem>>, %arg3: memref<2x2x128xf32, #tpu.memory_space<vmem>>, %arg4: memref<1x128xf32, #tpu.memory_space<vmem>>, %arg5: memref<1x128xf32, #tpu.memory_space<vmem>>, %arg6: memref<128x128xbf16, #tpu.memory_space<vmem>>, %arg7: memref<1x128xf32, #tpu.memory_space<vmem>>, %arg8: memref<64x128xf32, #tpu.memory_space<vmem>>, %arg9: memref<64x1xf32, #tpu.memory_space<vmem>>) attributes {dimension_semantics = [#tpu.dimension_semantics<arbitrary>], iteration_bounds = array<i64: 2>, scalar_prefetch = 0 : i64, scratch_operands = 1 : i64, tpu.core_type = #tpu.core_type<tc>, window_params = [{transform_indices = @transform_0, window_bounds = array<i64: 128, 128>}, {transform_indices = @transform_1, window_bounds = array<i64: 1, 128>}, {pipeline_mode = #tpu.pipeline_mode<synchronous>, transform_indices = @transform_2, window_bounds = array<i64: 2, 2, 128>}, {pipeline_mode = #tpu.pipeline_mode<synchronous>, transform_indices = @transform_3, window_bounds = array<i64: 1, 128>}, {pipeline_mode = #tpu.pipeline_mode<synchronous>, transform_indices = @transform_4, window_bounds = array<i64: 1, 128>}, {pipeline_mode = #tpu.pipeline_mode<synchronous>, transform_indices = @transform_5, window_bounds = array<i64: 128, 128>}, {pipeline_mode = #tpu.pipeline_mode<synchronous>, transform_indices = @transform_6, window_bounds = array<i64: 1, 128>}, {pipeline_mode = #tpu.pipeline_mode<synchronous>, transform_indices = @transform_7, window_bounds = array<i64: 64, 128>}]} {
    %c0_i32 = arith.constant 0 : i32
    %0 = arith.cmpi eq, %arg0, %c0_i32 : i32
    %1 = arith.extui %0 : i1 to i32
    %c0_i32_0 = arith.constant 0 : i32
    %2 = arith.cmpi ne, %1, %c0_i32_0 : i32
    scf.if %2 {
      %cst_32 = arith.constant 0.000000e+00 : f32
      %56 = vector.broadcast %cst_32 : f32 to vector<64x128xf32>
      %c0_33 = arith.constant 0 : index
      %c0_34 = arith.constant 0 : index
      %57 = vector.load %arg8[%c0_33, %c0_34] : memref<64x128xf32, #tpu.memory_space<vmem>>, vector<64x128xf32>
      tpu.vector_store %arg8[%c0_33, %c0_34], %56 {strides = array<i32>} : memref<64x128xf32, #tpu.memory_space<vmem>>, vector<64x128xf32>,
      %cst_35 = arith.constant 0.000000e+00 : f32
      %58 = vector.broadcast %cst_35 : f32 to vector<64x1xf32>
      %c0_36 = arith.constant 0 : index
      %c0_37 = arith.constant 0 : index
      %59 = vector.load %arg9[%c0_36, %c0_37] : memref<64x1xf32, #tpu.memory_space<vmem>>, vector<64x1xf32>
      tpu.vector_store %arg9[%c0_36, %c0_37], %58 {strides = array<i32>} : memref<64x1xf32, #tpu.memory_space<vmem>>, vector<64x1xf32>,
    } else {
    }
    %c0 = arith.constant 0 : index
    %c0_1 = arith.constant 0 : index
    %c0_2 = arith.constant 0 : index
    %3 = vector.load %arg3[%c0, %c0_1, %c0_2] : memref<2x2x128xf32, #tpu.memory_space<vmem>>, vector<2x2x128xf32>
    %c0_3 = arith.constant 0 : index
    %c0_4 = arith.constant 0 : index
    %4 = vector.load %arg4[%c0_3, %c0_4] : memref<1x128xf32, #tpu.memory_space<vmem>>, vector<1x128xf32>
    %c0_5 = arith.constant 0 : index
    %c0_6 = arith.constant 0 : index
    %5 = vector.load %arg5[%c0_5, %c0_6] : memref<1x128xf32, #tpu.memory_space<vmem>>, vector<1x128xf32>
    %cst = arith.constant dense<0.000000e+00> : vector<2x128xf32>
    %6 = vector.multi_reduction <add>, %3, %cst [0] : vector<2x2x128xf32> to vector<2x128xf32>
    %7 = vector.extract_strided_slice %6 {offsets = [0, 0], sizes = [1, 128], strides = [1, 1]} : vector<2x128xf32> to vector<1x128xf32>
    %cst_7 = arith.constant 4.000000e-03 : f32
    %8 = vector.broadcast %cst_7 : f32 to vector<1x128xf32>
    %9 = arith.mulf %7, %8 : vector<1x128xf32>
    %10 = vector.extract_strided_slice %6 {offsets = [1, 0], sizes = [1, 128], strides = [1, 1]} : vector<2x128xf32> to vector<1x128xf32>
    %cst_8 = arith.constant 4.000000e-03 : f32
    %11 = vector.broadcast %cst_8 : f32 to vector<1x128xf32>
    %12 = arith.mulf %10, %11 : vector<1x128xf32>
    %13 = arith.mulf %9, %9 : vector<1x128xf32>
    %14 = arith.subf %12, %13 : vector<1x128xf32>
    %cst_9 = arith.constant 0.000000e+00 : f32
    %15 = vector.broadcast %cst_9 : f32 to vector<1x128xf32>
    %16 = arith.maximumf %14, %15 : vector<1x128xf32>
    %cst_10 = arith.constant 9.99999974E-6 : f32
    %17 = vector.broadcast %cst_10 : f32 to vector<1x128xf32>
    %18 = arith.addf %16, %17 : vector<1x128xf32>
    %19 = math.rsqrt %18 : vector<1x128xf32>
    %20 = arith.mulf %4, %19 : vector<1x128xf32>
    %21 = arith.mulf %9, %20 : vector<1x128xf32>
    %22 = arith.subf %5, %21 : vector<1x128xf32>
    %c0_11 = arith.constant 0 : index
    %c0_12 = arith.constant 0 : index
    %23 = vector.load %arg1[%c0_11, %c0_12] : memref<128x128xf32, #tpu.memory_space<vmem>>, vector<128x128xf32>
    %24 = vector.broadcast %20 : vector<1x128xf32> to vector<128x128xf32>
    %25 = arith.mulf %23, %24 : vector<128x128xf32>
    %26 = vector.broadcast %22 : vector<1x128xf32> to vector<128x128xf32>
    %27 = arith.addf %25, %26 : vector<128x128xf32>
    %cst_13 = arith.constant 0.000000e+00 : f32
    %28 = vector.broadcast %cst_13 : f32 to vector<128x128xf32>
    %29 = arith.maximumf %27, %28 : vector<128x128xf32>
    %30 = arith.truncf %29 : vector<128x128xf32> to vector<128x128xbf16>
    %c0_14 = arith.constant 0 : index
    %c0_15 = arith.constant 0 : index
    %31 = vector.load %arg6[%c0_14, %c0_15] : memref<128x128xbf16, #tpu.memory_space<vmem>>, vector<128x128xbf16>
    %cst_16 = arith.constant dense<0.000000e+00> : vector<128x128xf32>
    %32 = tpu.matmul %30, %31, %cst_16 {dimension_numbers = #tpu.dot_dimension_numbers<[1], [0], [0], [1], [0, 0, 1, 1], [], []>} : vector<128x128xbf16>, vector<128x128xbf16>, vector<128x128xf32> -> vector<128x128xf32>
    %c0_17 = arith.constant 0 : index
    %c0_18 = arith.constant 0 : index
    %33 = vector.load %arg7[%c0_17, %c0_18] : memref<1x128xf32, #tpu.memory_space<vmem>>, vector<1x128xf32>
    %34 = vector.broadcast %33 : vector<1x128xf32> to vector<128x128xf32>
    %35 = arith.addf %32, %34 : vector<128x128xf32>
    %c0_19 = arith.constant 0 : index
    %c0_20 = arith.constant 0 : index
    %36 = vector.load %arg2[%c0_19, %c0_20] : memref<1x128xi32, #tpu.memory_space<vmem>>, vector<1x128xi32>
    %37 = tpu.iota {dimensions = array<i32: 0>} : vector<64x128xi32>
    %38 = vector.broadcast %36 : vector<1x128xi32> to vector<64x128xi32>
    %39 = arith.cmpi eq, %37, %38 : vector<64x128xi32>
    %40 = arith.extui %39 : vector<64x128xi1> to vector<64x128xi32>
    %41 = arith.sitofp %40 : vector<64x128xi32> to vector<64x128xf32>
    %c0_21 = arith.constant 0 : index
    %c0_22 = arith.constant 0 : index
    %42 = vector.load %arg8[%c0_21, %c0_22] : memref<64x128xf32, #tpu.memory_space<vmem>>, vector<64x128xf32>
    %43 = arith.truncf %41 : vector<64x128xf32> to vector<64x128xbf16>
    %44 = arith.truncf %35 : vector<128x128xf32> to vector<128x128xbf16>
    %cst_23 = arith.constant dense<0.000000e+00> : vector<64x128xf32>
    %45 = tpu.matmul %43, %44, %cst_23 {dimension_numbers = #tpu.dot_dimension_numbers<[1], [0], [0], [1], [0, 0, 1, 1], [], []>} : vector<64x128xbf16>, vector<128x128xbf16>, vector<64x128xf32> -> vector<64x128xf32>
    %46 = arith.addf %42, %45 : vector<64x128xf32>
    %c0_24 = arith.constant 0 : index
    %c0_25 = arith.constant 0 : index
    %47 = vector.load %arg8[%c0_24, %c0_25] : memref<64x128xf32, #tpu.memory_space<vmem>>, vector<64x128xf32>
    tpu.vector_store %arg8[%c0_24, %c0_25], %46 {strides = array<i32>} : memref<64x128xf32, #tpu.memory_space<vmem>>, vector<64x128xf32>,
    %c0_26 = arith.constant 0 : index
    %c0_27 = arith.constant 0 : index
    %48 = vector.load %arg9[%c0_26, %c0_27] : memref<64x1xf32, #tpu.memory_space<vmem>>, vector<64x1xf32>
    %cst_28 = arith.constant dense<0.000000e+00> : vector<64xf32>
    %49 = vector.multi_reduction <add>, %41, %cst_28 [1] : vector<64x128xf32> to vector<64xf32>
    %50 = vector.shape_cast %49 : vector<64xf32> to vector<64x1xf32>
    %51 = arith.addf %48, %50 : vector<64x1xf32>
    %c0_29 = arith.constant 0 : index
    %c0_30 = arith.constant 0 : index
    %52 = vector.load %arg9[%c0_29, %c0_30] : memref<64x1xf32, #tpu.memory_space<vmem>>, vector<64x1xf32>
    tpu.vector_store %arg9[%c0_29, %c0_30], %51 {strides = array<i32>} : memref<64x1xf32, #tpu.memory_space<vmem>>, vector<64x1xf32>,
    %c1_i32 = arith.constant 1 : i32
    %53 = arith.cmpi eq, %arg0, %c1_i32 : i32
    %54 = arith.extui %53 : i1 to i32
    %c0_i32_31 = arith.constant 0 : i32
    %55 = arith.cmpi ne, %54, %c0_i32_31 : i32
    scf.if %55 {
      %c0_32 = arith.constant 0 : index
      %c0_33 = arith.constant 0 : index
      %56 = vector.load %arg9[%c0_32, %c0_33] : memref<64x1xf32, #tpu.memory_space<vmem>>, vector<64x1xf32>
      %cst_34 = arith.constant 1.000000e+00 : f32
      %57 = vector.broadcast %cst_34 : f32 to vector<64x1xf32>
      %58 = arith.maximumf %56, %57 : vector<64x1xf32>
      %59 = tpu.reciprocal %58 {approx = true} : vector<64x1xf32> -> vector<64x1xf32>
      %c0_35 = arith.constant 0 : index
      %c0_36 = arith.constant 0 : index
      %60 = vector.load %arg8[%c0_35, %c0_36] : memref<64x128xf32, #tpu.memory_space<vmem>>, vector<64x128xf32>
      %61 = vector.broadcast %59 : vector<64x1xf32> to vector<64x128xf32>
      %62 = arith.mulf %60, %61 : vector<64x128xf32>
      %c0_37 = arith.constant 0 : index
      %c0_38 = arith.constant 0 : index
      %63 = vector.load %arg8[%c0_37, %c0_38] : memref<64x128xf32, #tpu.memory_space<vmem>>, vector<64x128xf32>
      tpu.vector_store %arg8[%c0_37, %c0_38], %62 {strides = array<i32>} : memref<64x128xf32, #tpu.memory_space<vmem>>, vector<64x128xf32>,
    } else {
    }
    return
  }
  func.func @transform_0(%arg0: i32) -> (i32, i32) {
    %c0_i32 = arith.constant 0 : i32
    %c0_i32_0 = arith.constant 0 : i32
    return %arg0, %c0_i32 : i32, i32
  }
  func.func @transform_1(%arg0: i32) -> (i32, i32) {
    %c0_i32 = arith.constant 0 : i32
    %c0_i32_0 = arith.constant 0 : i32
    return %c0_i32, %arg0 : i32, i32
  }
  func.func @transform_2(%arg0: i32) -> (i32, i32, i32) {
    %c0_i32 = arith.constant 0 : i32
    %c0_i32_0 = arith.constant 0 : i32
    %c0_i32_1 = arith.constant 0 : i32
    %c0_i32_2 = arith.constant 0 : i32
    return %c0_i32, %c0_i32_0, %c0_i32_1 : i32, i32, i32
  }
  func.func @transform_3(%arg0: i32) -> (i32, i32) {
    %c0_i32 = arith.constant 0 : i32
    %c0_i32_0 = arith.constant 0 : i32
    %c0_i32_1 = arith.constant 0 : i32
    return %c0_i32, %c0_i32_0 : i32, i32
  }
  func.func @transform_4(%arg0: i32) -> (i32, i32) {
    %c0_i32 = arith.constant 0 : i32
    %c0_i32_0 = arith.constant 0 : i32
    %c0_i32_1 = arith.constant 0 : i32
    return %c0_i32, %c0_i32_0 : i32, i32
  }
  func.func @transform_5(%arg0: i32) -> (i32, i32) {
    %c0_i32 = arith.constant 0 : i32
    %c0_i32_0 = arith.constant 0 : i32
    %c0_i32_1 = arith.constant 0 : i32
    return %c0_i32, %c0_i32_0 : i32, i32
  }
  func.func @transform_6(%arg0: i32) -> (i32, i32) {
    %c0_i32 = arith.constant 0 : i32
    %c0_i32_0 = arith.constant 0 : i32
    %c0_i32_1 = arith.constant 0 : i32
    return %c0_i32, %c0_i32_0 : i32, i32
  }
  func.func @transform_7(%arg0: i32) -> (i32, i32) {
    %c0_i32 = arith.constant 0 : i32
    %c0_i32_0 = arith.constant 0 : i32
    %c0_i32_1 = arith.constant 0 : i32
    return %c0_i32, %c0_i32_0 : i32, i32
  }
}

module attributes {stable_mosaic.version = 11 : i64} {
  func.func @bn_lin_out_kernel(%arg0: i32, %arg1: memref<32x128xf32, #tpu.memory_space<vmem>>, %arg2: memref<2x2x128xf32, #tpu.memory_space<vmem>>, %arg3: memref<1x128xf32, #tpu.memory_space<vmem>>, %arg4: memref<1x128xf32, #tpu.memory_space<vmem>>, %arg5: memref<128x128xbf16, #tpu.memory_space<vmem>>, %arg6: memref<1x128xf32, #tpu.memory_space<vmem>>, %arg7: memref<32x128xf32, #tpu.memory_space<vmem>>) attributes {dimension_semantics = [#tpu.dimension_semantics<parallel>], iteration_bounds = array<i64: 2>, scalar_prefetch = 0 : i64, scratch_operands = 0 : i64, tpu.core_type = #tpu.core_type<tc>, window_params = [{transform_indices = @transform_0, window_bounds = array<i64: 32, 128>}, {pipeline_mode = #tpu.pipeline_mode<synchronous>, transform_indices = @transform_1, window_bounds = array<i64: 2, 2, 128>}, {pipeline_mode = #tpu.pipeline_mode<synchronous>, transform_indices = @transform_2, window_bounds = array<i64: 1, 128>}, {pipeline_mode = #tpu.pipeline_mode<synchronous>, transform_indices = @transform_3, window_bounds = array<i64: 1, 128>}, {pipeline_mode = #tpu.pipeline_mode<synchronous>, transform_indices = @transform_4, window_bounds = array<i64: 128, 128>}, {pipeline_mode = #tpu.pipeline_mode<synchronous>, transform_indices = @transform_5, window_bounds = array<i64: 1, 128>}, {transform_indices = @transform_6, window_bounds = array<i64: 32, 128>}]} {
    %c0 = arith.constant 0 : index
    %c0_0 = arith.constant 0 : index
    %c0_1 = arith.constant 0 : index
    %0 = vector.load %arg2[%c0, %c0_0, %c0_1] : memref<2x2x128xf32, #tpu.memory_space<vmem>>, vector<2x2x128xf32>
    %c0_2 = arith.constant 0 : index
    %c0_3 = arith.constant 0 : index
    %1 = vector.load %arg3[%c0_2, %c0_3] : memref<1x128xf32, #tpu.memory_space<vmem>>, vector<1x128xf32>
    %c0_4 = arith.constant 0 : index
    %c0_5 = arith.constant 0 : index
    %2 = vector.load %arg4[%c0_4, %c0_5] : memref<1x128xf32, #tpu.memory_space<vmem>>, vector<1x128xf32>
    %cst = arith.constant dense<0.000000e+00> : vector<2x128xf32>
    %3 = vector.multi_reduction <add>, %0, %cst [0] : vector<2x2x128xf32> to vector<2x128xf32>
    %4 = vector.extract_strided_slice %3 {offsets = [0, 0], sizes = [1, 128], strides = [1, 1]} : vector<2x128xf32> to vector<1x128xf32>
    %cst_6 = arith.constant 0.0166666675 : f32
    %5 = vector.broadcast %cst_6 : f32 to vector<1x128xf32>
    %6 = arith.mulf %4, %5 : vector<1x128xf32>
    %7 = vector.extract_strided_slice %3 {offsets = [1, 0], sizes = [1, 128], strides = [1, 1]} : vector<2x128xf32> to vector<1x128xf32>
    %cst_7 = arith.constant 0.0166666675 : f32
    %8 = vector.broadcast %cst_7 : f32 to vector<1x128xf32>
    %9 = arith.mulf %7, %8 : vector<1x128xf32>
    %10 = arith.mulf %6, %6 : vector<1x128xf32>
    %11 = arith.subf %9, %10 : vector<1x128xf32>
    %cst_8 = arith.constant 0.000000e+00 : f32
    %12 = vector.broadcast %cst_8 : f32 to vector<1x128xf32>
    %13 = arith.maximumf %11, %12 : vector<1x128xf32>
    %cst_9 = arith.constant 9.99999974E-6 : f32
    %14 = vector.broadcast %cst_9 : f32 to vector<1x128xf32>
    %15 = arith.addf %13, %14 : vector<1x128xf32>
    %16 = math.rsqrt %15 : vector<1x128xf32>
    %17 = arith.mulf %1, %16 : vector<1x128xf32>
    %18 = arith.mulf %6, %17 : vector<1x128xf32>
    %19 = arith.subf %2, %18 : vector<1x128xf32>
    %c0_10 = arith.constant 0 : index
    %c0_11 = arith.constant 0 : index
    %20 = vector.load %arg1[%c0_10, %c0_11] : memref<32x128xf32, #tpu.memory_space<vmem>>, vector<32x128xf32>
    %21 = vector.broadcast %17 : vector<1x128xf32> to vector<32x128xf32>
    %22 = arith.mulf %20, %21 : vector<32x128xf32>
    %23 = vector.broadcast %19 : vector<1x128xf32> to vector<32x128xf32>
    %24 = arith.addf %22, %23 : vector<32x128xf32>
    %cst_12 = arith.constant 0.000000e+00 : f32
    %25 = vector.broadcast %cst_12 : f32 to vector<32x128xf32>
    %26 = arith.maximumf %24, %25 : vector<32x128xf32>
    %27 = arith.truncf %26 : vector<32x128xf32> to vector<32x128xbf16>
    %c0_13 = arith.constant 0 : index
    %c0_14 = arith.constant 0 : index
    %28 = vector.load %arg5[%c0_13, %c0_14] : memref<128x128xbf16, #tpu.memory_space<vmem>>, vector<128x128xbf16>
    %cst_15 = arith.constant dense<0.000000e+00> : vector<32x128xf32>
    %29 = tpu.matmul %27, %28, %cst_15 {dimension_numbers = #tpu.dot_dimension_numbers<[1], [0], [0], [1], [0, 0, 1, 1], [], []>} : vector<32x128xbf16>, vector<128x128xbf16>, vector<32x128xf32> -> vector<32x128xf32>
    %c0_16 = arith.constant 0 : index
    %c0_17 = arith.constant 0 : index
    %30 = vector.load %arg6[%c0_16, %c0_17] : memref<1x128xf32, #tpu.memory_space<vmem>>, vector<1x128xf32>
    %31 = vector.broadcast %30 : vector<1x128xf32> to vector<32x128xf32>
    %32 = arith.addf %29, %31 : vector<32x128xf32>
    %c0_18 = arith.constant 0 : index
    %c0_19 = arith.constant 0 : index
    %33 = vector.load %arg7[%c0_18, %c0_19] : memref<32x128xf32, #tpu.memory_space<vmem>>, vector<32x128xf32>
    tpu.vector_store %arg7[%c0_18, %c0_19], %32 {strides = array<i32>} : memref<32x128xf32, #tpu.memory_space<vmem>>, vector<32x128xf32>,
    return
  }
  func.func @transform_0(%arg0: i32) -> (i32, i32) {
    %c0_i32 = arith.constant 0 : i32
    %c0_i32_0 = arith.constant 0 : i32
    return %arg0, %c0_i32 : i32, i32
  }
  func.func @transform_1(%arg0: i32) -> (i32, i32, i32) {
    %c0_i32 = arith.constant 0 : i32
    %c0_i32_0 = arith.constant 0 : i32
    %c0_i32_1 = arith.constant 0 : i32
    %c0_i32_2 = arith.constant 0 : i32
    return %c0_i32, %c0_i32_0, %c0_i32_1 : i32, i32, i32
  }
  func.func @transform_2(%arg0: i32) -> (i32, i32) {
    %c0_i32 = arith.constant 0 : i32
    %c0_i32_0 = arith.constant 0 : i32
    %c0_i32_1 = arith.constant 0 : i32
    return %c0_i32, %c0_i32_0 : i32, i32
  }
  func.func @transform_3(%arg0: i32) -> (i32, i32) {
    %c0_i32 = arith.constant 0 : i32
    %c0_i32_0 = arith.constant 0 : i32
    %c0_i32_1 = arith.constant 0 : i32
    return %c0_i32, %c0_i32_0 : i32, i32
  }
  func.func @transform_4(%arg0: i32) -> (i32, i32) {
    %c0_i32 = arith.constant 0 : i32
    %c0_i32_0 = arith.constant 0 : i32
    %c0_i32_1 = arith.constant 0 : i32
    return %c0_i32, %c0_i32_0 : i32, i32
  }
  func.func @transform_5(%arg0: i32) -> (i32, i32) {
    %c0_i32 = arith.constant 0 : i32
    %c0_i32_0 = arith.constant 0 : i32
    %c0_i32_1 = arith.constant 0 : i32
    return %c0_i32, %c0_i32_0 : i32, i32
  }
  func.func @transform_6(%arg0: i32) -> (i32, i32) {
    %c0_i32 = arith.constant 0 : i32
    %c0_i32_0 = arith.constant 0 : i32
    return %arg0, %c0_i32 : i32, i32
  }
}

module attributes {stable_mosaic.version = 11 : i64} {
  func.func @split_linear_stats_kernel(%arg0: i32, %arg1: i32, %arg2: memref<32x48xf32, #tpu.memory_space<vmem>>, %arg3: memref<32x128xf32, #tpu.memory_space<vmem>>, %arg4: memref<48x128xbf16, #tpu.memory_space<vmem>>, %arg5: memref<128x128xbf16, #tpu.memory_space<vmem>>, %arg6: memref<32x128xf32, #tpu.memory_space<vmem>>, %arg7: memref<1x2x128xf32, #tpu.memory_space<vmem>>) attributes {dimension_semantics = [#tpu.dimension_semantics<parallel>, #tpu.dimension_semantics<arbitrary>], iteration_bounds = array<i64: 2, 1>, scalar_prefetch = 0 : i64, scratch_operands = 0 : i64, tpu.core_type = #tpu.core_type<tc>, window_params = [{transform_indices = @transform_0, window_bounds = array<i64: 32, 48>}, {transform_indices = @transform_1, window_bounds = array<i64: 32, 128>}, {pipeline_mode = #tpu.pipeline_mode<synchronous>, transform_indices = @transform_2, window_bounds = array<i64: 48, 128>}, {pipeline_mode = #tpu.pipeline_mode<synchronous>, transform_indices = @transform_3, window_bounds = array<i64: 128, 128>}, {transform_indices = @transform_4, window_bounds = array<i64: 32, 128>}, {transform_indices = @transform_5, window_bounds = array<i64: 1, 2, 128>}]} {
    %c0 = arith.constant 0 : index
    %c0_0 = arith.constant 0 : index
    %0 = vector.load %arg2[%c0, %c0_0] : memref<32x48xf32, #tpu.memory_space<vmem>>, vector<32x48xf32>
    %1 = arith.truncf %0 : vector<32x48xf32> to vector<32x48xbf16>
    %c0_1 = arith.constant 0 : index
    %c0_2 = arith.constant 0 : index
    %2 = vector.load %arg4[%c0_1, %c0_2] : memref<48x128xbf16, #tpu.memory_space<vmem>>, vector<48x128xbf16>
    %cst = arith.constant dense<0.000000e+00> : vector<32x128xf32>
    %3 = tpu.matmul %1, %2, %cst {dimension_numbers = #tpu.dot_dimension_numbers<[1], [0], [0], [1], [0, 0, 1, 1], [], []>} : vector<32x48xbf16>, vector<48x128xbf16>, vector<32x128xf32> -> vector<32x128xf32>
    %c0_3 = arith.constant 0 : index
    %c0_4 = arith.constant 0 : index
    %4 = vector.load %arg3[%c0_3, %c0_4] : memref<32x128xf32, #tpu.memory_space<vmem>>, vector<32x128xf32>
    %5 = arith.truncf %4 : vector<32x128xf32> to vector<32x128xbf16>
    %c0_5 = arith.constant 0 : index
    %c0_6 = arith.constant 0 : index
    %6 = vector.load %arg5[%c0_5, %c0_6] : memref<128x128xbf16, #tpu.memory_space<vmem>>, vector<128x128xbf16>
    %cst_7 = arith.constant dense<0.000000e+00> : vector<32x128xf32>
    %7 = tpu.matmul %5, %6, %cst_7 {dimension_numbers = #tpu.dot_dimension_numbers<[1], [0], [0], [1], [0, 0, 1, 1], [], []>} : vector<32x128xbf16>, vector<128x128xbf16>, vector<32x128xf32> -> vector<32x128xf32>
    %8 = arith.addf %3, %7 : vector<32x128xf32>
    %c0_8 = arith.constant 0 : index
    %c0_9 = arith.constant 0 : index
    %9 = vector.load %arg6[%c0_8, %c0_9] : memref<32x128xf32, #tpu.memory_space<vmem>>, vector<32x128xf32>
    tpu.vector_store %arg6[%c0_8, %c0_9], %8 {strides = array<i32>} : memref<32x128xf32, #tpu.memory_space<vmem>>, vector<32x128xf32>,
    %c0_i32 = arith.constant 0 : i32
    %10 = arith.cmpi eq, %arg1, %c0_i32 : i32
    %11 = arith.extui %10 : i1 to i32
    %c0_i32_10 = arith.constant 0 : i32
    %12 = arith.cmpi ne, %11, %c0_i32_10 : i32
    scf.if %12 {
      %cst_19 = arith.constant 0.000000e+00 : f32
      %23 = vector.broadcast %cst_19 : f32 to vector<1x2x128xf32>
      %c0_20 = arith.constant 0 : index
      %c0_21 = arith.constant 0 : index
      %c0_22 = arith.constant 0 : index
      %24 = vector.load %arg7[%c0_20, %c0_21, %c0_22] : memref<1x2x128xf32, #tpu.memory_space<vmem>>, vector<1x2x128xf32>
      tpu.vector_store %arg7[%c0_20, %c0_21, %c0_22], %23 {strides = array<i32>} : memref<1x2x128xf32, #tpu.memory_space<vmem>>, vector<1x2x128xf32>,
    } else {
    }
    %cst_11 = arith.constant dense<0.000000e+00> : vector<128xf32>
    %13 = vector.multi_reduction <add>, %8, %cst_11 [0] : vector<32x128xf32> to vector<128xf32>
    %14 = vector.shape_cast %13 : vector<128xf32> to vector<1x128xf32>
    %15 = arith.mulf %8, %8 : vector<32x128xf32>
    %cst_12 = arith.constant dense<0.000000e+00> : vector<128xf32>
    %16 = vector.multi_reduction <add>, %15, %cst_12 [0] : vector<32x128xf32> to vector<128xf32>
    %17 = vector.shape_cast %16 : vector<128xf32> to vector<1x128xf32>
    %c0_13 = arith.constant 0 : index
    %c0_14 = arith.constant 0 : index
    %c0_15 = arith.constant 0 : index
    %18 = vector.load %arg7[%c0_13, %c0_14, %c0_15] : memref<1x2x128xf32, #tpu.memory_space<vmem>>, vector<1x2x128xf32>
    %19 = tpu.concatenate %14, %17 in 0 : vector<1x128xf32>, vector<1x128xf32> -> vector<2x128xf32>
    %20 = vector.shape_cast %19 : vector<2x128xf32> to vector<1x2x128xf32>
    %21 = arith.addf %18, %20 : vector<1x2x128xf32>
    %c0_16 = arith.constant 0 : index
    %c0_17 = arith.constant 0 : index
    %c0_18 = arith.constant 0 : index
    %22 = vector.load %arg7[%c0_16, %c0_17, %c0_18] : memref<1x2x128xf32, #tpu.memory_space<vmem>>, vector<1x2x128xf32>
    tpu.vector_store %arg7[%c0_16, %c0_17, %c0_18], %21 {strides = array<i32>} : memref<1x2x128xf32, #tpu.memory_space<vmem>>, vector<1x2x128xf32>,
    return
  }
  func.func @transform_0(%arg0: i32, %arg1: i32) -> (i32, i32) {
    %c1_i32 = arith.constant 1 : i32
    %0 = arith.muli %arg0, %c1_i32 : i32
    %1 = arith.addi %0, %arg1 : i32
    %c0_i32 = arith.constant 0 : i32
    %c0_i32_0 = arith.constant 0 : i32
    return %1, %c0_i32 : i32, i32
  }
  func.func @transform_1(%arg0: i32, %arg1: i32) -> (i32, i32) {
    %c1_i32 = arith.constant 1 : i32
    %0 = arith.muli %arg0, %c1_i32 : i32
    %1 = arith.addi %0, %arg1 : i32
    %c0_i32 = arith.constant 0 : i32
    %c0_i32_0 = arith.constant 0 : i32
    return %1, %c0_i32 : i32, i32
  }
  func.func @transform_2(%arg0: i32, %arg1: i32) -> (i32, i32) {
    %c0_i32 = arith.constant 0 : i32
    %c0_i32_0 = arith.constant 0 : i32
    %c0_i32_1 = arith.constant 0 : i32
    return %c0_i32, %c0_i32_0 : i32, i32
  }
  func.func @transform_3(%arg0: i32, %arg1: i32) -> (i32, i32) {
    %c0_i32 = arith.constant 0 : i32
    %c0_i32_0 = arith.constant 0 : i32
    %c0_i32_1 = arith.constant 0 : i32
    return %c0_i32, %c0_i32_0 : i32, i32
  }
  func.func @transform_4(%arg0: i32, %arg1: i32) -> (i32, i32) {
    %c1_i32 = arith.constant 1 : i32
    %0 = arith.muli %arg0, %c1_i32 : i32
    %1 = arith.addi %0, %arg1 : i32
    %c0_i32 = arith.constant 0 : i32
    %c0_i32_0 = arith.constant 0 : i32
    return %1, %c0_i32 : i32, i32
  }
  func.func @transform_5(%arg0: i32, %arg1: i32) -> (i32, i32, i32) {
    %c0_i32 = arith.constant 0 : i32
    %c0_i32_0 = arith.constant 0 : i32
    %c0_i32_1 = arith.constant 0 : i32
    return %arg0, %c0_i32, %c0_i32_0 : i32, i32, i32
  }
}

</mosaic_0001>

<llo_original>
// kernel: node_block_forward.7
$region0: #{node_block_forward.7}
  #allocation0 [shape = 'u32[]', space=smem, size = 0x4, offset = 0x4, fixed_abs, tag = 'smem constant byte address 0x4 - core index']
  #allocation1 [shape = 'u32[144,128]{1,0:T(1,128)}', space=vmem, size = 0x12000, scoped, tag = 'internal scratch']
  %s0 = inlined_call_operand.vmem [shape: f32[64,128], index: 0, kind: input, shape index: {}]
  %s1 = inlined_call_operand.vmem [shape: f32[2,2,128], index: 1, kind: input, shape index: {}]
  %s2 = inlined_call_operand.vmem [shape: f32[1,128], index: 2, kind: input, shape index: {}]
  %s3 = inlined_call_operand.vmem [shape: f32[1,128], index: 3, kind: input, shape index: {}]
  %s4 = inlined_call_operand.vmem [shape: bf16[128,128], index: 4, kind: input, shape index: {}]
  %s5 = inlined_call_operand.vmem [shape: f32[1,128], index: 5, kind: input, shape index: {}]
  %s6 = inlined_call_operand.hbm [shape: f32[64,128], index: 6, kind: output, shape index: {}]
  %s7 = sld [smem:[#allocation0]]
  $region57: #{node_block_forward.7} parent=0
    _
  %s9 = ssub.s32 1, %s7
  %s10 = scalar_select 0, %s9, %s7
  $region1: #{node_block_forward.7} parent=0
    #allocation2 [shape = 'u8[32768]{0}', space=vmem, size = 0x8000, scoped, tag = 'output window, operand 0']
    #allocation3 [shape = 's32[2]{0}', space=sflag, size = 0x8, scoped, tag = 'scoped memory for node_block_forward.7']
    %11 = vsyncpa [#allocation3], 0
    %s12 = scalar_lea.sflag [#allocation3], 1
    %13 = vsyncpa %s12, 0
    loop: start=0, step=1, limit=4
    $region2: #{node_block_forward.7} parent=1 // loop_pre_header
      _
    $region3: #{node_block_forward.7} parent=1 // loop_header
      %s15 = sphi 0, %s19
      %p16 = scmp.ge.s32.totalorder %s15, 4
      %s25 = sphi 0, %s27
      %s28 = sphi 0, %s25
      %s29 = sphi 0, %s28
      %s45 = sphi 0, %s29
      %s49 = sphi 0, %s49
      %s51 = sphi 0, %s49
      %s52 = sphi 0, %s51
      %s66 = sphi 0, %s52
      %s70 = sphi 0, %s70
      %s72 = sphi 0, %s70
      %s73 = sphi 0, %s72
      %s87 = sphi 0, %s73
      %s91 = sphi 0, %s91
      %s93 = sphi 0, %s91
      %s94 = sphi 0, %s93
      %s108 = sphi 0, %s94
      %s112 = sphi 0, %s112
      %s114 = sphi 0, %s112
      %s115 = sphi 0, %s114
      %s129 = sphi 0, %s115
      %s133 = sphi 0, %s133
      %s135 = sphi 0, %s133
      %s136 = sphi 0, %s135
      %s150 = sphi 0, %s136
      %s156 = sphi 0, %s158
      %s159 = sphi 0, %s156
      %s160 = sphi 0, %s159
      %s176 = sphi 0, %s160
    $region4: #{node_block_forward.7} parent=1 // loop_header_branch
      %18 = sbr.rel (%p16) target = $region8
    $region5: #{node_block_forward.7} parent=1 // loop_body
      %s20 = ssub.s32 %s15, 1
      %s21 = ssub.s32 %s15, 2
      %s22 = sadd.s32 %s15, 1
      %s23 = ssub.s32 %s15, %s22
      %p24 = scmp.eq.s32.totalorder %s23, 0
      %s26 = sadd.s32 %s25, 1
      %s27 = scalar_select %p24, %s25, %s26
      %p30 = pneg %p24
      %p31 = scmp.eq.s32.totalorder %s15, 1
      %p32 = por %p30, %p31
      %p33 = scmp.ne.s32.totalorder %s25, %s28
      %p34 = scmp.eq.s32.totalorder %s15, 0
      %p35 = por %p33, %p34
      %p36 = scmp.ne.s32.totalorder %s25, %s28
      %p37 = scmp.eq.s32.totalorder %s20, 1
      %p38 = por %p36, %p37
      %p39 = scmp.ne.s32.totalorder %s28, %s29
      %p40 = scmp.eq.s32.totalorder %s20, 0
      %p41 = por %p39, %p40
      %p42 = scmp.ne.s32.totalorder %s28, %s29
      %p43 = scmp.eq.s32.totalorder %s21, 1
      %p44 = por %p42, %p43
      %p46 = scmp.ne.s32.totalorder %s29, %s45
      %p47 = scmp.eq.s32.totalorder %s21, 0
      %p48 = por %p46, %p47
      %s50 = sadd.s32 %s49, 1
      %p53 = scmp.eq.s32.totalorder %s15, 1
      %p54 = scmp.ne.s32.totalorder %s49, %s51
      %p55 = scmp.eq.s32.totalorder %s15, 0
      %p56 = por %p54, %p55
      %p57 = scmp.ne.s32.totalorder %s49, %s51
      %p58 = scmp.eq.s32.totalorder %s20, 1
      %p59 = por %p57, %p58
      %p60 = scmp.ne.s32.totalorder %s51, %s52
      %p61 = scmp.eq.s32.totalorder %s20, 0
      %p62 = por %p60, %p61
      %p63 = scmp.ne.s32.totalorder %s51, %s52
      %p64 = scmp.eq.s32.totalorder %s21, 1
      %p65 = por %p63, %p64
      %p67 = scmp.ne.s32.totalorder %s52, %s66
      %p68 = scmp.eq.s32.totalorder %s21, 0
      %p69 = por %p67, %p68
      %s71 = sadd.s32 %s70, 1
      %p74 = scmp.eq.s32.totalorder %s15, 1
      %p75 = scmp.ne.s32.totalorder %s70, %s72
      %p76 = scmp.eq.s32.totalorder %s15, 0
      %p77 = por %p75, %p76
      %p78 = scmp.ne.s32.totalorder %s70, %s72
      %p79 = scmp.eq.s32.totalorder %s20, 1
      %p80 = por %p78, %p79
      %p81 = scmp.ne.s32.totalorder %s72, %s73
      %p82 = scmp.eq.s32.totalorder %s20, 0
      %p83 = por %p81, %p82
      %p84 = scmp.ne.s32.totalorder %s72, %s73
      %p85 = scmp.eq.s32.totalorder %s21, 1
      %p86 = por %p84, %p85
      %p88 = scmp.ne.s32.totalorder %s73, %s87
      %p89 = scmp.eq.s32.totalorder %s21, 0
      %p90 = por %p88, %p89
      %s92 = sadd.s32 %s91, 1
      %p95 = scmp.eq.s32.totalorder %s15, 1
      %p96 = scmp.ne.s32.totalorder %s91, %s93
      %p97 = scmp.eq.s32.totalorder %s15, 0
      %p98 = por %p96, %p97
      %p99 = scmp.ne.s32.totalorder %s91, %s93
      %p100 = scmp.eq.s32.totalorder %s20, 1
      %p101 = por %p99, %p100
      %p102 = scmp.ne.s32.totalorder %s93, %s94
      %p103 = scmp.eq.s32.totalorder %s20, 0
      %p104 = por %p102, %p103
      %p105 = scmp.ne.s32.totalorder %s93, %s94
      %p106 = scmp.eq.s32.totalorder %s21, 1
      %p107 = por %p105, %p106
      %p109 = scmp.ne.s32.totalorder %s94, %s108
      %p110 = scmp.eq.s32.totalorder %s21, 0
      %p111 = por %p109, %p110
      %s113 = sadd.s32 %s112, 1
      %p116 = scmp.eq.s32.totalorder %s15, 1
      %p117 = scmp.ne.s32.totalorder %s112, %s114
      %p118 = scmp.eq.s32.totalorder %s15, 0
      %p119 = por %p117, %p118
      %p120 = scmp.ne.s32.totalorder %s112, %s114
      %p121 = scmp.eq.s32.totalorder %s20, 1
      %p122 = por %p120, %p121
      %p123 = scmp.ne.s32.totalorder %s114, %s115
      %p124 = scmp.eq.s32.totalorder %s20, 0
      %p125 = por %p123, %p124
      %p126 = scmp.ne.s32.totalorder %s114, %s115
      %p127 = scmp.eq.s32.totalorder %s21, 1
      %p128 = por %p126, %p127
      %p130 = scmp.ne.s32.totalorder %s115, %s129
      %p131 = scmp.eq.s32.totalorder %s21, 0
      %p132 = por %p130, %p131
      %s134 = sadd.s32 %s133, 1
      %p137 = scmp.eq.s32.totalorder %s15, 1
      %p138 = scmp.ne.s32.totalorder %s133, %s135
      %p139 = scmp.eq.s32.totalorder %s15, 0
      %p140 = por %p138, %p139
      %p141 = scmp.ne.s32.totalorder %s133, %s135
      %p142 = scmp.eq.s32.totalorder %s20, 1
      %p143 = por %p141, %p142
      %p144 = scmp.ne.s32.totalorder %s135, %s136
      %p145 = scmp.eq.s32.totalorder %s20, 0
      %p146 = por %p144, %p145
      %p147 = scmp.ne.s32.totalorder %s135, %s136
      %p148 = scmp.eq.s32.totalorder %s21, 1
      %p149 = por %p147, %p148
      %p151 = scmp.ne.s32.totalorder %s136, %s150
      %p152 = scmp.eq.s32.totalorder %s21, 0
      %p153 = por %p151, %p152
      %s154 = ssub.s32 %s15, %s22
      %p155 = scmp.eq.s32.totalorder %s154, 0
      %s157 = sadd.s32 %s156, 1
      %s158 = scalar_select %p155, %s156, %s157
      %p161 = pneg %p155
      %p162 = scmp.eq.s32.totalorder %s15, 1
      %p163 = por %p161, %p162
      %p164 = scmp.ne.s32.totalorder %s156, %s159
      %p165 = scmp.eq.s32.totalorder %s15, 0
      %p166 = por %p164, %p165
      %p167 = scmp.ne.s32.totalorder %s156, %s159
      %p168 = scmp.eq.s32.totalorder %s20, 1
      %p169 = por %p167, %p168
      %p170 = scmp.ne.s32.totalorder %s159, %s160
      %p171 = scmp.eq.s32.totalorder %s20, 0
      %p172 = por %p170, %p171
      %p173 = scmp.ne.s32.totalorder %s159, %s160
      %p174 = scmp.eq.s32.totalorder %s21, 1
      %p175 = por %p173, %p174
      %p177 = scmp.ne.s32.totalorder %s160, %s176
      %p178 = scmp.eq.s32.totalorder %s21, 0
      %p179 = por %p177, %p178
      %p180 = scmp.le.s32.totalorder 1, %s15
      %p181 = scmp.lt.s32.totalorder %s15, 3
      %p182 = pnand %p180, %p181
      %p183 = pneg %p182
      // Predicated region
      $region9: #{node_block_forward.7} parent=5 // pred_check
        _
      $region10: #{node_block_forward.7} parent=5 // pred_check_branch
        %185 = sbr.rel (%p182) target = $region12
      $region11: #{node_block_forward.7} parent=5 // pred_region
        %s186 = ssub.s32 %s15, 1
        // Predicated region
        $region13: #{node_block_forward.7} parent=11 // pred_check
          %p187 = pneg %p62
        $region14: #{node_block_forward.7} parent=11 // pred_check_branch
          %189 = sbr.rel (%p187) target = $region16
        $region15: #{node_block_forward.7} parent=11 // pred_region
          _
        $region16: #{node_block_forward.7} parent=11 // pred_fallthru
          _
        // Predicated region
        $region17: #{node_block_forward.7} parent=11 // pred_check
          %p190 = pneg %p83
        $region18: #{node_block_forward.7} parent=11 // pred_check_branch
          %192 = sbr.rel (%p190) target = $region20
        $region19: #{node_block_forward.7} parent=11 // pred_region
          _
        $region20: #{node_block_forward.7} parent=11 // pred_fallthru
          _
        // Predicated region
        $region21: #{node_block_forward.7} parent=11 // pred_check
          %p193 = pneg %p104
        $region22: #{node_block_forward.7} parent=11 // pred_check_branch
          %195 = sbr.rel (%p193) target = $region24
        $region23: #{node_block_forward.7} parent=11 // pred_region
          _
        $region24: #{node_block_forward.7} parent=11 // pred_fallthru
          _
        // Predicated region
        $region25: #{node_block_forward.7} parent=11 // pred_check
          %p196 = pneg %p125
        $region26: #{node_block_forward.7} parent=11 // pred_check_branch
          %198 = sbr.rel (%p196) target = $region28
        $region27: #{node_block_forward.7} parent=11 // pred_region
          _
        $region28: #{node_block_forward.7} parent=11 // pred_fallthru
          _
        // Predicated region
        $region29: #{node_block_forward.7} parent=11 // pred_check
          %p199 = pneg %p146
        $region30: #{node_block_forward.7} parent=11 // pred_check_branch
          %201 = sbr.rel (%p199) target = $region32
        $region31: #{node_block_forward.7} parent=11 // pred_region
          _
        $region32: #{node_block_forward.7} parent=11 // pred_fallthru
          _
      $region12: #{node_block_forward.7} parent=5 // pred_fallthru
        _
      %p202 = scmp.lt.s32.totalorder %s15, 2
      // Predicated region
      $region33: #{node_block_forward.7} parent=5 // pred_check
        %p203 = pneg %p202
      $region34: #{node_block_forward.7} parent=5 // pred_check_branch
        %205 = sbr.rel (%p203) target = $region36
      $region35: #{node_block_forward.7} parent=5 // pred_region
        // Predicated region
        $region37: #{node_block_forward.7} parent=35 // pred_check
          %p206 = pneg %p35
        $region38: #{node_block_forward.7} parent=35 // pred_check_branch
          %208 = sbr.rel (%p206) target = $region40
        $region39: #{node_block_forward.7} parent=35 // pred_region
          %s209 = smul.u32 4, %s15
          %p210 = scmp.lt.s32.totalorder %s209, 7
          %s211 = scalar_select %p210, %s209, 7
          %s212 = smul.addr %s211, 8
          %s213 = scalar_lea.vmem %s0, %s212
          %s214 = smul.u32 4, %s15
        $region40: #{node_block_forward.7} parent=35 // pred_fallthru
          _
      $region36: #{node_block_forward.7} parent=5 // pred_fallthru
        _
      %p215 = scmp.le.s32.totalorder 1, %s15
      %p216 = scmp.lt.s32.totalorder %s15, 3
      %p217 = pnand %p215, %p216
      %p218 = pneg %p217
      // Predicated region
      $region41: #{node_block_forward.7} parent=5 // pred_check
        _
      $region42: #{node_block_forward.7} parent=5 // pred_check_branch
        %220 = sbr.rel (%p217) target = $region44
      $region43: #{node_block_forward.7} parent=5 // pred_region
        %s221 = ssub.s32 %s15, 1
        %s222 = smul.u32 4, %s20
        %p223 = scmp.lt.s32.totalorder %s222, 7
        %s224 = scalar_select %p223, %s222, 7
        %s225 = smul.addr %s224, 8
        %s226 = scalar_lea.vmem %s0, %s225
        %p227 = pneg %p41
        %p228 = pneg %p38
        %p229 = pneg %p62
        %p230 = pneg %p59
        %p231 = pneg %p83
        %p232 = pneg %p80
        %p233 = pneg %p104
        %p234 = pneg %p101
        %p235 = pneg %p125
        %p236 = pneg %p122
        %p237 = pneg %p146
        %p238 = pneg %p143
        %p239 = pneg %p172
        %p240 = pneg %p169
        %s241 = sand.u32 %s159, 1
        %s242 = scalar_lea.sflag [#allocation3], %s241
        %s243 = sand.u32 %s159, 1
        %s244 = smul.addr %s243, 32
        %s245 = scalar_lea.vmem [#allocation2], %s244
        %s246 = smul.u32 4, %s20
        %p247 = scmp.lt.s32.totalorder %s246, 7
        %s248 = scalar_select %p247, %s246, 7
        %s249 = smul.addr %s248, 8
        %s250 = scalar_lea.vmem %s0, %s249
        %s251 = smul.u32 4, %s20
        %s252 = smul.u32 4, %s20
        %v254 = vld [vmem:[%s1] sm:$0x3]
        %v255 = vld [vmem:[%s1 + $0x2] sm:$0x3]
        %v256 = vld [vmem:[%s2] sm:$0x1]
        %v257 = vld [vmem:[%s3] sm:$0x1]
        %vm258 = vcmask 1041408
        %v259 = vsel %vm258, %v254, 0.0
        %v260 = vsel %vm258, %v255, 0.0
        %v261 = vadd.f32 %v259, %v260
        %v262 = vmul.f32 %v261, 0.016666668
        %v263 = vmul.f32 %v262, %v262
        %v265 = vrot.slane %v263, 7
        %v267 = vsub.f32 %v262, %v265
        %v268 = vmax.f32 %v267, 0.0
        %v269 = vadd.f32 %v268, 1e-05
        %v270 = vrsqrt.pop %v269
        %v273 = vunpack.c.l.s4 1966171168
        %v274 = vunpack.c.0.s8 %v273
        %v275 = vlaneseq
        %v276 = vshrl.u32 %v275, 7
        %v277 = vsub.s32 %v274, %v276
        %v278 = vrot.slane %v270, %v277
        %v279 = vcombine.high %v278, %v278
        %v281 = vunpack.c.l.s4 1966171168
        %v282 = vunpack.c.0.s8 %v281
        %v283 = vlaneseq
        %v284 = vshrl.u32 %v283, 7
        %v285 = vsub.s32 %v282, %v284
        %v286 = vrot.slane %v279, %v285
        %v288 = vmul.f32 %v256, %v286
        %v289 = vmul.f32 %v262, %v288
        %v290 = vsub.f32 %v257, %v289
        %v291 = vld [vmem:[%s250] sm:$0xff]
        %v292 = vld [vmem:[%s250 + $0x8] sm:$0xff]
        %v293 = vld [vmem:[%s250 + $0x10] sm:$0xff]
        %v294 = vld [vmem:[%s250 + $0x18] sm:$0xff]
        %v296 = vlaneseq
        %v297 = vshrl.u32 %v296, 7
        %v298 = vsub.s32 0, %v297
        %v299 = vrot.slane %v288, %v298
        %v301 = vmul.f32 %v291, %v299
        %v302 = vmul.f32 %v292, %v299
        %v303 = vmul.f32 %v293, %v299
        %v304 = vmul.f32 %v294, %v299
        %v306 = vlaneseq
        %v307 = vshrl.u32 %v306, 7
        %v308 = vsub.s32 0, %v307
        %v309 = vrot.slane %v290, %v308
        %v311 = vadd.f32 %v301, %v309
        %v312 = vadd.f32 %v302, %v309
        %v313 = vadd.f32 %v303, %v309
        %v314 = vadd.f32 %v304, %v309
        %v315 = vmax.f32 %v311, 0.0
        %v316 = vmax.f32 %v312, 0.0
        %v317 = vmax.f32 %v313, 0.0
        %v318 = vmax.f32 %v314, 0.0
        %v319 = vpack.c.bf16 %v316, %v315
        %v320 = vpack.c.bf16 %v318, %v317
        %v321 = vld [vmem:[%s4] sm:$0xf]
        %v322 = vld [vmem:[%s4 + $0x4] sm:$0xf]
        %v323 = vld [vmem:[%s4 + $0x8] sm:$0xf]
        %v324 = vld [vmem:[%s4 + $0xc] sm:$0xf]
        %v325 = vld [vmem:[%s4 + $0x10] sm:$0xf]
        %v326 = vld [vmem:[%s4 + $0x14] sm:$0xf]
        %v327 = vld [vmem:[%s4 + $0x18] sm:$0xf]
        %v328 = vld [vmem:[%s4 + $0x1c] sm:$0xf]
        %v329 = vld [vmem:[%s4 + $0x20] sm:$0xf]
        %v330 = vld [vmem:[%s4 + $0x24] sm:$0xf]
        %v331 = vld [vmem:[%s4 + $0x28] sm:$0xf]
        %v332 = vld [vmem:[%s4 + $0x2c] sm:$0xf]
        %v333 = vld [vmem:[%s4 + $0x30] sm:$0xf]
        %v334 = vld [vmem:[%s4 + $0x34] sm:$0xf]
        %v335 = vld [vmem:[%s4 + $0x38] sm:$0xf]
        %v336 = vld [vmem:[%s4 + $0x3c] sm:$0xf]
        %v337 = vld [vmem:[%s5] sm:$0x1]
        %v339 = vlaneseq
        %v340 = vshrl.u32 %v339, 7
        %v341 = vsub.s32 0, %v340
        %v342 = vrot.slane %v337, %v341
        %v360 = vunpack.c.l.b16 %v321
        %v361 = vunpack.c.l.b16 %v322
        %v362 = vunpack.c.l.b16 %v323
        %v363 = vunpack.c.l.b16 %v324
        %v364 = vunpack.c.l.b16 %v325
        %v365 = vunpack.c.l.b16 %v326
        %v366 = vunpack.c.l.b16 %v327
        %v367 = vunpack.c.l.b16 %v328
        %v368 = vunpack.c.l.b16 %v329
        %v369 = vunpack.c.l.b16 %v330
        %v370 = vunpack.c.l.b16 %v331
        %v371 = vunpack.c.l.b16 %v332
        %v372 = vunpack.c.l.b16 %v333
        %v373 = vunpack.c.l.b16 %v334
        %v374 = vunpack.c.l.b16 %v335
        %v375 = vunpack.c.l.b16 %v336
        %v376 = vpack.c.b16 %v361, %v360
        %v377 = vpack.c.b16 %v363, %v362
        %v378 = vpack.c.b16 %v365, %v364
        %v379 = vpack.c.b16 %v367, %v366
        %v380 = vpack.c.b16 %v369, %v368
        %v381 = vpack.c.b16 %v371, %v370
        %v382 = vpack.c.b16 %v373, %v372
        %v383 = vpack.c.b16 %v375, %v374
        %392 = vmatprep.subr.bf16.mxu0 0
        %393 = vmatpush1.bf16.msra.mxu0 %v383
        %394 = vmatprep.subr.bf16.mxu0 0
        %395 = vmatpush1.bf16.msra.mxu0 %v382
        %396 = vmatprep.subr.bf16.mxu0 0
        %397 = vmatpush1.bf16.msra.mxu0 %v381
        %398 = vmatprep.subr.bf16.mxu0 0
        %399 = vmatpush1.bf16.msra.mxu0 %v380
        %400 = vmatprep.subr.bf16.mxu0 0
        %401 = vmatpush1.bf16.msra.mxu0 %v379
        %402 = vmatprep.subr.bf16.mxu0 0
        %403 = vmatpush1.bf16.msra.mxu0 %v378
        %404 = vmatprep.subr.bf16.mxu0 0
        %405 = vmatpush1.bf16.msra.mxu0 %v377
        %406 = vmatprep.subr.bf16.mxu0 0
        %407 = vmatpush1.bf16.msra.mxu0 %v376
        %408 = vmatprep.subr.bf16.mxu0 0
        %409 = vmatpush2.bf16.msra.mxu0 0
        %410 = vmatprep.subr.bf16.mxu0 0
        %411 = vmatpush2.bf16.msra.mxu0 0
        %412 = vmatprep.subr.bf16.mxu0 0
        %413 = vmatpush2.bf16.msra.mxu0 0
        %414 = vmatprep.subr.bf16.mxu0 0
        %415 = vmatpush2.bf16.msra.mxu0 0
        %416 = vmatprep.subr.bf16.mxu0 0
        %417 = vmatpush2.bf16.msra.mxu0 0
        %418 = vmatprep.subr.bf16.mxu0 0
        %419 = vmatpush2.bf16.msra.mxu0 0
        %420 = vmatprep.subr.bf16.mxu0 0
        %421 = vmatpush2.bf16.msra.mxu0 0
        %422 = vmatprep.subr.bf16.mxu0 0
        %423 = vmatpush2.bf16.msra.mxu0 0
        %424 = vmatprep.mubr.bf16.mxu0 0
        %425 = vmatmul.mubr.bf16.gmra.mxu0 %v319
        %v426 = vpop.f32.mrf.mxu0
        %v427 = vadd.f32 %v342, %v426
        %v428 = vpop.f32.mrf.mxu0
        %v429 = vpop.f32.mrf.mxu0
        %v430 = vadd.f32 %v342, %v429
        %v431 = vpop.f32.mrf.mxu0
        %432 = vmatprep.mubr.bf16.mxu0 0
        %433 = vmatmul.mubr.bf16.gmra.mxu0 %v320
        %v434 = vpop.f32.mrf.mxu0
        %v435 = vadd.f32 %v342, %v434
        %v436 = vpop.f32.mrf.mxu0
        %v437 = vpop.f32.mrf.mxu0
        %v438 = vadd.f32 %v342, %v437
        %v439 = vpop.f32.mrf.mxu0
        %440 = vdwg.mxu0
        %441 = vst [vmem:[%s245] sm:$0xff] %v427
        %442 = vst [vmem:[%s245 + $0x8] sm:$0xff] %v430
        %443 = vst [vmem:[%s245 + $0x10] sm:$0xff] %v435
        %444 = vst [vmem:[%s245 + $0x18] sm:$0xff] %v438
        %s445 = sand.u32 %s159, 1
        %s446 = scalar_lea.sflag [#allocation3], %s445
        %s447 = sand.u32 %s159, 1
        %s448 = smul.addr %s447, 32
        %s449 = scalar_lea.vmem [#allocation2], %s448
        // Predicated region
        $region45: #{node_block_forward.7} parent=43 // pred_check
          %p450 = pneg %p169
        $region46: #{node_block_forward.7} parent=43 // pred_check_branch
          %452 = sbr.rel (%p450) target = $region48
        $region47: #{node_block_forward.7} parent=43 // pred_region
          %s453 = smul.u32 4, %s20
          %s455 = ssub.s32 512, 512
          %456 = vsyncadd %s446, %s455
          %s457 = smul.addr %s453, 128
          %s458 = scalar_lea.hbm %s6, %s457
          %s459 = sshll.u32 %s449, 4
          %s460 = int_to_ptr.vmem [resolvable:$true] %s459
          %465 = dma.vmem_to_hbm [thread:$0]  %s460, 512, %s458, %s446, 128, 128, 8
        $region48: #{node_block_forward.7} parent=43 // pred_fallthru
          _
      $region44: #{node_block_forward.7} parent=5 // pred_fallthru
        _
      %p466 = scmp.le.s32.totalorder 2, %s15
      // Predicated region
      $region49: #{node_block_forward.7} parent=5 // pred_check
        %p467 = pneg %p466
      $region50: #{node_block_forward.7} parent=5 // pred_check_branch
        %469 = sbr.rel (%p467) target = $region52
      $region51: #{node_block_forward.7} parent=5 // pred_region
        %s470 = ssub.s32 %s15, 2
        // Predicated region
        $region53: #{node_block_forward.7} parent=51 // pred_check
          %p471 = pneg %p175
        $region54: #{node_block_forward.7} parent=51 // pred_check_branch
          %473 = sbr.rel (%p471) target = $region56
        $region55: #{node_block_forward.7} parent=51 // pred_region
          %s474 = sand.u32 %s160, 1
          %s475 = scalar_lea.sflag [#allocation3], %s474
          %s476 = sand.u32 %s160, 1
          %s477 = smul.addr %s476, 32
          %s478 = scalar_lea.vmem [#allocation2], %s477
          %479 = dma.done %s475, 512
        $region56: #{node_block_forward.7} parent=51 // pred_fallthru
          _
      $region52: #{node_block_forward.7} parent=5 // pred_fallthru
        _
    $region6: #{node_block_forward.7} parent=1 // loop_footer
      %s19 = sadd.s32 1, %s15
    $region7: #{node_block_forward.7} parent=1 // loop_footer_branch
      %14 = sbr.rel target = $region3
    $region8: #{node_block_forward.7} parent=1 // loop_exit
      _
    %480 = vsyncpa [#allocation3], 1
    %s481 = scalar_lea.sflag [#allocation3], 1
    %482 = vsyncpa %s481, 1

// kernel: node_block_forward.6
$region0: #{node_block_forward.6}
  #allocation0 [shape = 'u32[]', space=smem, size = 0x4, offset = 0x4, fixed_abs, tag = 'smem constant byte address 0x4 - core index']
  #allocation1 [shape = 'u32[144,128]{1,0:T(1,128)}', space=vmem, size = 0x12000, scoped, tag = 'internal scratch']
  %s0 = inlined_call_operand.vmem [shape: f32[64,48], index: 0, kind: input, shape index: {}]
  %s1 = inlined_call_operand.vmem [shape: f32[64,128], index: 1, kind: input, shape index: {}]
  %s2 = inlined_call_operand.vmem [shape: bf16[48,128], index: 2, kind: input, shape index: {}]
  %s3 = inlined_call_operand.vmem [shape: bf16[128,128], index: 3, kind: input, shape index: {}]
  %s4 = inlined_call_operand.vmem [shape: f32[64,128], index: 4, kind: output, shape index: {0}]
  %s5 = inlined_call_operand.vmem [shape: f32[2,2,128], index: 5, kind: output, shape index: {1}]
  %6 = xla_tuple %s4, %s5
  %s7 = sld [smem:[#allocation0]]
  $region61: #{node_block_forward.6} parent=0
    _
  %s9 = ssub.s32 1, %s7
  %s10 = scalar_select 0, %s9, %s7
  loop: start=0, step=1, limit=4
  $region2: #{node_block_forward.6} parent=0 // loop_pre_header
    _
  $region3: #{node_block_forward.6} parent=0 // loop_header
    %s12 = sphi 0, %s16
    %p13 = scmp.ge.s32.totalorder %s12, 4
    %s19 = sphi 0, %s31
    %s20 = sphi 0, %s27
    %s21 = sphi 0, %s19
    %s22 = sphi 0, %s20
    %s23 = sphi 0, %s21
    %s24 = sphi 0, %s22
    %s36 = sphi 0, %s38
    %s39 = sphi 0, %s36
    %s40 = sphi 0, %s39
    %s56 = sphi 0, %s40
    %s64 = sphi 0, %s66
    %s67 = sphi 0, %s64
    %s68 = sphi 0, %s67
    %s84 = sphi 0, %s68
    %s88 = sphi 0, %s88
    %s90 = sphi 0, %s88
    %s91 = sphi 0, %s90
    %s105 = sphi 0, %s91
    %s109 = sphi 0, %s109
    %s111 = sphi 0, %s109
    %s112 = sphi 0, %s111
    %s126 = sphi 0, %s112
    %s134 = sphi 0, %s136
    %s137 = sphi 0, %s134
    %s138 = sphi 0, %s137
    %s154 = sphi 0, %s138
    %s160 = sphi 0, %s162
    %s163 = sphi 0, %s160
    %s164 = sphi 0, %s163
    %s180 = sphi 0, %s164
  $region4: #{node_block_forward.6} parent=0 // loop_header_branch
    %15 = sbr.rel (%p13) target = $region8
  $region5: #{node_block_forward.6} parent=0 // loop_body
    %s17 = ssub.s32 %s12, 1
    %s18 = ssub.s32 %s12, 2
    %s25 = sadd.s32 1, %s20
    %p26 = scmp.ge.s32.totalorder %s25, 1
    %s27 = scalar_select %p26, 0, %s25
    %s28 = sadd.s32 1, %s19
    %s29 = scalar_select %p26, %s28, %s19
    %p30 = scmp.ge.s32.totalorder %s29, 2
    %s31 = scalar_select %p30, 0, %s29
    %s32 = sadd.s32 %s19, %s20
    %s33 = sadd.s32 %s31, %s27
    %s34 = ssub.s32 %s32, %s33
    %p35 = scmp.eq.s32.totalorder %s34, 0
    %s37 = sadd.s32 %s36, 1
    %s38 = scalar_select %p35, %s36, %s37
    %p41 = pneg %p35
    %p42 = scmp.eq.s32.totalorder %s12, 1
    %p43 = por %p41, %p42
    %p44 = scmp.ne.s32.totalorder %s36, %s39
    %p45 = scmp.eq.s32.totalorder %s12, 0
    %p46 = por %p44, %p45
    %p47 = scmp.ne.s32.totalorder %s36, %s39
    %p48 = scmp.eq.s32.totalorder %s17, 1
    %p49 = por %p47, %p48
    %p50 = scmp.ne.s32.totalorder %s39, %s40
    %p51 = scmp.eq.s32.totalorder %s17, 0
    %p52 = por %p50, %p51
    %p53 = scmp.ne.s32.totalorder %s39, %s40
    %p54 = scmp.eq.s32.totalorder %s18, 1
    %p55 = por %p53, %p54
    %p57 = scmp.ne.s32.totalorder %s40, %s56
    %p58 = scmp.eq.s32.totalorder %s18, 0
    %p59 = por %p57, %p58
    %s60 = sadd.s32 %s19, %s20
    %s61 = sadd.s32 %s31, %s27
    %s62 = ssub.s32 %s60, %s61
    %p63 = scmp.eq.s32.totalorder %s62, 0
    %s65 = sadd.s32 %s64, 1
    %s66 = scalar_select %p63, %s64, %s65
    %p69 = pneg %p63
    %p70 = scmp.eq.s32.totalorder %s12, 1
    %p71 = por %p69, %p70
    %p72 = scmp.ne.s32.totalorder %s64, %s67
    %p73 = scmp.eq.s32.totalorder %s12, 0
    %p74 = por %p72, %p73
    %p75 = scmp.ne.s32.totalorder %s64, %s67
    %p76 = scmp.eq.s32.totalorder %s17, 1
    %p77 = por %p75, %p76
    %p78 = scmp.ne.s32.totalorder %s67, %s68
    %p79 = scmp.eq.s32.totalorder %s17, 0
    %p80 = por %p78, %p79
    %p81 = scmp.ne.s32.totalorder %s67, %s68
    %p82 = scmp.eq.s32.totalorder %s18, 1
    %p83 = por %p81, %p82
    %p85 = scmp.ne.s32.totalorder %s68, %s84
    %p86 = scmp.eq.s32.totalorder %s18, 0
    %p87 = por %p85, %p86
    %s89 = sadd.s32 %s88, 1
    %p92 = scmp.eq.s32.totalorder %s12, 1
    %p93 = scmp.ne.s32.totalorder %s88, %s90
    %p94 = scmp.eq.s32.totalorder %s12, 0
    %p95 = por %p93, %p94
    %p96 = scmp.ne.s32.totalorder %s88, %s90
    %p97 = scmp.eq.s32.totalorder %s17, 1
    %p98 = por %p96, %p97
    %p99 = scmp.ne.s32.totalorder %s90, %s91
    %p100 = scmp.eq.s32.totalorder %s17, 0
    %p101 = por %p99, %p100
    %p102 = scmp.ne.s32.totalorder %s90, %s91
    %p103 = scmp.eq.s32.totalorder %s18, 1
    %p104 = por %p102, %p103
    %p106 = scmp.ne.s32.totalorder %s91, %s105
    %p107 = scmp.eq.s32.totalorder %s18, 0
    %p108 = por %p106, %p107
    %s110 = sadd.s32 %s109, 1
    %p113 = scmp.eq.s32.totalorder %s12, 1
    %p114 = scmp.ne.s32.totalorder %s109, %s111
    %p115 = scmp.eq.s32.totalorder %s12, 0
    %p116 = por %p114, %p115
    %p117 = scmp.ne.s32.totalorder %s109, %s111
    %p118 = scmp.eq.s32.totalorder %s17, 1
    %p119 = por %p117, %p118
    %p120 = scmp.ne.s32.totalorder %s111, %s112
    %p121 = scmp.eq.s32.totalorder %s17, 0
    %p122 = por %p120, %p121
    %p123 = scmp.ne.s32.totalorder %s111, %s112
    %p124 = scmp.eq.s32.totalorder %s18, 1
    %p125 = por %p123, %p124
    %p127 = scmp.ne.s32.totalorder %s112, %s126
    %p128 = scmp.eq.s32.totalorder %s18, 0
    %p129 = por %p127, %p128
    %s130 = sadd.s32 %s19, %s20
    %s131 = sadd.s32 %s31, %s27
    %s132 = ssub.s32 %s130, %s131
    %p133 = scmp.eq.s32.totalorder %s132, 0
    %s135 = sadd.s32 %s134, 1
    %s136 = scalar_select %p133, %s134, %s135
    %p139 = pneg %p133
    %p140 = scmp.eq.s32.totalorder %s12, 1
    %p141 = por %p139, %p140
    %p142 = scmp.ne.s32.totalorder %s134, %s137
    %p143 = scmp.eq.s32.totalorder %s12, 0
    %p144 = por %p142, %p143
    %p145 = scmp.ne.s32.totalorder %s134, %s137
    %p146 = scmp.eq.s32.totalorder %s17, 1
    %p147 = por %p145, %p146
    %p148 = scmp.ne.s32.totalorder %s137, %s138
    %p149 = scmp.eq.s32.totalorder %s17, 0
    %p150 = por %p148, %p149
    %p151 = scmp.ne.s32.totalorder %s137, %s138
    %p152 = scmp.eq.s32.totalorder %s18, 1
    %p153 = por %p151, %p152
    %p155 = scmp.ne.s32.totalorder %s138, %s154
    %p156 = scmp.eq.s32.totalorder %s18, 0
    %p157 = por %p155, %p156
    %s158 = ssub.s32 %s19, %s31
    %p159 = scmp.eq.s32.totalorder %s158, 0
    %s161 = sadd.s32 %s160, 1
    %s162 = scalar_select %p159, %s160, %s161
    %p165 = pneg %p159
    %p166 = scmp.eq.s32.totalorder %s12, 1
    %p167 = por %p165, %p166
    %p168 = scmp.ne.s32.totalorder %s160, %s163
    %p169 = scmp.eq.s32.totalorder %s12, 0
    %p170 = por %p168, %p169
    %p171 = scmp.ne.s32.totalorder %s160, %s163
    %p172 = scmp.eq.s32.totalorder %s17, 1
    %p173 = por %p171, %p172
    %p174 = scmp.ne.s32.totalorder %s163, %s164
    %p175 = scmp.eq.s32.totalorder %s17, 0
    %p176 = por %p174, %p175
    %p177 = scmp.ne.s32.totalorder %s163, %s164
    %p178 = scmp.eq.s32.totalorder %s18, 1
    %p179 = por %p177, %p178
    %p181 = scmp.ne.s32.totalorder %s164, %s180
    %p182 = scmp.eq.s32.totalorder %s18, 0
    %p183 = por %p181, %p182
    %p184 = scmp.le.s32.totalorder 1, %s12
    %p185 = scmp.lt.s32.totalorder %s12, 3
    %p186 = pnand %p184, %p185
    %p187 = pneg %p186
    // Predicated region
    $region9: #{node_block_forward.6} parent=5 // pred_check
      _
    $region10: #{node_block_forward.6} parent=5 // pred_check_branch
      %189 = sbr.rel (%p186) target = $region12
    $region11: #{node_block_forward.6} parent=5 // pred_region
      %s190 = ssub.s32 %s12, 1
      // Predicated region
      $region13: #{node_block_forward.6} parent=11 // pred_check
        %p191 = pneg %p101
      $region14: #{node_block_forward.6} parent=11 // pred_check_branch
        %193 = sbr.rel (%p191) target = $region16
      $region15: #{node_block_forward.6} parent=11 // pred_region
        _
      $region16: #{node_block_forward.6} parent=11 // pred_fallthru
        _
      // Predicated region
      $region17: #{node_block_forward.6} parent=11 // pred_check
        %p194 = pneg %p122
      $region18: #{node_block_forward.6} parent=11 // pred_check_branch
        %196 = sbr.rel (%p194) target = $region20
      $region19: #{node_block_forward.6} parent=11 // pred_region
        _
      $region20: #{node_block_forward.6} parent=11 // pred_fallthru
        _
    $region12: #{node_block_forward.6} parent=5 // pred_fallthru
      _
    %p197 = scmp.lt.s32.totalorder %s12, 2
    // Predicated region
    $region21: #{node_block_forward.6} parent=5 // pred_check
      %p198 = pneg %p197
    $region22: #{node_block_forward.6} parent=5 // pred_check_branch
      %200 = sbr.rel (%p198) target = $region24
    $region23: #{node_block_forward.6} parent=5 // pred_region
      // Predicated region
      $region25: #{node_block_forward.6} parent=23 // pred_check
        %p201 = pneg %p46
      $region26: #{node_block_forward.6} parent=23 // pred_check_branch
        %203 = sbr.rel (%p201) target = $region28
      $region27: #{node_block_forward.6} parent=23 // pred_region
        %s204 = sadd.s32 %s19, %s20
        %s205 = smul.u32 4, %s204
        %p206 = scmp.lt.s32.totalorder %s205, 7
        %s207 = scalar_select %p206, %s205, 7
        %s208 = smul.addr %s207, 8
        %s209 = scalar_lea.vmem %s0, %s208
        %s210 = sadd.s32 %s19, %s20
        %s211 = smul.u32 4, %s210
      $region28: #{node_block_forward.6} parent=23 // pred_fallthru
        _
      // Predicated region
      $region29: #{node_block_forward.6} parent=23 // pred_check
        %p212 = pneg %p74
      $region30: #{node_block_forward.6} parent=23 // pred_check_branch
        %214 = sbr.rel (%p212) target = $region32
      $region31: #{node_block_forward.6} parent=23 // pred_region
        %s215 = sadd.s32 %s19, %s20
        %s216 = smul.u32 4, %s215
        %p217 = scmp.lt.s32.totalorder %s216, 7
        %s218 = scalar_select %p217, %s216, 7
        %s219 = smul.addr %s218, 8
        %s220 = scalar_lea.vmem %s1, %s219
        %s221 = sadd.s32 %s19, %s20
        %s222 = smul.u32 4, %s221
      $region32: #{node_block_forward.6} parent=23 // pred_fallthru
        _
    $region24: #{node_block_forward.6} parent=5 // pred_fallthru
      _
    %p223 = scmp.le.s32.totalorder 1, %s12
    %p224 = scmp.lt.s32.totalorder %s12, 3
    %p225 = pnand %p223, %p224
    %p226 = pneg %p225
    // Predicated region
    $region33: #{node_block_forward.6} parent=5 // pred_check
      _
    $region34: #{node_block_forward.6} parent=5 // pred_check_branch
      %228 = sbr.rel (%p225) target = $region36
    $region35: #{node_block_forward.6} parent=5 // pred_region
      %s229 = ssub.s32 %s12, 1
      %s230 = sadd.s32 %s21, %s22
      %s231 = smul.u32 4, %s230
      %p232 = scmp.lt.s32.totalorder %s231, 7
      %s233 = scalar_select %p232, %s231, 7
      %s234 = smul.addr %s233, 8
      %s235 = scalar_lea.vmem %s0, %s234
      %p236 = pneg %p52
      %p237 = pneg %p49
      %s238 = sadd.s32 %s21, %s22
      %s239 = smul.u32 4, %s238
      %p240 = scmp.lt.s32.totalorder %s239, 7
      %s241 = scalar_select %p240, %s239, 7
      %s242 = smul.addr %s241, 8
      %s243 = scalar_lea.vmem %s1, %s242
      %p244 = pneg %p80
      %p245 = pneg %p77
      %p246 = pneg %p101
      %p247 = pneg %p98
      %p248 = pneg %p122
      %p249 = pneg %p119
      %p250 = pneg %p150
      %p251 = pneg %p147
      %s252 = sadd.s32 %s21, %s22
      %s253 = smul.u32 4, %s252
      %p254 = scmp.lt.s32.totalorder %s253, 7
      %s255 = scalar_select %p254, %s253, 7
      %s256 = smul.addr %s255, 8
      %s257 = scalar_lea.vmem %s4, %s256
      %p258 = pneg %p176
      %p259 = pneg %p173
      %p260 = scmp.lt.s32.totalorder %s21, 1
      %s261 = scalar_select %p260, %s21, 1
      %s262 = smul.addr %s261, 2
      %s263 = scalar_lea.vmem %s5, %s262
      %s264 = sadd.s32 %s21, %s22
      %s265 = smul.u32 4, %s264
      %p266 = scmp.lt.s32.totalorder %s265, 7
      %s267 = scalar_select %p266, %s265, 7
      %s268 = smul.addr %s267, 8
      %s269 = scalar_lea.vmem %s0, %s268
      %s270 = sadd.s32 %s21, %s22
      %s271 = smul.u32 4, %s270
      %s272 = sadd.s32 %s21, %s22
      %s273 = smul.u32 4, %s272
      %p274 = scmp.lt.s32.totalorder %s273, 7
      %s275 = scalar_select %p274, %s273, 7
      %s276 = smul.addr %s275, 8
      %s277 = scalar_lea.vmem %s1, %s276
      %s278 = sadd.s32 %s21, %s22
      %s279 = smul.u32 4, %s278
      %s280 = sadd.s32 %s21, %s22
      %s281 = smul.u32 4, %s280
      %p282 = scmp.lt.s32.totalorder %s281, 7
      %s283 = scalar_select %p282, %s281, 7
      %s284 = smul.addr %s283, 8
      %s285 = scalar_lea.vmem %s4, %s284
      %s286 = sadd.s32 %s21, %s22
      %s287 = smul.u32 4, %s286
      %p288 = scmp.lt.s32.totalorder %s21, 1
      %s289 = scalar_select %p288, %s21, 1
      %s290 = smul.addr %s289, 2
      %s291 = scalar_lea.vmem %s5, %s290
      %v293 = vld [vmem:[%s269] sm:$0xff]
      %v294 = vld [vmem:[%s269 + $0x8] sm:$0xff]
      %v295 = vld [vmem:[%s269 + $0x10] sm:$0xff]
      %v296 = vld [vmem:[%s269 + $0x18] sm:$0xff]
      %v297 = vpack.c.bf16 %v294, %v293
      %v298 = vpack.c.bf16 %v296, %v295
      %v299 = vld [vmem:[%s2] sm:$0xf]
      %v300 = vld [vmem:[%s2 + $0x4] sm:$0xf]
      %v301 = vld [vmem:[%s2 + $0x8] sm:$0xf]
      %v302 = vld [vmem:[%s2 + $0xc] sm:$0xf]
      %v303 = vld [vmem:[%s2 + $0x10] sm:$0xf]
      %v304 = vld [vmem:[%s2 + $0x14] sm:$0xf]
      %v305 = vld [vmem:[%s277] sm:$0xff]
      %v306 = vld [vmem:[%s277 + $0x8] sm:$0xff]
      %v307 = vld [vmem:[%s277 + $0x10] sm:$0xff]
      %v308 = vld [vmem:[%s277 + $0x18] sm:$0xff]
      %v309 = vpack.c.bf16 %v306, %v305
      %v310 = vpack.c.bf16 %v308, %v307
      %v311 = vld [vmem:[%s3] sm:$0xf]
      %v312 = vld [vmem:[%s3 + $0x4] sm:$0xf]
      %v313 = vld [vmem:[%s3 + $0x8] sm:$0xf]
      %v314 = vld [vmem:[%s3 + $0xc] sm:$0xf]
      %v315 = vld [vmem:[%s3 + $0x10] sm:$0xf]
      %v316 = vld [vmem:[%s3 + $0x14] sm:$0xf]
      %v317 = vld [vmem:[%s3 + $0x18] sm:$0xf]
      %v318 = vld [vmem:[%s3 + $0x1c] sm:$0xf]
      %v319 = vld [vmem:[%s3 + $0x20] sm:$0xf]
      %v320 = vld [vmem:[%s3 + $0x24] sm:$0xf]
      %v321 = vld [vmem:[%s3 + $0x28] sm:$0xf]
      %v322 = vld [vmem:[%s3 + $0x2c] sm:$0xf]
      %v323 = vld [vmem:[%s3 + $0x30] sm:$0xf]
      %v324 = vld [vmem:[%s3 + $0x34] sm:$0xf]
      %v325 = vld [vmem:[%s3 + $0x38] sm:$0xf]
      %v326 = vld [vmem:[%s3 + $0x3c] sm:$0xf]
      %v343 = vunpack.c.l.b16 %v311
      %v344 = vunpack.c.l.b16 %v312
      %v345 = vunpack.c.l.b16 %v313
      %v346 = vunpack.c.l.b16 %v314
      %v347 = vunpack.c.l.b16 %v315
      %v348 = vunpack.c.l.b16 %v316
      %v349 = vunpack.c.l.b16 %v317
      %v350 = vunpack.c.l.b16 %v318
      %v351 = vunpack.c.l.b16 %v319
      %v352 = vunpack.c.l.b16 %v320
      %v353 = vunpack.c.l.b16 %v321
      %v354 = vunpack.c.l.b16 %v322
      %v355 = vunpack.c.l.b16 %v323
      %v356 = vunpack.c.l.b16 %v324
      %v357 = vunpack.c.l.b16 %v325
      %v358 = vunpack.c.l.b16 %v326
      %v359 = vpack.c.b16 %v344, %v343
      %v360 = vpack.c.b16 %v346, %v345
      %v361 = vpack.c.b16 %v348, %v347
      %v362 = vpack.c.b16 %v350, %v349
      %v363 = vpack.c.b16 %v352, %v351
      %v364 = vpack.c.b16 %v354, %v353
      %v365 = vpack.c.b16 %v356, %v355
      %v366 = vpack.c.b16 %v358, %v357
      %375 = vmatprep.subr.bf16.mxu0 0
      %376 = vmatpush1.bf16.msra.mxu0 %v366
      %377 = vmatprep.subr.bf16.mxu0 0
      %378 = vmatpush1.bf16.msra.mxu0 %v365
      %379 = vmatprep.subr.bf16.mxu0 0
      %380 = vmatpush1.bf16.msra.mxu0 %v364
      %381 = vmatprep.subr.bf16.mxu0 0
      %382 = vmatpush1.bf16.msra.mxu0 %v363
      %383 = vmatprep.subr.bf16.mxu0 0
      %384 = vmatpush1.bf16.msra.mxu0 %v362
      %385 = vmatprep.subr.bf16.mxu0 0
      %386 = vmatpush1.bf16.msra.mxu0 %v361
      %387 = vmatprep.subr.bf16.mxu0 0
      %388 = vmatpush1.bf16.msra.mxu0 %v360
      %389 = vmatprep.subr.bf16.mxu0 0
      %390 = vmatpush1.bf16.msra.mxu0 %v359
      %391 = vmatprep.subr.bf16.mxu0 0
      %392 = vmatpush2.bf16.msra.mxu0 0
      %393 = vmatprep.subr.bf16.mxu0 0
      %394 = vmatpush2.bf16.msra.mxu0 0
      %395 = vmatprep.subr.bf16.mxu0 0
      %396 = vmatpush2.bf16.msra.mxu0 0
      %397 = vmatprep.subr.bf16.mxu0 0
      %398 = vmatpush2.bf16.msra.mxu0 0
      %399 = vmatprep.subr.bf16.mxu0 0
      %400 = vmatpush2.bf16.msra.mxu0 0
      %401 = vmatprep.subr.bf16.mxu0 0
      %402 = vmatpush2.bf16.msra.mxu0 0
      %403 = vmatprep.subr.bf16.mxu0 0
      %404 = vmatpush2.bf16.msra.mxu0 0
      %405 = vmatprep.subr.bf16.mxu0 0
      %406 = vmatpush2.bf16.msra.mxu0 0
      %407 = vmatprep.mubr.bf16.mxu0 0
      %408 = vmatmul.mubr.bf16.gmra.mxu0 %v309
      %v409 = vpop.f32.mrf.mxu0
      %v410 = vadd.f32 0.0, %v409
      %v411 = vpop.f32.mrf.mxu0
      %v412 = vpop.f32.mrf.mxu0
      %v413 = vadd.f32 0.0, %v412
      %v414 = vpop.f32.mrf.mxu0
      %415 = vmatprep.mubr.bf16.mxu0 0
      %416 = vmatmul.mubr.bf16.gmra.mxu0 %v310
      %v417 = vpop.f32.mrf.mxu0
      %v418 = vadd.f32 0.0, %v417
      %v419 = vpop.f32.mrf.mxu0
      %v420 = vpop.f32.mrf.mxu0
      %v421 = vadd.f32 0.0, %v420
      %v422 = vpop.f32.mrf.mxu0
      %423 = vdwg.mxu0
      %v430 = vunpack.c.l.b16 %v299
      %v431 = vunpack.c.l.b16 %v300
      %v432 = vunpack.c.l.b16 %v301
      %v433 = vunpack.c.l.b16 %v302
      %v434 = vunpack.c.l.b16 %v303
      %v435 = vunpack.c.l.b16 %v304
      %v436 = vpack.c.b16 %v431, %v430
      %v437 = vpack.c.b16 %v433, %v432
      %v438 = vpack.c.b16 %v435, %v434
      %vm442 = vcmask 392192
      %v444 = vsel %vm442, %v297, 0
      %v447 = vsel %vm442, %v298, 0
      %449 = vmatprep.subr.bf16.mxu0 0
      %450 = vmatpush1.bf16.msra.mxu0 0
      %451 = vmatprep.subr.bf16.mxu0 0
      %452 = vmatpush1.bf16.msra.mxu0 0
      %453 = vmatprep.subr.bf16.mxu0 0
      %454 = vmatpush1.bf16.msra.mxu0 0
      %455 = vmatprep.subr.bf16.mxu0 0
      %456 = vmatpush1.bf16.msra.mxu0 0
      %457 = vmatprep.subr.bf16.mxu0 0
      %458 = vmatpush1.bf16.msra.mxu0 0
      %459 = vmatprep.subr.bf16.mxu0 0
      %460 = vmatpush1.bf16.msra.mxu0 %v438
      %461 = vmatprep.subr.bf16.mxu0 0
      %462 = vmatpush1.bf16.msra.mxu0 %v437
      %463 = vmatprep.subr.bf16.mxu0 0
      %464 = vmatpush1.bf16.msra.mxu0 %v436
      %465 = vmatprep.subr.bf16.mxu0 0
      %466 = vmatpush2.bf16.msra.mxu0 0
      %467 = vmatprep.subr.bf16.mxu0 0
      %468 = vmatpush2.bf16.msra.mxu0 0
      %469 = vmatprep.subr.bf16.mxu0 0
      %470 = vmatpush2.bf16.msra.mxu0 0
      %471 = vmatprep.subr.bf16.mxu0 0
      %472 = vmatpush2.bf16.msra.mxu0 0
      %473 = vmatprep.subr.bf16.mxu0 0
      %474 = vmatpush2.bf16.msra.mxu0 0
      %475 = vmatprep.subr.bf16.mxu0 0
      %476 = vmatpush2.bf16.msra.mxu0 0
      %477 = vmatprep.subr.bf16.mxu0 0
      %478 = vmatpush2.bf16.msra.mxu0 0
      %479 = vmatprep.subr.bf16.mxu0 0
      %480 = vmatpush2.bf16.msra.mxu0 0
      %481 = vmatprep.mubr.bf16.mxu0 0
      %482 = vmatmul.mubr.bf16.gmra.mxu0 %v444
      %v483 = vpop.f32.mrf.mxu0
      %v484 = vadd.f32 %v410, %v483
      %v485 = vpop.f32.mrf.mxu0
      %v486 = vpop.f32.mrf.mxu0
      %v487 = vadd.f32 %v413, %v486
      %v488 = vpop.f32.mrf.mxu0
      %489 = vmatprep.mubr.bf16.mxu0 0
      %490 = vmatmul.mubr.bf16.gmra.mxu0 %v447
      %v491 = vpop.f32.mrf.mxu0
      %v492 = vadd.f32 %v418, %v491
      %v493 = vpop.f32.mrf.mxu0
      %v494 = vpop.f32.mrf.mxu0
      %v495 = vadd.f32 %v421, %v494
      %v496 = vpop.f32.mrf.mxu0
      %497 = vdwg.mxu0
      %498 = vst [vmem:[%s285] sm:$0xff] %v484
      %499 = vst [vmem:[%s285 + $0x8] sm:$0xff] %v487
      %500 = vst [vmem:[%s285 + $0x10] sm:$0xff] %v492
      %501 = vst [vmem:[%s285 + $0x18] sm:$0xff] %v495
      %p502 = scmp.eq.s32.totalorder %s22, 0
      // Predicated region
      $region37: #{node_block_forward.6} parent=35 // pred_check
        %p503 = pneg %p502
      $region38: #{node_block_forward.6} parent=35 // pred_check_branch
        %505 = sbr.rel (%p503) target = $region40
      $region39: #{node_block_forward.6} parent=35 // pred_region
        %506 = vst [vmem:[%s291] sm:$0x3] 0.0
      $region40: #{node_block_forward.6} parent=35 // pred_fallthru
        _
      %v507 = vadd.f32 %v484, %v487
      %v508 = vadd.f32 %v507, %v492
      %v509 = vadd.f32 %v508, %v495
      %v510 = vrot.slane %v509, 4
      %v511 = vadd.f32 %v509, %v510
      %v512 = vrot.slane %v511, 2
      %v513 = vadd.f32 %v511, %v512
      %v514 = vrot.slane %v513, 1
      %v515 = vadd.f32 %v513, %v514
      %v516 = vmul.f32 %v484, %v484
      %v517 = vmul.f32 %v487, %v487
      %v518 = vmul.f32 %v492, %v492
      %v519 = vmul.f32 %v495, %v495
      %v520 = vadd.f32 %v516, %v517
      %v521 = vadd.f32 %v520, %v518
      %v522 = vadd.f32 %v521, %v519
      %v523 = vrot.slane %v522, 4
      %v524 = vadd.f32 %v522, %v523
      %v525 = vrot.slane %v524, 2
      %v526 = vadd.f32 %v524, %v525
      %v527 = vrot.slane %v526, 1
      %v528 = vadd.f32 %v526, %v527
      %v529 = vld [vmem:[%s291] sm:$0x3]
      %vm530 = vcmask 1040384
      %v531 = vsel %vm530, %v515, %v528
      %v532 = vadd.f32 %v529, %v531
      %533 = vst [vmem:[%s291] sm:$0x3] %v532
      %s534 = sadd.s32 %s21, %s22
      %s535 = smul.u32 4, %s534
      %p536 = scmp.lt.s32.totalorder %s535, 7
      %s537 = scalar_select %p536, %s535, 7
      %s538 = smul.addr %s537, 8
      %s539 = scalar_lea.vmem %s4, %s538
      %p540 = scmp.lt.s32.totalorder %s21, 1
      %s541 = scalar_select %p540, %s21, 1
      %s542 = smul.addr %s541, 2
      %s543 = scalar_lea.vmem %s5, %s542
      // Predicated region
      $region41: #{node_block_forward.6} parent=35 // pred_check
        %p544 = pneg %p147
      $region42: #{node_block_forward.6} parent=35 // pred_check_branch
        %546 = sbr.rel (%p544) target = $region44
      $region43: #{node_block_forward.6} parent=35 // pred_region
        %s547 = sadd.s32 %s21, %s22
        %s548 = smul.u32 4, %s547
      $region44: #{node_block_forward.6} parent=35 // pred_fallthru
        _
      // Predicated region
      $region45: #{node_block_forward.6} parent=35 // pred_check
        %p549 = pneg %p173
      $region46: #{node_block_forward.6} parent=35 // pred_check_branch
        %551 = sbr.rel (%p549) target = $region48
      $region47: #{node_block_forward.6} parent=35 // pred_region
        _
      $region48: #{node_block_forward.6} parent=35 // pred_fallthru
        _
    $region36: #{node_block_forward.6} parent=5 // pred_fallthru
      _
    %p552 = scmp.le.s32.totalorder 2, %s12
    // Predicated region
    $region49: #{node_block_forward.6} parent=5 // pred_check
      %p553 = pneg %p552
    $region50: #{node_block_forward.6} parent=5 // pred_check_branch
      %555 = sbr.rel (%p553) target = $region52
    $region51: #{node_block_forward.6} parent=5 // pred_region
      %s556 = ssub.s32 %s12, 2
      // Predicated region
      $region53: #{node_block_forward.6} parent=51 // pred_check
        %p557 = pneg %p153
      $region54: #{node_block_forward.6} parent=51 // pred_check_branch
        %559 = sbr.rel (%p557) target = $region56
      $region55: #{node_block_forward.6} parent=51 // pred_region
        %s560 = sadd.s32 %s23, %s24
        %s561 = smul.u32 4, %s560
        %p562 = scmp.lt.s32.totalorder %s561, 7
        %s563 = scalar_select %p562, %s561, 7
        %s564 = smul.addr %s563, 8
        %s565 = scalar_lea.vmem %s4, %s564
      $region56: #{node_block_forward.6} parent=51 // pred_fallthru
        _
      // Predicated region
      $region57: #{node_block_forward.6} parent=51 // pred_check
        %p566 = pneg %p179
      $region58: #{node_block_forward.6} parent=51 // pred_check_branch
        %568 = sbr.rel (%p566) target = $region60
      $region59: #{node_block_forward.6} parent=51 // pred_region
        %p569 = scmp.lt.s32.totalorder %s23, 1
        %s570 = scalar_select %p569, %s23, 1
        %s571 = smul.addr %s570, 2
        %s572 = scalar_lea.vmem %s5, %s571
      $region60: #{node_block_forward.6} parent=51 // pred_fallthru
        _
    $region52: #{node_block_forward.6} parent=5 // pred_fallthru
      _
  $region6: #{node_block_forward.6} parent=0 // loop_footer
    %s16 = sadd.s32 1, %s12
  $region7: #{node_block_forward.6} parent=0 // loop_footer_branch
    %11 = sbr.rel target = $region3
  $region8: #{node_block_forward.6} parent=0 // loop_exit
    _

// kernel: node_block_forward.4
$region0: #{node_block_forward.4}
  #allocation0 [shape = 'u32[]', space=smem, size = 0x4, offset = 0x4, fixed_abs, tag = 'smem constant byte address 0x4 - core index']
  #allocation1 [shape = 'u32[144,128]{1,0:T(1,128)}', space=vmem, size = 0x12000, scoped, tag = 'internal scratch']
  %s0 = inlined_call_operand.vmem [shape: f32[256,48], index: 0, kind: input, shape index: {}]
  %s1 = inlined_call_operand.vmem [shape: f32[256,128], index: 1, kind: input, shape index: {}]
  %s2 = inlined_call_operand.vmem [shape: bf16[48,128], index: 2, kind: input, shape index: {}]
  %s3 = inlined_call_operand.vmem [shape: bf16[128,128], index: 3, kind: input, shape index: {}]
  %s4 = inlined_call_operand.vmem [shape: f32[256,128], index: 4, kind: output, shape index: {0}]
  %s5 = inlined_call_operand.vmem [shape: f32[2,2,128], index: 5, kind: output, shape index: {1}]
  %6 = xla_tuple %s4, %s5
  %s7 = sld [smem:[#allocation0]]
  $region61: #{node_block_forward.4} parent=0
    _
  %s9 = ssub.s32 1, %s7
  %s10 = scalar_select 0, %s9, %s7
  loop: start=0, step=1, limit=4
  $region2: #{node_block_forward.4} parent=0 // loop_pre_header
    _
  $region3: #{node_block_forward.4} parent=0 // loop_header
    %s12 = sphi 0, %s16
    %p13 = scmp.ge.s32.totalorder %s12, 4
    %s19 = sphi 0, %s31
    %s20 = sphi 0, %s27
    %s21 = sphi 0, %s19
    %s22 = sphi 0, %s20
    %s23 = sphi 0, %s21
    %s24 = sphi 0, %s22
    %s36 = sphi 0, %s38
    %s39 = sphi 0, %s36
    %s40 = sphi 0, %s39
    %s56 = sphi 0, %s40
    %s64 = sphi 0, %s66
    %s67 = sphi 0, %s64
    %s68 = sphi 0, %s67
    %s84 = sphi 0, %s68
    %s88 = sphi 0, %s88
    %s90 = sphi 0, %s88
    %s91 = sphi 0, %s90
    %s105 = sphi 0, %s91
    %s109 = sphi 0, %s109
    %s111 = sphi 0, %s109
    %s112 = sphi 0, %s111
    %s126 = sphi 0, %s112
    %s134 = sphi 0, %s136
    %s137 = sphi 0, %s134
    %s138 = sphi 0, %s137
    %s154 = sphi 0, %s138
    %s160 = sphi 0, %s162
    %s163 = sphi 0, %s160
    %s164 = sphi 0, %s163
    %s180 = sphi 0, %s164
  $region4: #{node_block_forward.4} parent=0 // loop_header_branch
    %15 = sbr.rel (%p13) target = $region8
  $region5: #{node_block_forward.4} parent=0 // loop_body
    %s17 = ssub.s32 %s12, 1
    %s18 = ssub.s32 %s12, 2
    %s25 = sadd.s32 1, %s20
    %p26 = scmp.ge.s32.totalorder %s25, 1
    %s27 = scalar_select %p26, 0, %s25
    %s28 = sadd.s32 1, %s19
    %s29 = scalar_select %p26, %s28, %s19
    %p30 = scmp.ge.s32.totalorder %s29, 2
    %s31 = scalar_select %p30, 0, %s29
    %s32 = sadd.s32 %s19, %s20
    %s33 = sadd.s32 %s31, %s27
    %s34 = ssub.s32 %s32, %s33
    %p35 = scmp.eq.s32.totalorder %s34, 0
    %s37 = sadd.s32 %s36, 1
    %s38 = scalar_select %p35, %s36, %s37
    %p41 = pneg %p35
    %p42 = scmp.eq.s32.totalorder %s12, 1
    %p43 = por %p41, %p42
    %p44 = scmp.ne.s32.totalorder %s36, %s39
    %p45 = scmp.eq.s32.totalorder %s12, 0
    %p46 = por %p44, %p45
    %p47 = scmp.ne.s32.totalorder %s36, %s39
    %p48 = scmp.eq.s32.totalorder %s17, 1
    %p49 = por %p47, %p48
    %p50 = scmp.ne.s32.totalorder %s39, %s40
    %p51 = scmp.eq.s32.totalorder %s17, 0
    %p52 = por %p50, %p51
    %p53 = scmp.ne.s32.totalorder %s39, %s40
    %p54 = scmp.eq.s32.totalorder %s18, 1
    %p55 = por %p53, %p54
    %p57 = scmp.ne.s32.totalorder %s40, %s56
    %p58 = scmp.eq.s32.totalorder %s18, 0
    %p59 = por %p57, %p58
    %s60 = sadd.s32 %s19, %s20
    %s61 = sadd.s32 %s31, %s27
    %s62 = ssub.s32 %s60, %s61
    %p63 = scmp.eq.s32.totalorder %s62, 0
    %s65 = sadd.s32 %s64, 1
    %s66 = scalar_select %p63, %s64, %s65
    %p69 = pneg %p63
    %p70 = scmp.eq.s32.totalorder %s12, 1
    %p71 = por %p69, %p70
    %p72 = scmp.ne.s32.totalorder %s64, %s67
    %p73 = scmp.eq.s32.totalorder %s12, 0
    %p74 = por %p72, %p73
    %p75 = scmp.ne.s32.totalorder %s64, %s67
    %p76 = scmp.eq.s32.totalorder %s17, 1
    %p77 = por %p75, %p76
    %p78 = scmp.ne.s32.totalorder %s67, %s68
    %p79 = scmp.eq.s32.totalorder %s17, 0
    %p80 = por %p78, %p79
    %p81 = scmp.ne.s32.totalorder %s67, %s68
    %p82 = scmp.eq.s32.totalorder %s18, 1
    %p83 = por %p81, %p82
    %p85 = scmp.ne.s32.totalorder %s68, %s84
    %p86 = scmp.eq.s32.totalorder %s18, 0
    %p87 = por %p85, %p86
    %s89 = sadd.s32 %s88, 1
    %p92 = scmp.eq.s32.totalorder %s12, 1
    %p93 = scmp.ne.s32.totalorder %s88, %s90
    %p94 = scmp.eq.s32.totalorder %s12, 0
    %p95 = por %p93, %p94
    %p96 = scmp.ne.s32.totalorder %s88, %s90
    %p97 = scmp.eq.s32.totalorder %s17, 1
    %p98 = por %p96, %p97
    %p99 = scmp.ne.s32.totalorder %s90, %s91
    %p100 = scmp.eq.s32.totalorder %s17, 0
    %p101 = por %p99, %p100
    %p102 = scmp.ne.s32.totalorder %s90, %s91
    %p103 = scmp.eq.s32.totalorder %s18, 1
    %p104 = por %p102, %p103
    %p106 = scmp.ne.s32.totalorder %s91, %s105
    %p107 = scmp.eq.s32.totalorder %s18, 0
    %p108 = por %p106, %p107
    %s110 = sadd.s32 %s109, 1
    %p113 = scmp.eq.s32.totalorder %s12, 1
    %p114 = scmp.ne.s32.totalorder %s109, %s111
    %p115 = scmp.eq.s32.totalorder %s12, 0
    %p116 = por %p114, %p115
    %p117 = scmp.ne.s32.totalorder %s109, %s111
    %p118 = scmp.eq.s32.totalorder %s17, 1
    %p119 = por %p117, %p118
    %p120 = scmp.ne.s32.totalorder %s111, %s112
    %p121 = scmp.eq.s32.totalorder %s17, 0
    %p122 = por %p120, %p121
    %p123 = scmp.ne.s32.totalorder %s111, %s112
    %p124 = scmp.eq.s32.totalorder %s18, 1
    %p125 = por %p123, %p124
    %p127 = scmp.ne.s32.totalorder %s112, %s126
    %p128 = scmp.eq.s32.totalorder %s18, 0
    %p129 = por %p127, %p128
    %s130 = sadd.s32 %s19, %s20
    %s131 = sadd.s32 %s31, %s27
    %s132 = ssub.s32 %s130, %s131
    %p133 = scmp.eq.s32.totalorder %s132, 0
    %s135 = sadd.s32 %s134, 1
    %s136 = scalar_select %p133, %s134, %s135
    %p139 = pneg %p133
    %p140 = scmp.eq.s32.totalorder %s12, 1
    %p141 = por %p139, %p140
    %p142 = scmp.ne.s32.totalorder %s134, %s137
    %p143 = scmp.eq.s32.totalorder %s12, 0
    %p144 = por %p142, %p143
    %p145 = scmp.ne.s32.totalorder %s134, %s137
    %p146 = scmp.eq.s32.totalorder %s17, 1
    %p147 = por %p145, %p146
    %p148 = scmp.ne.s32.totalorder %s137, %s138
    %p149 = scmp.eq.s32.totalorder %s17, 0
    %p150 = por %p148, %p149
    %p151 = scmp.ne.s32.totalorder %s137, %s138
    %p152 = scmp.eq.s32.totalorder %s18, 1
    %p153 = por %p151, %p152
    %p155 = scmp.ne.s32.totalorder %s138, %s154
    %p156 = scmp.eq.s32.totalorder %s18, 0
    %p157 = por %p155, %p156
    %s158 = ssub.s32 %s19, %s31
    %p159 = scmp.eq.s32.totalorder %s158, 0
    %s161 = sadd.s32 %s160, 1
    %s162 = scalar_select %p159, %s160, %s161
    %p165 = pneg %p159
    %p166 = scmp.eq.s32.totalorder %s12, 1
    %p167 = por %p165, %p166
    %p168 = scmp.ne.s32.totalorder %s160, %s163
    %p169 = scmp.eq.s32.totalorder %s12, 0
    %p170 = por %p168, %p169
    %p171 = scmp.ne.s32.totalorder %s160, %s163
    %p172 = scmp.eq.s32.totalorder %s17, 1
    %p173 = por %p171, %p172
    %p174 = scmp.ne.s32.totalorder %s163, %s164
    %p175 = scmp.eq.s32.totalorder %s17, 0
    %p176 = por %p174, %p175
    %p177 = scmp.ne.s32.totalorder %s163, %s164
    %p178 = scmp.eq.s32.totalorder %s18, 1
    %p179 = por %p177, %p178
    %p181 = scmp.ne.s32.totalorder %s164, %s180
    %p182 = scmp.eq.s32.totalorder %s18, 0
    %p183 = por %p181, %p182
    %p184 = scmp.le.s32.totalorder 1, %s12
    %p185 = scmp.lt.s32.totalorder %s12, 3
    %p186 = pnand %p184, %p185
    %p187 = pneg %p186
    // Predicated region
    $region9: #{node_block_forward.4} parent=5 // pred_check
      _
    $region10: #{node_block_forward.4} parent=5 // pred_check_branch
      %189 = sbr.rel (%p186) target = $region12
    $region11: #{node_block_forward.4} parent=5 // pred_region
      %s190 = ssub.s32 %s12, 1
      // Predicated region
      $region13: #{node_block_forward.4} parent=11 // pred_check
        %p191 = pneg %p101
      $region14: #{node_block_forward.4} parent=11 // pred_check_branch
        %193 = sbr.rel (%p191) target = $region16
      $region15: #{node_block_forward.4} parent=11 // pred_region
        _
      $region16: #{node_block_forward.4} parent=11 // pred_fallthru
        _
      // Predicated region
      $region17: #{node_block_forward.4} parent=11 // pred_check
        %p194 = pneg %p122
      $region18: #{node_block_forward.4} parent=11 // pred_check_branch
        %196 = sbr.rel (%p194) target = $region20
      $region19: #{node_block_forward.4} parent=11 // pred_region
        _
      $region20: #{node_block_forward.4} parent=11 // pred_fallthru
        _
    $region12: #{node_block_forward.4} parent=5 // pred_fallthru
      _
    %p197 = scmp.lt.s32.totalorder %s12, 2
    // Predicated region
    $region21: #{node_block_forward.4} parent=5 // pred_check
      %p198 = pneg %p197
    $region22: #{node_block_forward.4} parent=5 // pred_check_branch
      %200 = sbr.rel (%p198) target = $region24
    $region23: #{node_block_forward.4} parent=5 // pred_region
      // Predicated region
      $region25: #{node_block_forward.4} parent=23 // pred_check
        %p201 = pneg %p46
      $region26: #{node_block_forward.4} parent=23 // pred_check_branch
        %203 = sbr.rel (%p201) target = $region28
      $region27: #{node_block_forward.4} parent=23 // pred_region
        %s204 = sadd.s32 %s19, %s20
        %s205 = smul.u32 16, %s204
        %p206 = scmp.lt.s32.totalorder %s205, 31
        %s207 = scalar_select %p206, %s205, 31
        %s208 = smul.addr %s207, 8
        %s209 = scalar_lea.vmem %s0, %s208
        %s210 = sadd.s32 %s19, %s20
        %s211 = smul.u32 16, %s210
      $region28: #{node_block_forward.4} parent=23 // pred_fallthru
        _
      // Predicated region
      $region29: #{node_block_forward.4} parent=23 // pred_check
        %p212 = pneg %p74
      $region30: #{node_block_forward.4} parent=23 // pred_check_branch
        %214 = sbr.rel (%p212) target = $region32
      $region31: #{node_block_forward.4} parent=23 // pred_region
        %s215 = sadd.s32 %s19, %s20
        %s216 = smul.u32 16, %s215
        %p217 = scmp.lt.s32.totalorder %s216, 31
        %s218 = scalar_select %p217, %s216, 31
        %s219 = smul.addr %s218, 8
        %s220 = scalar_lea.vmem %s1, %s219
        %s221 = sadd.s32 %s19, %s20
        %s222 = smul.u32 16, %s221
      $region32: #{node_block_forward.4} parent=23 // pred_fallthru
        _
    $region24: #{node_block_forward.4} parent=5 // pred_fallthru
      _
    %p223 = scmp.le.s32.totalorder 1, %s12
    %p224 = scmp.lt.s32.totalorder %s12, 3
    %p225 = pnand %p223, %p224
    %p226 = pneg %p225
    // Predicated region
    $region33: #{node_block_forward.4} parent=5 // pred_check
      _
    $region34: #{node_block_forward.4} parent=5 // pred_check_branch
      %228 = sbr.rel (%p225) target = $region36
    $region35: #{node_block_forward.4} parent=5 // pred_region
      %s229 = ssub.s32 %s12, 1
      %s230 = sadd.s32 %s21, %s22
      %s231 = smul.u32 16, %s230
      %p232 = scmp.lt.s32.totalorder %s231, 31
      %s233 = scalar_select %p232, %s231, 31
      %s234 = smul.addr %s233, 8
      %s235 = scalar_lea.vmem %s0, %s234
      %p236 = pneg %p52
      %p237 = pneg %p49
      %s238 = sadd.s32 %s21, %s22
      %s239 = smul.u32 16, %s238
      %p240 = scmp.lt.s32.totalorder %s239, 31
      %s241 = scalar_select %p240, %s239, 31
      %s242 = smul.addr %s241, 8
      %s243 = scalar_lea.vmem %s1, %s242
      %p244 = pneg %p80
      %p245 = pneg %p77
      %p246 = pneg %p101
      %p247 = pneg %p98
      %p248 = pneg %p122
      %p249 = pneg %p119
      %p250 = pneg %p150
      %p251 = pneg %p147
      %s252 = sadd.s32 %s21, %s22
      %s253 = smul.u32 16, %s252
      %p254 = scmp.lt.s32.totalorder %s253, 31
      %s255 = scalar_select %p254, %s253, 31
      %s256 = smul.addr %s255, 8
      %s257 = scalar_lea.vmem %s4, %s256
      %p258 = pneg %p176
      %p259 = pneg %p173
      %p260 = scmp.lt.s32.totalorder %s21, 1
      %s261 = scalar_select %p260, %s21, 1
      %s262 = smul.addr %s261, 2
      %s263 = scalar_lea.vmem %s5, %s262
      %s264 = sadd.s32 %s21, %s22
      %s265 = smul.u32 16, %s264
      %p266 = scmp.lt.s32.totalorder %s265, 31
      %s267 = scalar_select %p266, %s265, 31
      %s268 = smul.addr %s267, 8
      %s269 = scalar_lea.vmem %s0, %s268
      %s270 = sadd.s32 %s21, %s22
      %s271 = smul.u32 16, %s270
      %s272 = sadd.s32 %s21, %s22
      %s273 = smul.u32 16, %s272
      %p274 = scmp.lt.s32.totalorder %s273, 31
      %s275 = scalar_select %p274, %s273, 31
      %s276 = smul.addr %s275, 8
      %s277 = scalar_lea.vmem %s1, %s276
      %s278 = sadd.s32 %s21, %s22
      %s279 = smul.u32 16, %s278
      %s280 = sadd.s32 %s21, %s22
      %s281 = smul.u32 16, %s280
      %p282 = scmp.lt.s32.totalorder %s281, 31
      %s283 = scalar_select %p282, %s281, 31
      %s284 = smul.addr %s283, 8
      %s285 = scalar_lea.vmem %s4, %s284
      %s286 = sadd.s32 %s21, %s22
      %s287 = smul.u32 16, %s286
      %p288 = scmp.lt.s32.totalorder %s21, 1
      %s289 = scalar_select %p288, %s21, 1
      %s290 = smul.addr %s289, 2
      %s291 = scalar_lea.vmem %s5, %s290
      %v293 = vld [vmem:[%s269] sm:$0xff]
      %v294 = vld [vmem:[%s269 + $0x8] sm:$0xff]
      %v295 = vld [vmem:[%s269 + $0x10] sm:$0xff]
      %v296 = vld [vmem:[%s269 + $0x18] sm:$0xff]
      %v297 = vld [vmem:[%s269 + $0x20] sm:$0xff]
      %v298 = vld [vmem:[%s269 + $0x28] sm:$0xff]
      %v299 = vld [vmem:[%s269 + $0x30] sm:$0xff]
      %v300 = vld [vmem:[%s269 + $0x38] sm:$0xff]
      %v301 = vld [vmem:[%s269 + $0x40] sm:$0xff]
      %v302 = vld [vmem:[%s269 + $0x48] sm:$0xff]
      %v303 = vld [vmem:[%s269 + $0x50] sm:$0xff]
      %v304 = vld [vmem:[%s269 + $0x58] sm:$0xff]
      %v305 = vld [vmem:[%s269 + $0x60] sm:$0xff]
      %v306 = vld [vmem:[%s269 + $0x68] sm:$0xff]
      %v307 = vld [vmem:[%s269 + $0x70] sm:$0xff]
      %v308 = vld [vmem:[%s269 + $0x78] sm:$0xff]
      %v309 = vpack.c.bf16 %v294, %v293
      %v310 = vpack.c.bf16 %v296, %v295
      %v311 = vpack.c.bf16 %v298, %v297
      %v312 = vpack.c.bf16 %v300, %v299
      %v313 = vpack.c.bf16 %v302, %v301
      %v314 = vpack.c.bf16 %v304, %v303
      %v315 = vpack.c.bf16 %v306, %v305
      %v316 = vpack.c.bf16 %v308, %v307
      %v317 = vld [vmem:[%s2] sm:$0xf]
      %v318 = vld [vmem:[%s2 + $0x4] sm:$0xf]
      %v319 = vld [vmem:[%s2 + $0x8] sm:$0xf]
      %v320 = vld [vmem:[%s2 + $0xc] sm:$0xf]
      %v321 = vld [vmem:[%s2 + $0x10] sm:$0xf]
      %v322 = vld [vmem:[%s2 + $0x14] sm:$0xf]
      %v323 = vld [vmem:[%s277] sm:$0xff]
      %v324 = vld [vmem:[%s277 + $0x8] sm:$0xff]
      %v325 = vld [vmem:[%s277 + $0x10] sm:$0xff]
      %v326 = vld [vmem:[%s277 + $0x18] sm:$0xff]
      %v327 = vld [vmem:[%s277 + $0x20] sm:$0xff]
      %v328 = vld [vmem:[%s277 + $0x28] sm:$0xff]
      %v329 = vld [vmem:[%s277 + $0x30] sm:$0xff]
      %v330 = vld [vmem:[%s277 + $0x38] sm:$0xff]
      %v331 = vld [vmem:[%s277 + $0x40] sm:$0xff]
      %v332 = vld [vmem:[%s277 + $0x48] sm:$0xff]
      %v333 = vld [vmem:[%s277 + $0x50] sm:$0xff]
      %v334 = vld [vmem:[%s277 + $0x58] sm:$0xff]
      %v335 = vld [vmem:[%s277 + $0x60] sm:$0xff]
      %v336 = vld [vmem:[%s277 + $0x68] sm:$0xff]
      %v337 = vld [vmem:[%s277 + $0x70] sm:$0xff]
      %v338 = vld [vmem:[%s277 + $0x78] sm:$0xff]
      %v339 = vpack.c.bf16 %v324, %v323
      %v340 = vpack.c.bf16 %v326, %v325
      %v341 = vpack.c.bf16 %v328, %v327
      %v342 = vpack.c.bf16 %v330, %v329
      %v343 = vpack.c.bf16 %v332, %v331
      %v344 = vpack.c.bf16 %v334, %v333
      %v345 = vpack.c.bf16 %v336, %v335
      %v346 = vpack.c.bf16 %v338, %v337
      %v347 = vld [vmem:[%s3] sm:$0xf]
      %v348 = vld [vmem:[%s3 + $0x4] sm:$0xf]
      %v349 = vld [vmem:[%s3 + $0x8] sm:$0xf]
      %v350 = vld [vmem:[%s3 + $0xc] sm:$0xf]
      %v351 = vld [vmem:[%s3 + $0x10] sm:$0xf]
      %v352 = vld [vmem:[%s3 + $0x14] sm:$0xf]
      %v353 = vld [vmem:[%s3 + $0x18] sm:$0xf]
      %v354 = vld [vmem:[%s3 + $0x1c] sm:$0xf]
      %v355 = vld [vmem:[%s3 + $0x20] sm:$0xf]
      %v356 = vld [vmem:[%s3 + $0x24] sm:$0xf]
      %v357 = vld [vmem:[%s3 + $0x28] sm:$0xf]
      %v358 = vld [vmem:[%s3 + $0x2c] sm:$0xf]
      %v359 = vld [vmem:[%s3 + $0x30] sm:$0xf]
      %v360 = vld [vmem:[%s3 + $0x34] sm:$0xf]
      %v361 = vld [vmem:[%s3 + $0x38] sm:$0xf]
      %v362 = vld [vmem:[%s3 + $0x3c] sm:$0xf]
      %v379 = vunpack.c.l.b16 %v347
      %v380 = vunpack.c.l.b16 %v348
      %v381 = vunpack.c.l.b16 %v349
      %v382 = vunpack.c.l.b16 %v350
      %v383 = vunpack.c.l.b16 %v351
      %v384 = vunpack.c.l.b16 %v352
      %v385 = vunpack.c.l.b16 %v353
      %v386 = vunpack.c.l.b16 %v354
      %v387 = vunpack.c.l.b16 %v355
      %v388 = vunpack.c.l.b16 %v356
      %v389 = vunpack.c.l.b16 %v357
      %v390 = vunpack.c.l.b16 %v358
      %v391 = vunpack.c.l.b16 %v359
      %v392 = vunpack.c.l.b16 %v360
      %v393 = vunpack.c.l.b16 %v361
      %v394 = vunpack.c.l.b16 %v362
      %v395 = vpack.c.b16 %v380, %v379
      %v396 = vpack.c.b16 %v382, %v381
      %v397 = vpack.c.b16 %v384, %v383
      %v398 = vpack.c.b16 %v386, %v385
      %v399 = vpack.c.b16 %v388, %v387
      %v400 = vpack.c.b16 %v390, %v389
      %v401 = vpack.c.b16 %v392, %v391
      %v402 = vpack.c.b16 %v394, %v393
      %411 = vmatprep.subr.bf16.mxu0 0
      %412 = vmatpush1.bf16.msra.mxu0 %v402
      %413 = vmatprep.subr.bf16.mxu0 0
      %414 = vmatpush1.bf16.msra.mxu0 %v401
      %415 = vmatprep.subr.bf16.mxu0 0
      %416 = vmatpush1.bf16.msra.mxu0 %v400
      %417 = vmatprep.subr.bf16.mxu0 0
      %418 = vmatpush1.bf16.msra.mxu0 %v399
      %419 = vmatprep.subr.bf16.mxu0 0
      %420 = vmatpush1.bf16.msra.mxu0 %v398
      %421 = vmatprep.subr.bf16.mxu0 0
      %422 = vmatpush1.bf16.msra.mxu0 %v397
      %423 = vmatprep.subr.bf16.mxu0 0
      %424 = vmatpush1.bf16.msra.mxu0 %v396
      %425 = vmatprep.subr.bf16.mxu0 0
      %426 = vmatpush1.bf16.msra.mxu0 %v395
      %427 = vmatprep.subr.bf16.mxu0 0
      %428 = vmatpush2.bf16.msra.mxu0 0
      %429 = vmatprep.subr.bf16.mxu0 0
      %430 = vmatpush2.bf16.msra.mxu0 0
      %431 = vmatprep.subr.bf16.mxu0 0
      %432 = vmatpush2.bf16.msra.mxu0 0
      %433 = vmatprep.subr.bf16.mxu0 0
      %434 = vmatpush2.bf16.msra.mxu0 0
      %435 = vmatprep.subr.bf16.mxu0 0
      %436 = vmatpush2.bf16.msra.mxu0 0
      %437 = vmatprep.subr.bf16.mxu0 0
      %438 = vmatpush2.bf16.msra.mxu0 0
      %439 = vmatprep.subr.bf16.mxu0 0
      %440 = vmatpush2.bf16.msra.mxu0 0
      %441 = vmatprep.subr.bf16.mxu0 0
      %442 = vmatpush2.bf16.msra.mxu0 0
      %443 = vmatprep.mubr.bf16.mxu0 0
      %444 = vmatmul.mubr.bf16.gmra.mxu0 %v339
      %v445 = vpop.f32.mrf.mxu0
      %v446 = vadd.f32 0.0, %v445
      %v447 = vpop.f32.mrf.mxu0
      %v448 = vpop.f32.mrf.mxu0
      %v449 = vadd.f32 0.0, %v448
      %v450 = vpop.f32.mrf.mxu0
      %451 = vmatprep.mubr.bf16.mxu0 0
      %452 = vmatmul.mubr.bf16.gmra.mxu0 %v340
      %v453 = vpop.f32.mrf.mxu0
      %v454 = vadd.f32 0.0, %v453
      %v455 = vpop.f32.mrf.mxu0
      %v456 = vpop.f32.mrf.mxu0
      %v457 = vadd.f32 0.0, %v456
      %v458 = vpop.f32.mrf.mxu0
      %459 = vmatprep.mubr.bf16.mxu0 0
      %460 = vmatmul.mubr.bf16.gmra.mxu0 %v341
      %v461 = vpop.f32.mrf.mxu0
      %v462 = vadd.f32 0.0, %v461
      %v463 = vpop.f32.mrf.mxu0
      %v464 = vpop.f32.mrf.mxu0
      %v465 = vadd.f32 0.0, %v464
      %v466 = vpop.f32.mrf.mxu0
      %467 = vmatprep.mubr.bf16.mxu0 0
      %468 = vmatmul.mubr.bf16.gmra.mxu0 %v342
      %v469 = vpop.f32.mrf.mxu0
      %v470 = vadd.f32 0.0, %v469
      %v471 = vpop.f32.mrf.mxu0
      %v472 = vpop.f32.mrf.mxu0
      %v473 = vadd.f32 0.0, %v472
      %v474 = vpop.f32.mrf.mxu0
      %475 = vmatprep.mubr.bf16.mxu0 0
      %476 = vmatmul.mubr.bf16.gmra.mxu0 %v343
      %v477 = vpop.f32.mrf.mxu0
      %v478 = vadd.f32 0.0, %v477
      %v479 = vpop.f32.mrf.mxu0
      %v480 = vpop.f32.mrf.mxu0
      %v481 = vadd.f32 0.0, %v480
      %v482 = vpop.f32.mrf.mxu0
      %483 = vmatprep.mubr.bf16.mxu0 0
      %484 = vmatmul.mubr.bf16.gmra.mxu0 %v344
      %v485 = vpop.f32.mrf.mxu0
      %v486 = vadd.f32 0.0, %v485
      %v487 = vpop.f32.mrf.mxu0
      %v488 = vpop.f32.mrf.mxu0
      %v489 = vadd.f32 0.0, %v488
      %v490 = vpop.f32.mrf.mxu0
      %491 = vmatprep.mubr.bf16.mxu0 0
      %492 = vmatmul.mubr.bf16.gmra.mxu0 %v345
      %v493 = vpop.f32.mrf.mxu0
      %v494 = vadd.f32 0.0, %v493
      %v495 = vpop.f32.mrf.mxu0
      %v496 = vpop.f32.mrf.mxu0
      %v497 = vadd.f32 0.0, %v496
      %v498 = vpop.f32.mrf.mxu0
      %499 = vmatprep.mubr.bf16.mxu0 0
      %500 = vmatmul.mubr.bf16.gmra.mxu0 %v346
      %v501 = vpop.f32.mrf.mxu0
      %v502 = vadd.f32 0.0, %v501
      %v503 = vpop.f32.mrf.mxu0
      %v504 = vpop.f32.mrf.mxu0
      %v505 = vadd.f32 0.0, %v504
      %v506 = vpop.f32.mrf.mxu0
      %507 = vdwg.mxu0
      %v514 = vunpack.c.l.b16 %v317
      %v515 = vunpack.c.l.b16 %v318
      %v516 = vunpack.c.l.b16 %v319
      %v517 = vunpack.c.l.b16 %v320
      %v518 = vunpack.c.l.b16 %v321
      %v519 = vunpack.c.l.b16 %v322
      %v520 = vpack.c.b16 %v515, %v514
      %v521 = vpack.c.b16 %v517, %v516
      %v522 = vpack.c.b16 %v519, %v518
      %vm526 = vcmask 392192
      %v528 = vsel %vm526, %v309, 0
      %v531 = vsel %vm526, %v310, 0
      %v534 = vsel %vm526, %v311, 0
      %v537 = vsel %vm526, %v312, 0
      %v540 = vsel %vm526, %v313, 0
      %v543 = vsel %vm526, %v314, 0
      %v546 = vsel %vm526, %v315, 0
      %v549 = vsel %vm526, %v316, 0
      %551 = vmatprep.subr.bf16.mxu0 0
      %552 = vmatpush1.bf16.msra.mxu0 0
      %553 = vmatprep.subr.bf16.mxu0 0
      %554 = vmatpush1.bf16.msra.mxu0 0
      %555 = vmatprep.subr.bf16.mxu0 0
      %556 = vmatpush1.bf16.msra.mxu0 0
      %557 = vmatprep.subr.bf16.mxu0 0
      %558 = vmatpush1.bf16.msra.mxu0 0
      %559 = vmatprep.subr.bf16.mxu0 0
      %560 = vmatpush1.bf16.msra.mxu0 0
      %561 = vmatprep.subr.bf16.mxu0 0
      %562 = vmatpush1.bf16.msra.mxu0 %v522
      %563 = vmatprep.subr.bf16.mxu0 0
      %564 = vmatpush1.bf16.msra.mxu0 %v521
      %565 = vmatprep.subr.bf16.mxu0 0
      %566 = vmatpush1.bf16.msra.mxu0 %v520
      %567 = vmatprep.subr.bf16.mxu0 0
      %568 = vmatpush2.bf16.msra.mxu0 0
      %569 = vmatprep.subr.bf16.mxu0 0
      %570 = vmatpush2.bf16.msra.mxu0 0
      %571 = vmatprep.subr.bf16.mxu0 0
      %572 = vmatpush2.bf16.msra.mxu0 0
      %573 = vmatprep.subr.bf16.mxu0 0
      %574 = vmatpush2.bf16.msra.mxu0 0
      %575 = vmatprep.subr.bf16.mxu0 0
      %576 = vmatpush2.bf16.msra.mxu0 0
      %577 = vmatprep.subr.bf16.mxu0 0
      %578 = vmatpush2.bf16.msra.mxu0 0
      %579 = vmatprep.subr.bf16.mxu0 0
      %580 = vmatpush2.bf16.msra.mxu0 0
      %581 = vmatprep.subr.bf16.mxu0 0
      %582 = vmatpush2.bf16.msra.mxu0 0
      %583 = vmatprep.mubr.bf16.mxu0 0
      %584 = vmatmul.mubr.bf16.gmra.mxu0 %v528
      %v585 = vpop.f32.mrf.mxu0
      %v586 = vadd.f32 %v446, %v585
      %v587 = vpop.f32.mrf.mxu0
      %v588 = vpop.f32.mrf.mxu0
      %v589 = vadd.f32 %v449, %v588
      %v590 = vpop.f32.mrf.mxu0
      %591 = vmatprep.mubr.bf16.mxu0 0
      %592 = vmatmul.mubr.bf16.gmra.mxu0 %v531
      %v593 = vpop.f32.mrf.mxu0
      %v594 = vadd.f32 %v454, %v593
      %v595 = vpop.f32.mrf.mxu0
      %v596 = vpop.f32.mrf.mxu0
      %v597 = vadd.f32 %v457, %v596
      %v598 = vpop.f32.mrf.mxu0
      %599 = vmatprep.mubr.bf16.mxu0 0
      %600 = vmatmul.mubr.bf16.gmra.mxu0 %v534
      %v601 = vpop.f32.mrf.mxu0
      %v602 = vadd.f32 %v462, %v601
      %v603 = vpop.f32.mrf.mxu0
      %v604 = vpop.f32.mrf.mxu0
      %v605 = vadd.f32 %v465, %v604
      %v606 = vpop.f32.mrf.mxu0
      %607 = vmatprep.mubr.bf16.mxu0 0
      %608 = vmatmul.mubr.bf16.gmra.mxu0 %v537
      %v609 = vpop.f32.mrf.mxu0
      %v610 = vadd.f32 %v470, %v609
      %v611 = vpop.f32.mrf.mxu0
      %v612 = vpop.f32.mrf.mxu0
      %v613 = vadd.f32 %v473, %v612
      %v614 = vpop.f32.mrf.mxu0
      %615 = vmatprep.mubr.bf16.mxu0 0
      %616 = vmatmul.mubr.bf16.gmra.mxu0 %v540
      %v617 = vpop.f32.mrf.mxu0
      %v618 = vadd.f32 %v478, %v617
      %v619 = vpop.f32.mrf.mxu0
      %v620 = vpop.f32.mrf.mxu0
      %v621 = vadd.f32 %v481, %v620
      %v622 = vpop.f32.mrf.mxu0
      %623 = vmatprep.mubr.bf16.mxu0 0
      %624 = vmatmul.mubr.bf16.gmra.mxu0 %v543
      %v625 = vpop.f32.mrf.mxu0
      %v626 = vadd.f32 %v486, %v625
      %v627 = vpop.f32.mrf.mxu0
      %v628 = vpop.f32.mrf.mxu0
      %v629 = vadd.f32 %v489, %v628
      %v630 = vpop.f32.mrf.mxu0
      %631 = vmatprep.mubr.bf16.mxu0 0
      %632 = vmatmul.mubr.bf16.gmra.mxu0 %v546
      %v633 = vpop.f32.mrf.mxu0
      %v634 = vadd.f32 %v494, %v633
      %v635 = vpop.f32.mrf.mxu0
      %v636 = vpop.f32.mrf.mxu0
      %v637 = vadd.f32 %v497, %v636
      %v638 = vpop.f32.mrf.mxu0
      %639 = vmatprep.mubr.bf16.mxu0 0
      %640 = vmatmul.mubr.bf16.gmra.mxu0 %v549
      %v641 = vpop.f32.mrf.mxu0
      %v642 = vadd.f32 %v502, %v641
      %v643 = vpop.f32.mrf.mxu0
      %v644 = vpop.f32.mrf.mxu0
      %v645 = vadd.f32 %v505, %v644
      %v646 = vpop.f32.mrf.mxu0
      %647 = vdwg.mxu0
      %648 = vst [vmem:[%s285] sm:$0xff] %v586
      %649 = vst [vmem:[%s285 + $0x8] sm:$0xff] %v589
      %650 = vst [vmem:[%s285 + $0x10] sm:$0xff] %v594
      %651 = vst [vmem:[%s285 + $0x18] sm:$0xff] %v597
      %652 = vst [vmem:[%s285 + $0x20] sm:$0xff] %v602
      %653 = vst [vmem:[%s285 + $0x28] sm:$0xff] %v605
      %654 = vst [vmem:[%s285 + $0x30] sm:$0xff] %v610
      %655 = vst [vmem:[%s285 + $0x38] sm:$0xff] %v613
      %656 = vst [vmem:[%s285 + $0x40] sm:$0xff] %v618
      %657 = vst [vmem:[%s285 + $0x48] sm:$0xff] %v621
      %658 = vst [vmem:[%s285 + $0x50] sm:$0xff] %v626
      %659 = vst [vmem:[%s285 + $0x58] sm:$0xff] %v629
      %660 = vst [vmem:[%s285 + $0x60] sm:$0xff] %v634
      %661 = vst [vmem:[%s285 + $0x68] sm:$0xff] %v637
      %662 = vst [vmem:[%s285 + $0x70] sm:$0xff] %v642
      %663 = vst [vmem:[%s285 + $0x78] sm:$0xff] %v645
      %p664 = scmp.eq.s32.totalorder %s22, 0
      // Predicated region
      $region37: #{node_block_forward.4} parent=35 // pred_check
        %p665 = pneg %p664
      $region38: #{node_block_forward.4} parent=35 // pred_check_branch
        %667 = sbr.rel (%p665) target = $region40
      $region39: #{node_block_forward.4} parent=35 // pred_region
        %668 = vst [vmem:[%s291] sm:$0x3] 0.0
      $region40: #{node_block_forward.4} parent=35 // pred_fallthru
        _
      %v669 = vadd.f32 %v586, %v589
      %v670 = vadd.f32 %v669, %v594
      %v671 = vadd.f32 %v670, %v597
      %v672 = vadd.f32 %v671, %v602
      %v673 = vadd.f32 %v672, %v605
      %v674 = vadd.f32 %v673, %v610
      %v675 = vadd.f32 %v674, %v613
      %v676 = vadd.f32 %v675, %v618
      %v677 = vadd.f32 %v676, %v621
      %v678 = vadd.f32 %v677, %v626
      %v679 = vadd.f32 %v678, %v629
      %v680 = vadd.f32 %v679, %v634
      %v681 = vadd.f32 %v680, %v637
      %v682 = vadd.f32 %v681, %v642
      %v683 = vadd.f32 %v682, %v645
      %v684 = vrot.slane %v683, 4
      %v685 = vadd.f32 %v683, %v684
      %v686 = vrot.slane %v685, 2
      %v687 = vadd.f32 %v685, %v686
      %v688 = vrot.slane %v687, 1
      %v689 = vadd.f32 %v687, %v688
      %v690 = vmul.f32 %v586, %v586
      %v691 = vmul.f32 %v589, %v589
      %v692 = vmul.f32 %v594, %v594
      %v693 = vmul.f32 %v597, %v597
      %v694 = vmul.f32 %v602, %v602
      %v695 = vmul.f32 %v605, %v605
      %v696 = vmul.f32 %v610, %v610
      %v697 = vmul.f32 %v613, %v613
      %v698 = vmul.f32 %v618, %v618
      %v699 = vmul.f32 %v621, %v621
      %v700 = vmul.f32 %v626, %v626
      %v701 = vmul.f32 %v629, %v629
      %v702 = vmul.f32 %v634, %v634
      %v703 = vmul.f32 %v637, %v637
      %v704 = vmul.f32 %v642, %v642
      %v705 = vmul.f32 %v645, %v645
      %v706 = vadd.f32 %v690, %v691
      %v707 = vadd.f32 %v706, %v692
      %v708 = vadd.f32 %v707, %v693
      %v709 = vadd.f32 %v708, %v694
      %v710 = vadd.f32 %v709, %v695
      %v711 = vadd.f32 %v710, %v696
      %v712 = vadd.f32 %v711, %v697
      %v713 = vadd.f32 %v712, %v698
      %v714 = vadd.f32 %v713, %v699
      %v715 = vadd.f32 %v714, %v700
      %v716 = vadd.f32 %v715, %v701
      %v717 = vadd.f32 %v716, %v702
      %v718 = vadd.f32 %v717, %v703
      %v719 = vadd.f32 %v718, %v704
      %v720 = vadd.f32 %v719, %v705
      %v721 = vrot.slane %v720, 4
      %v722 = vadd.f32 %v720, %v721
      %v723 = vrot.slane %v722, 2
      %v724 = vadd.f32 %v722, %v723
      %v725 = vrot.slane %v724, 1
      %v726 = vadd.f32 %v724, %v725
      %v727 = vld [vmem:[%s291] sm:$0x3]
      %vm728 = vcmask 1040384
      %v729 = vsel %vm728, %v689, %v726
      %v730 = vadd.f32 %v727, %v729
      %731 = vst [vmem:[%s291] sm:$0x3] %v730
      %s732 = sadd.s32 %s21, %s22
      %s733 = smul.u32 16, %s732
      %p734 = scmp.lt.s32.totalorder %s733, 31
      %s735 = scalar_select %p734, %s733, 31
      %s736 = smul.addr %s735, 8
      %s737 = scalar_lea.vmem %s4, %s736
      %p738 = scmp.lt.s32.totalorder %s21, 1
      %s739 = scalar_select %p738, %s21, 1
      %s740 = smul.addr %s739, 2
      %s741 = scalar_lea.vmem %s5, %s740
      // Predicated region
      $region41: #{node_block_forward.4} parent=35 // pred_check
        %p742 = pneg %p147
      $region42: #{node_block_forward.4} parent=35 // pred_check_branch
        %744 = sbr.rel (%p742) target = $region44
      $region43: #{node_block_forward.4} parent=35 // pred_region
        %s745 = sadd.s32 %s21, %s22
        %s746 = smul.u32 16, %s745
      $region44: #{node_block_forward.4} parent=35 // pred_fallthru
        _
      // Predicated region
      $region45: #{node_block_forward.4} parent=35 // pred_check
        %p747 = pneg %p173
      $region46: #{node_block_forward.4} parent=35 // pred_check_branch
        %749 = sbr.rel (%p747) target = $region48
      $region47: #{node_block_forward.4} parent=35 // pred_region
        _
      $region48: #{node_block_forward.4} parent=35 // pred_fallthru
        _
    $region36: #{node_block_forward.4} parent=5 // pred_fallthru
      _
    %p750 = scmp.le.s32.totalorder 2, %s12
    // Predicated region
    $region49: #{node_block_forward.4} parent=5 // pred_check
      %p751 = pneg %p750
    $region50: #{node_block_forward.4} parent=5 // pred_check_branch
      %753 = sbr.rel (%p751) target = $region52
    $region51: #{node_block_forward.4} parent=5 // pred_region
      %s754 = ssub.s32 %s12, 2
      // Predicated region
      $region53: #{node_block_forward.4} parent=51 // pred_check
        %p755 = pneg %p153
      $region54: #{node_block_forward.4} parent=51 // pred_check_branch
        %757 = sbr.rel (%p755) target = $region56
      $region55: #{node_block_forward.4} parent=51 // pred_region
        %s758 = sadd.s32 %s23, %s24
        %s759 = smul.u32 16, %s758
        %p760 = scmp.lt.s32.totalorder %s759, 31
        %s761 = scalar_select %p760, %s759, 31
        %s762 = smul.addr %s761, 8
        %s763 = scalar_lea.vmem %s4, %s762
      $region56: #{node_block_forward.4} parent=51 // pred_fallthru
        _
      // Predicated region
      $region57: #{node_block_forward.4} parent=51 // pred_check
        %p764 = pneg %p179
      $region58: #{node_block_forward.4} parent=51 // pred_check_branch
        %766 = sbr.rel (%p764) target = $region60
      $region59: #{node_block_forward.4} parent=51 // pred_region
        %p767 = scmp.lt.s32.totalorder %s23, 1
        %s768 = scalar_select %p767, %s23, 1
        %s769 = smul.addr %s768, 2
        %s770 = scalar_lea.vmem %s5, %s769
      $region60: #{node_block_forward.4} parent=51 // pred_fallthru
        _
    $region52: #{node_block_forward.4} parent=5 // pred_fallthru
      _
  $region6: #{node_block_forward.4} parent=0 // loop_footer
    %s16 = sadd.s32 1, %s12
  $region7: #{node_block_forward.4} parent=0 // loop_footer_branch
    %11 = sbr.rel target = $region3
  $region8: #{node_block_forward.4} parent=0 // loop_exit
    _

// kernel: node_block_forward.5
$region0: #{node_block_forward.5}
  #allocation0 [shape = 'u32[]', space=smem, size = 0x4, offset = 0x4, fixed_abs, tag = 'smem constant byte address 0x4 - core index']
  #allocation1 [shape = 'u32[144,128]{1,0:T(1,128)}', space=vmem, size = 0x12000, scoped, tag = 'internal scratch']
  #allocation2 [shape = 'f32[64,1]{1,0:T(8,128)}', space=vmem, size = 0x8000, scoped, tag = 'scratch operand']
  %s0 = inlined_call_operand.vmem [shape: f32[256,128], index: 0, kind: input, shape index: {}]
  %s1 = inlined_call_operand.vmem [shape: s32[1,256], index: 1, kind: input, shape index: {}]
  %s2 = inlined_call_operand.vmem [shape: f32[2,2,128], index: 2, kind: input, shape index: {}]
  %s3 = inlined_call_operand.vmem [shape: f32[1,128], index: 3, kind: input, shape index: {}]
  %s4 = inlined_call_operand.vmem [shape: f32[1,128], index: 4, kind: input, shape index: {}]
  %s5 = inlined_call_operand.vmem [shape: bf16[128,128], index: 5, kind: input, shape index: {}]
  %s6 = inlined_call_operand.vmem [shape: f32[1,128], index: 6, kind: input, shape index: {}]
  %s7 = inlined_call_operand.vmem [shape: f32[64,128], index: 7, kind: output, shape index: {}]
  %s8 = sld [smem:[#allocation0]]
  $region69: #{node_block_forward.5} parent=0
    _
  %s10 = ssub.s32 1, %s8
  %s11 = scalar_select 0, %s10, %s8
  loop: start=0, step=1, limit=4
  $region2: #{node_block_forward.5} parent=0 // loop_pre_header
    _
  $region3: #{node_block_forward.5} parent=0 // loop_header
    %s13 = sphi 0, %s17
    %p14 = scmp.ge.s32.totalorder %s13, 4
    %s23 = sphi 0, %s25
    %s26 = sphi 0, %s23
    %s27 = sphi 0, %s26
    %s43 = sphi 0, %s27
    %s49 = sphi 0, %s51
    %s52 = sphi 0, %s49
    %s53 = sphi 0, %s52
    %s69 = sphi 0, %s53
    %s73 = sphi 0, %s73
    %s75 = sphi 0, %s73
    %s76 = sphi 0, %s75
    %s90 = sphi 0, %s76
    %s94 = sphi 0, %s94
    %s96 = sphi 0, %s94
    %s97 = sphi 0, %s96
    %s111 = sphi 0, %s97
    %s115 = sphi 0, %s115
    %s117 = sphi 0, %s115
    %s118 = sphi 0, %s117
    %s132 = sphi 0, %s118
    %s136 = sphi 0, %s136
    %s138 = sphi 0, %s136
    %s139 = sphi 0, %s138
    %s153 = sphi 0, %s139
    %s157 = sphi 0, %s157
    %s159 = sphi 0, %s157
    %s160 = sphi 0, %s159
    %s174 = sphi 0, %s160
    %s178 = sphi 0, %s178
    %s180 = sphi 0, %s178
    %s181 = sphi 0, %s180
    %s195 = sphi 0, %s181
  $region4: #{node_block_forward.5} parent=0 // loop_header_branch
    %16 = sbr.rel (%p14) target = $region8
  $region5: #{node_block_forward.5} parent=0 // loop_body
    %s18 = ssub.s32 %s13, 1
    %s19 = ssub.s32 %s13, 2
    %s20 = sadd.s32 %s13, 1
    %s21 = ssub.s32 %s13, %s20
    %p22 = scmp.eq.s32.totalorder %s21, 0
    %s24 = sadd.s32 %s23, 1
    %s25 = scalar_select %p22, %s23, %s24
    %p28 = pneg %p22
    %p29 = scmp.eq.s32.totalorder %s13, 1
    %p30 = por %p28, %p29
    %p31 = scmp.ne.s32.totalorder %s23, %s26
    %p32 = scmp.eq.s32.totalorder %s13, 0
    %p33 = por %p31, %p32
    %p34 = scmp.ne.s32.totalorder %s23, %s26
    %p35 = scmp.eq.s32.totalorder %s18, 1
    %p36 = por %p34, %p35
    %p37 = scmp.ne.s32.totalorder %s26, %s27
    %p38 = scmp.eq.s32.totalorder %s18, 0
    %p39 = por %p37, %p38
    %p40 = scmp.ne.s32.totalorder %s26, %s27
    %p41 = scmp.eq.s32.totalorder %s19, 1
    %p42 = por %p40, %p41
    %p44 = scmp.ne.s32.totalorder %s27, %s43
    %p45 = scmp.eq.s32.totalorder %s19, 0
    %p46 = por %p44, %p45
    %s47 = ssub.s32 %s13, %s20
    %p48 = scmp.eq.s32.totalorder %s47, 0
    %s50 = sadd.s32 %s49, 1
    %s51 = scalar_select %p48, %s49, %s50
    %p54 = pneg %p48
    %p55 = scmp.eq.s32.totalorder %s13, 1
    %p56 = por %p54, %p55
    %p57 = scmp.ne.s32.totalorder %s49, %s52
    %p58 = scmp.eq.s32.totalorder %s13, 0
    %p59 = por %p57, %p58
    %p60 = scmp.ne.s32.totalorder %s49, %s52
    %p61 = scmp.eq.s32.totalorder %s18, 1
    %p62 = por %p60, %p61
    %p63 = scmp.ne.s32.totalorder %s52, %s53
    %p64 = scmp.eq.s32.totalorder %s18, 0
    %p65 = por %p63, %p64
    %p66 = scmp.ne.s32.totalorder %s52, %s53
    %p67 = scmp.eq.s32.totalorder %s19, 1
    %p68 = por %p66, %p67
    %p70 = scmp.ne.s32.totalorder %s53, %s69
    %p71 = scmp.eq.s32.totalorder %s19, 0
    %p72 = por %p70, %p71
    %s74 = sadd.s32 %s73, 1
    %p77 = scmp.eq.s32.totalorder %s13, 1
    %p78 = scmp.ne.s32.totalorder %s73, %s75
    %p79 = scmp.eq.s32.totalorder %s13, 0
    %p80 = por %p78, %p79
    %p81 = scmp.ne.s32.totalorder %s73, %s75
    %p82 = scmp.eq.s32.totalorder %s18, 1
    %p83 = por %p81, %p82
    %p84 = scmp.ne.s32.totalorder %s75, %s76
    %p85 = scmp.eq.s32.totalorder %s18, 0
    %p86 = por %p84, %p85
    %p87 = scmp.ne.s32.totalorder %s75, %s76
    %p88 = scmp.eq.s32.totalorder %s19, 1
    %p89 = por %p87, %p88
    %p91 = scmp.ne.s32.totalorder %s76, %s90
    %p92 = scmp.eq.s32.totalorder %s19, 0
    %p93 = por %p91, %p92
    %s95 = sadd.s32 %s94, 1
    %p98 = scmp.eq.s32.totalorder %s13, 1
    %p99 = scmp.ne.s32.totalorder %s94, %s96
    %p100 = scmp.eq.s32.totalorder %s13, 0
    %p101 = por %p99, %p100
    %p102 = scmp.ne.s32.totalorder %s94, %s96
    %p103 = scmp.eq.s32.totalorder %s18, 1
    %p104 = por %p102, %p103
    %p105 = scmp.ne.s32.totalorder %s96, %s97
    %p106 = scmp.eq.s32.totalorder %s18, 0
    %p107 = por %p105, %p106
    %p108 = scmp.ne.s32.totalorder %s96, %s97
    %p109 = scmp.eq.s32.totalorder %s19, 1
    %p110 = por %p108, %p109
    %p112 = scmp.ne.s32.totalorder %s97, %s111
    %p113 = scmp.eq.s32.totalorder %s19, 0
    %p114 = por %p112, %p113
    %s116 = sadd.s32 %s115, 1
    %p119 = scmp.eq.s32.totalorder %s13, 1
    %p120 = scmp.ne.s32.totalorder %s115, %s117
    %p121 = scmp.eq.s32.totalorder %s13, 0
    %p122 = por %p120, %p121
    %p123 = scmp.ne.s32.totalorder %s115, %s117
    %p124 = scmp.eq.s32.totalorder %s18, 1
    %p125 = por %p123, %p124
    %p126 = scmp.ne.s32.totalorder %s117, %s118
    %p127 = scmp.eq.s32.totalorder %s18, 0
    %p128 = por %p126, %p127
    %p129 = scmp.ne.s32.totalorder %s117, %s118
    %p130 = scmp.eq.s32.totalorder %s19, 1
    %p131 = por %p129, %p130
    %p133 = scmp.ne.s32.totalorder %s118, %s132
    %p134 = scmp.eq.s32.totalorder %s19, 0
    %p135 = por %p133, %p134
    %s137 = sadd.s32 %s136, 1
    %p140 = scmp.eq.s32.totalorder %s13, 1
    %p141 = scmp.ne.s32.totalorder %s136, %s138
    %p142 = scmp.eq.s32.totalorder %s13, 0
    %p143 = por %p141, %p142
    %p144 = scmp.ne.s32.totalorder %s136, %s138
    %p145 = scmp.eq.s32.totalorder %s18, 1
    %p146 = por %p144, %p145
    %p147 = scmp.ne.s32.totalorder %s138, %s139
    %p148 = scmp.eq.s32.totalorder %s18, 0
    %p149 = por %p147, %p148
    %p150 = scmp.ne.s32.totalorder %s138, %s139
    %p151 = scmp.eq.s32.totalorder %s19, 1
    %p152 = por %p150, %p151
    %p154 = scmp.ne.s32.totalorder %s139, %s153
    %p155 = scmp.eq.s32.totalorder %s19, 0
    %p156 = por %p154, %p155
    %s158 = sadd.s32 %s157, 1
    %p161 = scmp.eq.s32.totalorder %s13, 1
    %p162 = scmp.ne.s32.totalorder %s157, %s159
    %p163 = scmp.eq.s32.totalorder %s13, 0
    %p164 = por %p162, %p163
    %p165 = scmp.ne.s32.totalorder %s157, %s159
    %p166 = scmp.eq.s32.totalorder %s18, 1
    %p167 = por %p165, %p166
    %p168 = scmp.ne.s32.totalorder %s159, %s160
    %p169 = scmp.eq.s32.totalorder %s18, 0
    %p170 = por %p168, %p169
    %p171 = scmp.ne.s32.totalorder %s159, %s160
    %p172 = scmp.eq.s32.totalorder %s19, 1
    %p173 = por %p171, %p172
    %p175 = scmp.ne.s32.totalorder %s160, %s174
    %p176 = scmp.eq.s32.totalorder %s19, 0
    %p177 = por %p175, %p176
    %s179 = sadd.s32 %s178, 1
    %p182 = scmp.eq.s32.totalorder %s13, 1
    %p183 = scmp.ne.s32.totalorder %s178, %s180
    %p184 = scmp.eq.s32.totalorder %s13, 0
    %p185 = por %p183, %p184
    %p186 = scmp.ne.s32.totalorder %s178, %s180
    %p187 = scmp.eq.s32.totalorder %s18, 1
    %p188 = por %p186, %p187
    %p189 = scmp.ne.s32.totalorder %s180, %s181
    %p190 = scmp.eq.s32.totalorder %s18, 0
    %p191 = por %p189, %p190
    %p192 = scmp.ne.s32.totalorder %s180, %s181
    %p193 = scmp.eq.s32.totalorder %s19, 1
    %p194 = por %p192, %p193
    %p196 = scmp.ne.s32.totalorder %s181, %s195
    %p197 = scmp.eq.s32.totalorder %s19, 0
    %p198 = por %p196, %p197
    %p199 = scmp.le.s32.totalorder 1, %s13
    %p200 = scmp.lt.s32.totalorder %s13, 3
    %p201 = pnand %p199, %p200
    %p202 = pneg %p201
    // Predicated region
    $region9: #{node_block_forward.5} parent=5 // pred_check
      _
    $region10: #{node_block_forward.5} parent=5 // pred_check_branch
      %204 = sbr.rel (%p201) target = $region12
    $region11: #{node_block_forward.5} parent=5 // pred_region
      %s205 = ssub.s32 %s13, 1
      // Predicated region
      $region13: #{node_block_forward.5} parent=11 // pred_check
        %p206 = pneg %p86
      $region14: #{node_block_forward.5} parent=11 // pred_check_branch
        %208 = sbr.rel (%p206) target = $region16
      $region15: #{node_block_forward.5} parent=11 // pred_region
        _
      $region16: #{node_block_forward.5} parent=11 // pred_fallthru
        _
      // Predicated region
      $region17: #{node_block_forward.5} parent=11 // pred_check
        %p209 = pneg %p107
      $region18: #{node_block_forward.5} parent=11 // pred_check_branch
        %211 = sbr.rel (%p209) target = $region20
      $region19: #{node_block_forward.5} parent=11 // pred_region
        _
      $region20: #{node_block_forward.5} parent=11 // pred_fallthru
        _
      // Predicated region
      $region21: #{node_block_forward.5} parent=11 // pred_check
        %p212 = pneg %p128
      $region22: #{node_block_forward.5} parent=11 // pred_check_branch
        %214 = sbr.rel (%p212) target = $region24
      $region23: #{node_block_forward.5} parent=11 // pred_region
        _
      $region24: #{node_block_forward.5} parent=11 // pred_fallthru
        _
      // Predicated region
      $region25: #{node_block_forward.5} parent=11 // pred_check
        %p215 = pneg %p149
      $region26: #{node_block_forward.5} parent=11 // pred_check_branch
        %217 = sbr.rel (%p215) target = $region28
      $region27: #{node_block_forward.5} parent=11 // pred_region
        _
      $region28: #{node_block_forward.5} parent=11 // pred_fallthru
        _
      // Predicated region
      $region29: #{node_block_forward.5} parent=11 // pred_check
        %p218 = pneg %p170
      $region30: #{node_block_forward.5} parent=11 // pred_check_branch
        %220 = sbr.rel (%p218) target = $region32
      $region31: #{node_block_forward.5} parent=11 // pred_region
        _
      $region32: #{node_block_forward.5} parent=11 // pred_fallthru
        _
    $region12: #{node_block_forward.5} parent=5 // pred_fallthru
      _
    %p221 = scmp.lt.s32.totalorder %s13, 2
    // Predicated region
    $region33: #{node_block_forward.5} parent=5 // pred_check
      %p222 = pneg %p221
    $region34: #{node_block_forward.5} parent=5 // pred_check_branch
      %224 = sbr.rel (%p222) target = $region36
    $region35: #{node_block_forward.5} parent=5 // pred_region
      // Predicated region
      $region37: #{node_block_forward.5} parent=35 // pred_check
        %p225 = pneg %p33
      $region38: #{node_block_forward.5} parent=35 // pred_check_branch
        %227 = sbr.rel (%p225) target = $region40
      $region39: #{node_block_forward.5} parent=35 // pred_region
        %s228 = smul.u32 16, %s13
        %p229 = scmp.lt.s32.totalorder %s228, 31
        %s230 = scalar_select %p229, %s228, 31
        %s231 = smul.addr %s230, 8
        %s232 = scalar_lea.vmem %s0, %s231
        %s233 = smul.u32 16, %s13
      $region40: #{node_block_forward.5} parent=35 // pred_fallthru
        _
      // Predicated region
      $region41: #{node_block_forward.5} parent=35 // pred_check
        %p234 = pneg %p59
      $region42: #{node_block_forward.5} parent=35 // pred_check_branch
        %236 = sbr.rel (%p234) target = $region44
      $region43: #{node_block_forward.5} parent=35 // pred_region
        %p237 = scmp.lt.s32.totalorder %s13, 1
        %s238 = scalar_select %p237, %s13, 1
        %s239 = scalar_lea.vmem %s1, %s238
      $region44: #{node_block_forward.5} parent=35 // pred_fallthru
        _
    $region36: #{node_block_forward.5} parent=5 // pred_fallthru
      _
    %p240 = scmp.le.s32.totalorder 1, %s13
    %p241 = scmp.lt.s32.totalorder %s13, 3
    %p242 = pnand %p240, %p241
    %p243 = pneg %p242
    // Predicated region
    $region45: #{node_block_forward.5} parent=5 // pred_check
      _
    $region46: #{node_block_forward.5} parent=5 // pred_check_branch
      %245 = sbr.rel (%p242) target = $region48
    $region47: #{node_block_forward.5} parent=5 // pred_region
      %s246 = ssub.s32 %s13, 1
      %s247 = smul.u32 16, %s18
      %p248 = scmp.lt.s32.totalorder %s247, 31
      %s249 = scalar_select %p248, %s247, 31
      %s250 = smul.addr %s249, 8
      %s251 = scalar_lea.vmem %s0, %s250
      %p252 = pneg %p39
      %p253 = pneg %p36
      %p254 = scmp.lt.s32.totalorder %s18, 1
      %s255 = scalar_select %p254, %s18, 1
      %s256 = scalar_lea.vmem %s1, %s255
      %p257 = pneg %p65
      %p258 = pneg %p62
      %p259 = pneg %p86
      %p260 = pneg %p83
      %p261 = pneg %p107
      %p262 = pneg %p104
      %p263 = pneg %p128
      %p264 = pneg %p125
      %p265 = pneg %p149
      %p266 = pneg %p146
      %p267 = pneg %p170
      %p268 = pneg %p167
      %p269 = pneg %p191
      %p270 = pneg %p188
      %s271 = smul.u32 16, %s18
      %p272 = scmp.lt.s32.totalorder %s271, 31
      %s273 = scalar_select %p272, %s271, 31
      %s274 = smul.addr %s273, 8
      %s275 = scalar_lea.vmem %s0, %s274
      %s276 = smul.u32 16, %s18
      %p277 = scmp.lt.s32.totalorder %s18, 1
      %s278 = scalar_select %p277, %s18, 1
      %s279 = scalar_lea.vmem %s1, %s278
      %p281 = scmp.eq.s32.totalorder %s18, 0
      // Predicated region
      $region49: #{node_block_forward.5} parent=47 // pred_check
        %p282 = pneg %p281
      $region50: #{node_block_forward.5} parent=47 // pred_check_branch
        %284 = sbr.rel (%p282) target = $region52
      $region51: #{node_block_forward.5} parent=47 // pred_region
        %285 = vst [vmem:[%s7] sm:$0xff] 0.0
        %286 = vst [vmem:[%s7 + $0x8] sm:$0xff] 0.0
        %287 = vst [vmem:[%s7 + $0x10] sm:$0xff] 0.0
        %288 = vst [vmem:[%s7 + $0x18] sm:$0xff] 0.0
        %289 = vst [vmem:[%s7 + $0x20] sm:$0xff] 0.0
        %290 = vst [vmem:[%s7 + $0x28] sm:$0xff] 0.0
        %291 = vst [vmem:[%s7 + $0x30] sm:$0xff] 0.0
        %292 = vst [vmem:[%s7 + $0x38] sm:$0xff] 0.0
        %vm293 = vcmask 7168
        %294 = vst.msk [vmem:[#allocation2] sm:$0xff] %vm293, 0.0
        %295 = vst.msk [vmem:[#allocation2 + $0x8] sm:$0xff] %vm293, 0.0
        %296 = vst.msk [vmem:[#allocation2 + $0x10] sm:$0xff] %vm293, 0.0
        %297 = vst.msk [vmem:[#allocation2 + $0x18] sm:$0xff] %vm293, 0.0
        %298 = vst.msk [vmem:[#allocation2 + $0x20] sm:$0xff] %vm293, 0.0
        %299 = vst.msk [vmem:[#allocation2 + $0x28] sm:$0xff] %vm293, 0.0
        %300 = vst.msk [vmem:[#allocation2 + $0x30] sm:$0xff] %vm293, 0.0
        %301 = vst.msk [vmem:[#allocation2 + $0x38] sm:$0xff] %vm293, 0.0
      $region52: #{node_block_forward.5} parent=47 // pred_fallthru
        _
      %v302 = vld [vmem:[%s2] sm:$0x3]
      %v303 = vld [vmem:[%s2 + $0x2] sm:$0x3]
      %v304 = vld [vmem:[%s3] sm:$0x1]
      %v305 = vld [vmem:[%s4] sm:$0x1]
      %vm306 = vcmask 1041408
      %v307 = vsel %vm306, %v302, 0.0
      %v308 = vsel %vm306, %v303, 0.0
      %v309 = vadd.f32 %v307, %v308
      %v310 = vmul.f32 %v309, 0.004
      %v311 = vmul.f32 %v310, %v310
      %v313 = vrot.slane %v311, 7
      %v315 = vsub.f32 %v310, %v313
      %v316 = vmax.f32 %v315, 0.0
      %v317 = vadd.f32 %v316, 1e-05
      %v318 = vrsqrt.pop %v317
      %v321 = vunpack.c.l.s4 1966171168
      %v322 = vunpack.c.0.s8 %v321
      %v323 = vlaneseq
      %v324 = vshrl.u32 %v323, 7
      %v325 = vsub.s32 %v322, %v324
      %v326 = vrot.slane %v318, %v325
      %v327 = vcombine.high %v326, %v326
      %v329 = vunpack.c.l.s4 1966171168
      %v330 = vunpack.c.0.s8 %v329
      %v331 = vlaneseq
      %v332 = vshrl.u32 %v331, 7
      %v333 = vsub.s32 %v330, %v332
      %v334 = vrot.slane %v327, %v333
      %v336 = vmul.f32 %v304, %v334
      %v337 = vmul.f32 %v310, %v336
      %v338 = vsub.f32 %v305, %v337
      %v339 = vld [vmem:[%s275] sm:$0xff]
      %v340 = vld [vmem:[%s275 + $0x8] sm:$0xff]
      %v341 = vld [vmem:[%s275 + $0x10] sm:$0xff]
      %v342 = vld [vmem:[%s275 + $0x18] sm:$0xff]
      %v343 = vld [vmem:[%s275 + $0x20] sm:$0xff]
      %v344 = vld [vmem:[%s275 + $0x28] sm:$0xff]
      %v345 = vld [vmem:[%s275 + $0x30] sm:$0xff]
      %v346 = vld [vmem:[%s275 + $0x38] sm:$0xff]
      %v347 = vld [vmem:[%s275 + $0x40] sm:$0xff]
      %v348 = vld [vmem:[%s275 + $0x48] sm:$0xff]
      %v349 = vld [vmem:[%s275 + $0x50] sm:$0xff]
      %v350 = vld [vmem:[%s275 + $0x58] sm:$0xff]
      %v351 = vld [vmem:[%s275 + $0x60] sm:$0xff]
      %v352 = vld [vmem:[%s275 + $0x68] sm:$0xff]
      %v353 = vld [vmem:[%s275 + $0x70] sm:$0xff]
      %v354 = vld [vmem:[%s275 + $0x78] sm:$0xff]
      %v356 = vlaneseq
      %v357 = vshrl.u32 %v356, 7
      %v358 = vsub.s32 0, %v357
      %v359 = vrot.slane %v336, %v358
      %v361 = vmul.f32 %v339, %v359
      %v362 = vmul.f32 %v340, %v359
      %v363 = vmul.f32 %v341, %v359
      %v364 = vmul.f32 %v342, %v359
      %v365 = vmul.f32 %v343, %v359
      %v366 = vmul.f32 %v344, %v359
      %v367 = vmul.f32 %v345, %v359
      %v368 = vmul.f32 %v346, %v359
      %v369 = vmul.f32 %v347, %v359
      %v370 = vmul.f32 %v348, %v359
      %v371 = vmul.f32 %v349, %v359
      %v372 = vmul.f32 %v350, %v359
      %v373 = vmul.f32 %v351, %v359
      %v374 = vmul.f32 %v352, %v359
      %v375 = vmul.f32 %v353, %v359
      %v376 = vmul.f32 %v354, %v359
      %v378 = vlaneseq
      %v379 = vshrl.u32 %v378, 7
      %v380 = vsub.s32 0, %v379
      %v381 = vrot.slane %v338, %v380
      %v383 = vadd.f32 %v361, %v381
      %v384 = vadd.f32 %v362, %v381
      %v385 = vadd.f32 %v363, %v381
      %v386 = vadd.f32 %v364, %v381
      %v387 = vadd.f32 %v365, %v381
      %v388 = vadd.f32 %v366, %v381
      %v389 = vadd.f32 %v367, %v381
      %v390 = vadd.f32 %v368, %v381
      %v391 = vadd.f32 %v369, %v381
      %v392 = vadd.f32 %v370, %v381
      %v393 = vadd.f32 %v371, %v381
      %v394 = vadd.f32 %v372, %v381
      %v395 = vadd.f32 %v373, %v381
      %v396 = vadd.f32 %v374, %v381
      %v397 = vadd.f32 %v375, %v381
      %v398 = vadd.f32 %v376, %v381
      %v399 = vmax.f32 %v383, 0.0
      %v400 = vmax.f32 %v384, 0.0
      %v401 = vmax.f32 %v385, 0.0
      %v402 = vmax.f32 %v386, 0.0
      %v403 = vmax.f32 %v387, 0.0
      %v404 = vmax.f32 %v388, 0.0
      %v405 = vmax.f32 %v389, 0.0
      %v406 = vmax.f32 %v390, 0.0
      %v407 = vmax.f32 %v391, 0.0
      %v408 = vmax.f32 %v392, 0.0
      %v409 = vmax.f32 %v393, 0.0
      %v410 = vmax.f32 %v394, 0.0
      %v411 = vmax.f32 %v395, 0.0
      %v412 = vmax.f32 %v396, 0.0
      %v413 = vmax.f32 %v397, 0.0
      %v414 = vmax.f32 %v398, 0.0
      %v415 = vpack.c.bf16 %v400, %v399
      %v416 = vpack.c.bf16 %v402, %v401
      %v417 = vpack.c.bf16 %v404, %v403
      %v418 = vpack.c.bf16 %v406, %v405
      %v419 = vpack.c.bf16 %v408, %v407
      %v420 = vpack.c.bf16 %v410, %v409
      %v421 = vpack.c.bf16 %v412, %v411
      %v422 = vpack.c.bf16 %v414, %v413
      %v423 = vld [vmem:[%s5] sm:$0xf]
      %v424 = vld [vmem:[%s5 + $0x4] sm:$0xf]
      %v425 = vld [vmem:[%s5 + $0x8] sm:$0xf]
      %v426 = vld [vmem:[%s5 + $0xc] sm:$0xf]
      %v427 = vld [vmem:[%s5 + $0x10] sm:$0xf]
      %v428 = vld [vmem:[%s5 + $0x14] sm:$0xf]
      %v429 = vld [vmem:[%s5 + $0x18] sm:$0xf]
      %v430 = vld [vmem:[%s5 + $0x1c] sm:$0xf]
      %v431 = vld [vmem:[%s5 + $0x20] sm:$0xf]
      %v432 = vld [vmem:[%s5 + $0x24] sm:$0xf]
      %v433 = vld [vmem:[%s5 + $0x28] sm:$0xf]
      %v434 = vld [vmem:[%s5 + $0x2c] sm:$0xf]
      %v435 = vld [vmem:[%s5 + $0x30] sm:$0xf]
      %v436 = vld [vmem:[%s5 + $0x34] sm:$0xf]
      %v437 = vld [vmem:[%s5 + $0x38] sm:$0xf]
      %v438 = vld [vmem:[%s5 + $0x3c] sm:$0xf]
      %v439 = vld [vmem:[%s6] sm:$0x1]
      %v441 = vlaneseq
      %v442 = vshrl.u32 %v441, 7
      %v443 = vsub.s32 0, %v442
      %v444 = vrot.slane %v439, %v443
      %v462 = vunpack.c.l.b16 %v423
      %v463 = vunpack.c.l.b16 %v424
      %v464 = vunpack.c.l.b16 %v425
      %v465 = vunpack.c.l.b16 %v426
      %v466 = vunpack.c.l.b16 %v427
      %v467 = vunpack.c.l.b16 %v428
      %v468 = vunpack.c.l.b16 %v429
      %v469 = vunpack.c.l.b16 %v430
      %v470 = vunpack.c.l.b16 %v431
      %v471 = vunpack.c.l.b16 %v432
      %v472 = vunpack.c.l.b16 %v433
      %v473 = vunpack.c.l.b16 %v434
      %v474 = vunpack.c.l.b16 %v435
      %v475 = vunpack.c.l.b16 %v436
      %v476 = vunpack.c.l.b16 %v437
      %v477 = vunpack.c.l.b16 %v438
      %v478 = vpack.c.b16 %v463, %v462
      %v479 = vpack.c.b16 %v465, %v464
      %v480 = vpack.c.b16 %v467, %v466
      %v481 = vpack.c.b16 %v469, %v468
      %v482 = vpack.c.b16 %v471, %v470
      %v483 = vpack.c.b16 %v473, %v472
      %v484 = vpack.c.b16 %v475, %v474
      %v485 = vpack.c.b16 %v477, %v476
      %494 = vmatprep.subr.bf16.mxu0 0
      %495 = vmatpush1.bf16.msra.mxu0 %v485
      %496 = vmatprep.subr.bf16.mxu0 0
      %497 = vmatpush1.bf16.msra.mxu0 %v484
      %498 = vmatprep.subr.bf16.mxu0 0
      %499 = vmatpush1.bf16.msra.mxu0 %v483
      %500 = vmatprep.subr.bf16.mxu0 0
      %501 = vmatpush1.bf16.msra.mxu0 %v482
      %502 = vmatprep.subr.bf16.mxu0 0
      %503 = vmatpush1.bf16.msra.mxu0 %v481
      %504 = vmatprep.subr.bf16.mxu0 0
      %505 = vmatpush1.bf16.msra.mxu0 %v480
      %506 = vmatprep.subr.bf16.mxu0 0
      %507 = vmatpush1.bf16.msra.mxu0 %v479
      %508 = vmatprep.subr.bf16.mxu0 0
      %509 = vmatpush1.bf16.msra.mxu0 %v478
      %510 = vmatprep.subr.bf16.mxu0 0
      %511 = vmatpush2.bf16.msra.mxu0 0
      %512 = vmatprep.subr.bf16.mxu0 0
      %513 = vmatpush2.bf16.msra.mxu0 0
      %514 = vmatprep.subr.bf16.mxu0 0
      %515 = vmatpush2.bf16.msra.mxu0 0
      %516 = vmatprep.subr.bf16.mxu0 0
      %517 = vmatpush2.bf16.msra.mxu0 0
      %518 = vmatprep.subr.bf16.mxu0 0
      %519 = vmatpush2.bf16.msra.mxu0 0
      %520 = vmatprep.subr.bf16.mxu0 0
      %521 = vmatpush2.bf16.msra.mxu0 0
      %522 = vmatprep.subr.bf16.mxu0 0
      %523 = vmatpush2.bf16.msra.mxu0 0
      %524 = vmatprep.subr.bf16.mxu0 0
      %525 = vmatpush2.bf16.msra.mxu0 0
      %526 = vmatprep.mubr.bf16.mxu0 0
      %527 = vmatmul.mubr.bf16.gmra.mxu0 %v415
      %v528 = vpop.f32.mrf.mxu0
      %v529 = vadd.f32 %v444, %v528
      %v530 = vpop.f32.mrf.mxu0
      %v531 = vpop.f32.mrf.mxu0
      %v532 = vadd.f32 %v444, %v531
      %v533 = vpop.f32.mrf.mxu0
      %534 = vmatprep.mubr.bf16.mxu0 0
      %535 = vmatmul.mubr.bf16.gmra.mxu0 %v416
      %v536 = vpop.f32.mrf.mxu0
      %v537 = vadd.f32 %v444, %v536
      %v538 = vpop.f32.mrf.mxu0
      %v539 = vpop.f32.mrf.mxu0
      %v540 = vadd.f32 %v444, %v539
      %v541 = vpop.f32.mrf.mxu0
      %542 = vmatprep.mubr.bf16.mxu0 0
      %543 = vmatmul.mubr.bf16.gmra.mxu0 %v417
      %v544 = vpop.f32.mrf.mxu0
      %v545 = vadd.f32 %v444, %v544
      %v546 = vpop.f32.mrf.mxu0
      %v547 = vpop.f32.mrf.mxu0
      %v548 = vadd.f32 %v444, %v547
      %v549 = vpop.f32.mrf.mxu0
      %550 = vmatprep.mubr.bf16.mxu0 0
      %551 = vmatmul.mubr.bf16.gmra.mxu0 %v418
      %v552 = vpop.f32.mrf.mxu0
      %v553 = vadd.f32 %v444, %v552
      %v554 = vpop.f32.mrf.mxu0
      %v555 = vpop.f32.mrf.mxu0
      %v556 = vadd.f32 %v444, %v555
      %v557 = vpop.f32.mrf.mxu0
      %558 = vmatprep.mubr.bf16.mxu0 0
      %559 = vmatmul.mubr.bf16.gmra.mxu0 %v419
      %v560 = vpop.f32.mrf.mxu0
      %v561 = vadd.f32 %v444, %v560
      %v562 = vpop.f32.mrf.mxu0
      %v563 = vpop.f32.mrf.mxu0
      %v564 = vadd.f32 %v444, %v563
      %v565 = vpop.f32.mrf.mxu0
      %566 = vmatprep.mubr.bf16.mxu0 0
      %567 = vmatmul.mubr.bf16.gmra.mxu0 %v420
      %v568 = vpop.f32.mrf.mxu0
      %v569 = vadd.f32 %v444, %v568
      %v570 = vpop.f32.mrf.mxu0
      %v571 = vpop.f32.mrf.mxu0
      %v572 = vadd.f32 %v444, %v571
      %v573 = vpop.f32.mrf.mxu0
      %574 = vmatprep.mubr.bf16.mxu0 0
      %575 = vmatmul.mubr.bf16.gmra.mxu0 %v421
      %v576 = vpop.f32.mrf.mxu0
      %v577 = vadd.f32 %v444, %v576
      %v578 = vpop.f32.mrf.mxu0
      %v579 = vpop.f32.mrf.mxu0
      %v580 = vadd.f32 %v444, %v579
      %v581 = vpop.f32.mrf.mxu0
      %582 = vmatprep.mubr.bf16.mxu0 0
      %583 = vmatmul.mubr.bf16.gmra.mxu0 %v422
      %v584 = vpop.f32.mrf.mxu0
      %v585 = vadd.f32 %v444, %v584
      %v586 = vpop.f32.mrf.mxu0
      %v587 = vpop.f32.mrf.mxu0
      %v588 = vadd.f32 %v444, %v587
      %v589 = vpop.f32.mrf.mxu0
      %590 = vdwg.mxu0
      %v591 = vld [vmem:[%s279] sm:$0x1]
      %v592 = vlaneseq
      %v593 = vshrl.u32 %v592, 7
      %v594 = vadd.s32 %v593, 8
      %v595 = vadd.s32 %v593, 16
      %v596 = vadd.s32 %v593, 24
      %v597 = vadd.s32 %v593, 32
      %v598 = vadd.s32 %v593, 40
      %v599 = vadd.s32 %v593, 48
      %v600 = vadd.s32 %v593, 56
      %v601 = vlaneseq
      %v602 = vshrl.u32 %v601, 7
      %v603 = vsub.s32 0, %v602
      %v604 = vrot.slane %v591, %v603
      %vm605 = vcmp.eq.s32.totalorder %v593, %v604
      %vm606 = vcmp.eq.s32.totalorder %v594, %v604
      %vm607 = vcmp.eq.s32.totalorder %v595, %v604
      %vm608 = vcmp.eq.s32.totalorder %v596, %v604
      %vm609 = vcmp.eq.s32.totalorder %v597, %v604
      %vm610 = vcmp.eq.s32.totalorder %v598, %v604
      %vm611 = vcmp.eq.s32.totalorder %v599, %v604
      %vm612 = vcmp.eq.s32.totalorder %v600, %v604
      %v613 = vsel %vm605, 1, 0
      %v614 = vsel %vm606, 1, 0
      %v615 = vsel %vm607, 1, 0
      %v616 = vsel %vm608, 1, 0
      %v617 = vsel %vm609, 1, 0
      %v618 = vsel %vm610, 1, 0
      %v619 = vsel %vm611, 1, 0
      %v620 = vsel %vm612, 1, 0
      %v621 = vcvt.s32.f32 %v613
      %v622 = vcvt.s32.f32 %v614
      %v623 = vcvt.s32.f32 %v615
      %v624 = vcvt.s32.f32 %v616
      %v625 = vcvt.s32.f32 %v617
      %v626 = vcvt.s32.f32 %v618
      %v627 = vcvt.s32.f32 %v619
      %v628 = vcvt.s32.f32 %v620
      %v629 = vld [vmem:[%s7] sm:$0xff]
      %v630 = vld [vmem:[%s7 + $0x8] sm:$0xff]
      %v631 = vld [vmem:[%s7 + $0x10] sm:$0xff]
      %v632 = vld [vmem:[%s7 + $0x18] sm:$0xff]
      %v633 = vld [vmem:[%s7 + $0x20] sm:$0xff]
      %v634 = vld [vmem:[%s7 + $0x28] sm:$0xff]
      %v635 = vld [vmem:[%s7 + $0x30] sm:$0xff]
      %v636 = vld [vmem:[%s7 + $0x38] sm:$0xff]
      %v637 = vpack.c.bf16 %v622, %v621
      %v638 = vpack.c.bf16 %v624, %v623
      %v639 = vpack.c.bf16 %v626, %v625
      %v640 = vpack.c.bf16 %v628, %v627
      %v641 = vpack.c.bf16 %v532, %v529
      %v642 = vpack.c.bf16 %v540, %v537
      %v643 = vpack.c.bf16 %v548, %v545
      %v644 = vpack.c.bf16 %v556, %v553
      %v645 = vpack.c.bf16 %v564, %v561
      %v646 = vpack.c.bf16 %v572, %v569
      %v647 = vpack.c.bf16 %v580, %v577
      %v648 = vpack.c.bf16 %v588, %v585
      %649 = vmatprep.subr.bf16.mxu0 0
      %650 = vmatpush1.bf16.msra.mxu0 %v648
      %651 = vmatprep.subr.bf16.mxu0 0
      %652 = vmatpush1.bf16.msra.mxu0 %v647
      %653 = vmatprep.subr.bf16.mxu0 0
      %654 = vmatpush1.bf16.msra.mxu0 %v646
      %655 = vmatprep.subr.bf16.mxu0 0
      %656 = vmatpush1.bf16.msra.mxu0 %v645
      %657 = vmatprep.subr.bf16.mxu0 0
      %658 = vmatpush1.bf16.msra.mxu0 %v644
      %659 = vmatprep.subr.bf16.mxu0 0
      %660 = vmatpush1.bf16.msra.mxu0 %v643
      %661 = vmatprep.subr.bf16.mxu0 0
      %662 = vmatpush1.bf16.msra.mxu0 %v642
      %663 = vmatprep.subr.bf16.mxu0 0
      %664 = vmatpush1.bf16.msra.mxu0 %v641
      %665 = vmatprep.subr.bf16.mxu0 0
      %666 = vmatpush2.bf16.msra.mxu0 0
      %667 = vmatprep.subr.bf16.mxu0 0
      %668 = vmatpush2.bf16.msra.mxu0 0
      %669 = vmatprep.subr.bf16.mxu0 0
      %670 = vmatpush2.bf16.msra.mxu0 0
      %671 = vmatprep.subr.bf16.mxu0 0
      %672 = vmatpush2.bf16.msra.mxu0 0
      %673 = vmatprep.subr.bf16.mxu0 0
      %674 = vmatpush2.bf16.msra.mxu0 0
      %675 = vmatprep.subr.bf16.mxu0 0
      %676 = vmatpush2.bf16.msra.mxu0 0
      %677 = vmatprep.subr.bf16.mxu0 0
      %678 = vmatpush2.bf16.msra.mxu0 0
      %679 = vmatprep.subr.bf16.mxu0 0
      %680 = vmatpush2.bf16.msra.mxu0 0
      %681 = vmatprep.mubr.bf16.mxu0 0
      %682 = vmatmul.mubr.bf16.gmra.mxu0 %v637
      %v683 = vpop.f32.mrf.mxu0
      %v684 = vadd.f32 0.0, %v683
      %v685 = vpop.f32.mrf.mxu0
      %v686 = vpop.f32.mrf.mxu0
      %v687 = vadd.f32 0.0, %v686
      %v688 = vpop.f32.mrf.mxu0
      %689 = vmatprep.mubr.bf16.mxu0 0
      %690 = vmatmul.mubr.bf16.gmra.mxu0 %v638
      %v691 = vpop.f32.mrf.mxu0
      %v692 = vadd.f32 0.0, %v691
      %v693 = vpop.f32.mrf.mxu0
      %v694 = vpop.f32.mrf.mxu0
      %v695 = vadd.f32 0.0, %v694
      %v696 = vpop.f32.mrf.mxu0
      %697 = vmatprep.mubr.bf16.mxu0 0
      %698 = vmatmul.mubr.bf16.gmra.mxu0 %v639
      %v699 = vpop.f32.mrf.mxu0
      %v700 = vadd.f32 0.0, %v699
      %v701 = vpop.f32.mrf.mxu0
      %v702 = vpop.f32.mrf.mxu0
      %v703 = vadd.f32 0.0, %v702
      %v704 = vpop.f32.mrf.mxu0
      %705 = vmatprep.mubr.bf16.mxu0 0
      %706 = vmatmul.mubr.bf16.gmra.mxu0 %v640
      %v707 = vpop.f32.mrf.mxu0
      %v708 = vadd.f32 0.0, %v707
      %v709 = vpop.f32.mrf.mxu0
      %v710 = vpop.f32.mrf.mxu0
      %v711 = vadd.f32 0.0, %v710
      %v712 = vpop.f32.mrf.mxu0
      %713 = vdwg.mxu0
      %v714 = vadd.f32 %v629, %v684
      %v715 = vadd.f32 %v630, %v687
      %v716 = vadd.f32 %v631, %v692
      %v717 = vadd.f32 %v632, %v695
      %v718 = vadd.f32 %v633, %v700
      %v719 = vadd.f32 %v634, %v703
      %v720 = vadd.f32 %v635, %v708
      %v721 = vadd.f32 %v636, %v711
      %722 = vst [vmem:[%s7] sm:$0xff] %v714
      %723 = vst [vmem:[%s7 + $0x8] sm:$0xff] %v715
      %724 = vst [vmem:[%s7 + $0x10] sm:$0xff] %v716
      %725 = vst [vmem:[%s7 + $0x18] sm:$0xff] %v717
      %726 = vst [vmem:[%s7 + $0x20] sm:$0xff] %v718
      %727 = vst [vmem:[%s7 + $0x28] sm:$0xff] %v719
      %728 = vst [vmem:[%s7 + $0x30] sm:$0xff] %v720
      %729 = vst [vmem:[%s7 + $0x38] sm:$0xff] %v721
      %v730 = vld [vmem:[#allocation2] sm:$0xff]
      %v731 = vld [vmem:[#allocation2 + $0x8] sm:$0xff]
      %v732 = vld [vmem:[#allocation2 + $0x10] sm:$0xff]
      %v733 = vld [vmem:[#allocation2 + $0x18] sm:$0xff]
      %v734 = vld [vmem:[#allocation2 + $0x20] sm:$0xff]
      %v735 = vld [vmem:[#allocation2 + $0x28] sm:$0xff]
      %v736 = vld [vmem:[#allocation2 + $0x30] sm:$0xff]
      %v737 = vld [vmem:[#allocation2 + $0x38] sm:$0xff]
      %738 = vadd.xlane.f32.xlu0 %v621
      %v739 = vpop.xlane.xlu0 %738
      %740 = vadd.xlane.f32.xlu0 %v622
      %v741 = vpop.xlane.xlu0 %740
      %742 = vadd.xlane.f32.xlu0 %v623
      %v743 = vpop.xlane.xlu0 %742
      %744 = vadd.xlane.f32.xlu0 %v624
      %v745 = vpop.xlane.xlu0 %744
      %746 = vadd.xlane.f32.xlu0 %v625
      %v747 = vpop.xlane.xlu0 %746
      %748 = vadd.xlane.f32.xlu0 %v626
      %v749 = vpop.xlane.xlu0 %748
      %750 = vadd.xlane.f32.xlu0 %v627
      %v751 = vpop.xlane.xlu0 %750
      %752 = vadd.xlane.f32.xlu0 %v628
      %v753 = vpop.xlane.xlu0 %752
      %v754 = vadd.f32 %v730, %v739
      %v755 = vadd.f32 %v731, %v741
      %v756 = vadd.f32 %v732, %v743
      %v757 = vadd.f32 %v733, %v745
      %v758 = vadd.f32 %v734, %v747
      %v759 = vadd.f32 %v735, %v749
      %v760 = vadd.f32 %v736, %v751
      %v761 = vadd.f32 %v737, %v753
      %vm762 = vcmask 7168
      %763 = vst.msk [vmem:[#allocation2] sm:$0xff] %vm762, %v754
      %764 = vst.msk [vmem:[#allocation2 + $0x8] sm:$0xff] %vm762, %v755
      %765 = vst.msk [vmem:[#allocation2 + $0x10] sm:$0xff] %vm762, %v756
      %766 = vst.msk [vmem:[#allocation2 + $0x18] sm:$0xff] %vm762, %v757
      %767 = vst.msk [vmem:[#allocation2 + $0x20] sm:$0xff] %vm762, %v758
      %768 = vst.msk [vmem:[#allocation2 + $0x28] sm:$0xff] %vm762, %v759
      %769 = vst.msk [vmem:[#allocation2 + $0x30] sm:$0xff] %vm762, %v760
      %770 = vst.msk [vmem:[#allocation2 + $0x38] sm:$0xff] %vm762, %v761
      %p771 = scmp.eq.s32.totalorder %s18, 1
      // Predicated region
      $region53: #{node_block_forward.5} parent=47 // pred_check
        %p772 = pneg %p771
      $region54: #{node_block_forward.5} parent=47 // pred_check_branch
        %774 = sbr.rel (%p772) target = $region56
      $region55: #{node_block_forward.5} parent=47 // pred_region
        %v775 = vld [vmem:[#allocation2] sm:$0xff]
        %v776 = vld [vmem:[#allocation2 + $0x8] sm:$0xff]
        %v777 = vld [vmem:[#allocation2 + $0x10] sm:$0xff]
        %v778 = vld [vmem:[#allocation2 + $0x18] sm:$0xff]
        %v779 = vld [vmem:[#allocation2 + $0x20] sm:$0xff]
        %v780 = vld [vmem:[#allocation2 + $0x28] sm:$0xff]
        %v781 = vld [vmem:[#allocation2 + $0x30] sm:$0xff]
        %v782 = vld [vmem:[#allocation2 + $0x38] sm:$0xff]
        %v783 = vmax.f32 %v775, 1.0
        %v784 = vmax.f32 %v776, 1.0
        %v785 = vmax.f32 %v777, 1.0
        %v786 = vmax.f32 %v778, 1.0
        %v787 = vmax.f32 %v779, 1.0
        %v788 = vmax.f32 %v780, 1.0
        %v789 = vmax.f32 %v781, 1.0
        %v790 = vmax.f32 %v782, 1.0
        %v791 = vrcp.pop %v783
        %v792 = vrcp.pop %v784
        %v793 = vrcp.pop %v785
        %v794 = vrcp.pop %v786
        %v795 = vrcp.pop %v787
        %v796 = vrcp.pop %v788
        %v797 = vrcp.pop %v789
        %v798 = vrcp.pop %v790
        %v799 = vld [vmem:[%s7] sm:$0xff]
        %v800 = vld [vmem:[%s7 + $0x8] sm:$0xff]
        %v801 = vld [vmem:[%s7 + $0x10] sm:$0xff]
        %v802 = vld [vmem:[%s7 + $0x18] sm:$0xff]
        %v803 = vld [vmem:[%s7 + $0x20] sm:$0xff]
        %v804 = vld [vmem:[%s7 + $0x28] sm:$0xff]
        %v805 = vld [vmem:[%s7 + $0x30] sm:$0xff]
        %v806 = vld [vmem:[%s7 + $0x38] sm:$0xff]
        %808 = vset.pattern.permute.xlu0 0
        %809 = vperm.xlu0 %808, %v791
        %v810 = vpop.permute.xlu0 %809
        %813 = vset.pattern.permute.xlu0 0
        %814 = vperm.xlu0 %813, %v792
        %v815 = vpop.permute.xlu0 %814
        %818 = vset.pattern.permute.xlu0 0
        %819 = vperm.xlu0 %818, %v793
        %v820 = vpop.permute.xlu0 %819
        %823 = vset.pattern.permute.xlu0 0
        %824 = vperm.xlu0 %823, %v794
        %v825 = vpop.permute.xlu0 %824
        %828 = vset.pattern.permute.xlu0 0
        %829 = vperm.xlu0 %828, %v795
        %v830 = vpop.permute.xlu0 %829
        %833 = vset.pattern.permute.xlu0 0
        %834 = vperm.xlu0 %833, %v796
        %v835 = vpop.permute.xlu0 %834
        %838 = vset.pattern.permute.xlu0 0
        %839 = vperm.xlu0 %838, %v797
        %v840 = vpop.permute.xlu0 %839
        %843 = vset.pattern.permute.xlu0 0
        %844 = vperm.xlu0 %843, %v798
        %v845 = vpop.permute.xlu0 %844
        %v847 = vmul.f32 %v799, %v810
        %v848 = vmul.f32 %v800, %v815
        %v849 = vmul.f32 %v801, %v820
        %v850 = vmul.f32 %v802, %v825
        %v851 = vmul.f32 %v803, %v830
        %v852 = vmul.f32 %v804, %v835
        %v853 = vmul.f32 %v805, %v840
        %v854 = vmul.f32 %v806, %v845
        %855 = vst [vmem:[%s7] sm:$0xff] %v847
        %856 = vst [vmem:[%s7 + $0x8] sm:$0xff] %v848
        %857 = vst [vmem:[%s7 + $0x10] sm:$0xff] %v849
        %858 = vst [vmem:[%s7 + $0x18] sm:$0xff] %v850
        %859 = vst [vmem:[%s7 + $0x20] sm:$0xff] %v851
        %860 = vst [vmem:[%s7 + $0x28] sm:$0xff] %v852
        %861 = vst [vmem:[%s7 + $0x30] sm:$0xff] %v853
        %862 = vst [vmem:[%s7 + $0x38] sm:$0xff] %v854
      $region56: #{node_block_forward.5} parent=47 // pred_fallthru
        _
      // Predicated region
      $region57: #{node_block_forward.5} parent=47 // pred_check
        %p863 = pneg %p188
      $region58: #{node_block_forward.5} parent=47 // pred_check_branch
        %865 = sbr.rel (%p863) target = $region60
      $region59: #{node_block_forward.5} parent=47 // pred_region
        _
      $region60: #{node_block_forward.5} parent=47 // pred_fallthru
        _
      // Predicated region
      $region61: #{node_block_forward.5} parent=47 // pred_check
        %p866 = pneg %p188
      $region62: #{node_block_forward.5} parent=47 // pred_check_branch
        %868 = sbr.rel (%p866) target = $region64
      $region63: #{node_block_forward.5} parent=47 // pred_region
        _
      $region64: #{node_block_forward.5} parent=47 // pred_fallthru
        _
    $region48: #{node_block_forward.5} parent=5 // pred_fallthru
      _
    %p869 = scmp.le.s32.totalorder 2, %s13
    // Predicated region
    $region65: #{node_block_forward.5} parent=5 // pred_check
      %p870 = pneg %p869
    $region66: #{node_block_forward.5} parent=5 // pred_check_branch
      %872 = sbr.rel (%p870) target = $region68
    $region67: #{node_block_forward.5} parent=5 // pred_region
      %s873 = ssub.s32 %s13, 2
    $region68: #{node_block_forward.5} parent=5 // pred_fallthru
      _
  $region6: #{node_block_forward.5} parent=0 // loop_footer
    %s17 = sadd.s32 1, %s13
  $region7: #{node_block_forward.5} parent=0 // loop_footer_branch
    %12 = sbr.rel target = $region3
  $region8: #{node_block_forward.5} parent=0 // loop_exit
    _

</llo_original>
